<compile_context>
chip_gen: v7x
topology: tpu7x:2x2x1
jax: 0.10.0
libtpu: 0.0.40
codegen_flags: <defaults>
</compile_context>

<pallas_src>
import functools

import jax
import jax.numpy as jnp
from jax.experimental import pallas as pl
from jax.experimental.pallas import tpu as pltpu


def _layernorm(x, gamma, beta, eps=1e-5):
    # matches nn.LayerNorm(embed_dim): biased variance, eps=1e-5
    mu = jnp.mean(x, axis=-1, keepdims=True)
    var = jnp.mean((x - mu) ** 2, axis=-1, keepdims=True)
    return (x - mu) * jax.lax.rsqrt(var + eps) * gamma + beta


def _leaky_relu(x, negative_slope=0.01):
    return jnp.where(x >= 0, x, negative_slope * x)


def encoder_kernel(x_ref,
                   g1_ref, bn1_ref, g2_ref, bn2_ref,
                   wqkv_ref, bqkv_ref, wo_ref, bo_ref,
                   w1_ref, b1_ref, w2_ref, b2_ref,
                   out_ref, attn_ref,
                   ctx_ref,
                   *, num_heads, mlp_chunk):
    layer = pl.program_id(1)

    # Layer 0: seed the carried activations. out_ref keeps the same block index across the
    # layer axis, so it stays VMEM-resident and is the x carry for all layers.
    @pl.when(layer == 0)
    def _():
        out_ref[...] = x_ref[...]

    Bt, S, D = out_ref.shape
    H = num_heads
    dh = D // H
    M = Bt * S

    x = out_ref[...].reshape(M, D)

    # ---- pre-norm 1 (f32) ----
    h = _layernorm(x, g1_ref[...], bn1_ref[...])

    # ---- fused QKV projection (bf16 MXU operands, f32 accumulation) ----
    # 1/sqrt(dh) is already folded into the Q columns of wqkv/bqkv (done once at build time).
    qkv = jnp.dot(h.astype(jnp.bfloat16), wqkv_ref[...],
                  preferred_element_type=jnp.float32) + bqkv_ref[...]        # (M, 3D)
    qkv = qkv.astype(jnp.bfloat16)          # single bf16 copy; no f32 q/k/v live tensors

    def _split_heads(off):
        # (M, dh) column bands -> (Bt*H, S, dh), batch-major / head-minor ordering.
        # Only leading-axis concat + leading-dim reshapes (no minor-dim transpose needed).
        parts = [qkv[:, off + i * dh: off + (i + 1) * dh].reshape(Bt, 1, S, dh)
                 for i in range(H)]
        return jnp.concatenate(parts, axis=1).reshape(Bt * H, S, dh)

    q = _split_heads(0)
    k = _split_heads(D)
    v = _split_heads(2 * D)

    # ---- multi-head self-attention, head-batched (single batched einsum over Bt*H) ----
    s = jnp.einsum('bqd,bkd->bqk', q, k,
                   preferred_element_type=jnp.float32)                        # (Bt*H, S, S)
    s = s - jnp.max(s, axis=-1, keepdims=True)
    p = jnp.exp(s)
    p = p / jnp.sum(p, axis=-1, keepdims=True)     # exact normalization (probs are returned)
    # TODO(synk): attn_dropout on the probabilities is identity at inference; omitted.

    # One store of all heads for this layer, already in the (B, H, S, S) layout the caller
    # wants (no per-head partial stores, no wrapper-side transpose afterwards).
    attn_ref[0] = p.reshape(Bt, H, S, S).astype(attn_ref.dtype)

    ctx = jnp.einsum('bqk,bkd->bqd', p.astype(jnp.bfloat16), v,
                     preferred_element_type=jnp.float32)                      # (Bt*H, S, dh)
    ctx4 = ctx.reshape(Bt, H, S, dh)

    # Re-assemble the head-concatenated (M, D) context through a bf16 VMEM scratch so the
    # output projection is ONE full-contraction (M, D)x(D, D) MXU matmul instead of H
    # small-K (dh) matmuls.
    for i in range(H):
        ctx_ref[:, i * dh:(i + 1) * dh] = ctx4[:, i].reshape(M, dh).astype(jnp.bfloat16)
    attn_out = jnp.dot(ctx_ref[...], wo_ref[...],
                       preferred_element_type=jnp.float32) + bo_ref[...]

    # Matches the PyTorch source: x is overwritten by attn() before `attn_dropout(x) + x`
    # (inplace dropout), so at inference the residual doubles the attention output.
    xa = attn_out + attn_out

    # ---- norm2 + MLP (hidden dim tiled: full (M, D*r) f32 hidden never materializes) ----
    h2 = _layernorm(xa, g2_ref[...], bn2_ref[...]).astype(jnp.bfloat16)
    Dr = w1_ref.shape[1]
    acc = jnp.zeros((M, D), jnp.float32)
    for c0 in range(0, Dr, mlp_chunk):
        c1 = c0 + mlp_chunk
        hc = jnp.dot(h2, w1_ref[:, c0:c1],
                     preferred_element_type=jnp.float32) + b1_ref[:, c0:c1]
        # TODO(synk): nn.Dropout(mlp_dropout) before LeakyReLU is identity at inference; omitted.
        hc = _leaky_relu(hc).astype(jnp.bfloat16)            # LeakyReLU, negative_slope=0.01
        acc = acc + jnp.dot(hc, w2_ref[c0:c1, :], preferred_element_type=jnp.float32)
    m = acc + b2_ref[...]

    # mlp_out_dropout identity; the reference again doubles the MLP output (x overwritten first).
    out_ref[...] = (m + m).reshape(Bt, S, D)


WEIGHT_NAMES = ("g1", "bn1", "g2", "bn2",
                "wqkv", "bqkv", "wo", "bo",
                "w1", "b1", "w2", "b2")


def _prep_weights(params, D, H):
    """Fold softmax scale into the Q projection, cast matmul weights to bf16, biases/norms f32."""
    dh = D // H
    scale = 1.0 / (dh ** 0.5)

    def f32(a):
        return jnp.asarray(a, jnp.float32)

    wqkv = f32(params["wqkv"]).at[:, :D].multiply(scale)
    bqkv = f32(params["bqkv"]).at[:, :D].multiply(scale)
    wo = f32(params["wo"])
    if wo.ndim == 3:                           # accept head-split (H, dh, D) layouts too
        wo = wo.reshape(D, D)
    # TODO(synk): optional int8 (v6e) / fp8 (v7x) weight quantization with per-channel scales
    # is not implemented; weights are kept in bf16 for the MXU.
    prepped = dict(
        g1=f32(params["g1"]), bn1=f32(params["bn1"]),
        g2=f32(params["g2"]), bn2=f32(params["bn2"]),
        wqkv=wqkv.astype(jnp.bfloat16), bqkv=bqkv,
        wo=wo.astype(jnp.bfloat16), bo=f32(params["bo"]),
        w1=f32(params["w1"]).astype(jnp.bfloat16), b1=f32(params["b1"]),
        w2=f32(params["w2"]).astype(jnp.bfloat16), b2=f32(params["b2"]),
    )
    return [prepped[n] for n in WEIGHT_NAMES]


def _zero_index_map(ndim):
    zeros = (0,) * ndim

    def index_map(b, l):
        return zeros

    return index_map


def _pick_mlp_chunk(Dr):
    if Dr <= 512:
        return Dr
    for c in (512, 256, 128):
        if Dr % c == 0:
            return c
    return Dr


def _pick_block_b(B, S, D, H, mlp_chunk, attn_itemsize, weight_bytes, budget_bytes):
    """Largest batch block whose rough VMEM footprint fits the budget; prefers >= 2 blocks so the
    'parallel' grid axis can shard across v7x's two TensorCores (no effect on v5e/v6e)."""
    def est(bt):
        m = bt * S
        attn_blk = bt * H * S * S
        act = (2 * bt * S * D * 4                # carried x output block (double-buffered)
               + 2 * attn_blk * attn_itemsize    # attention-weights output block
               + m * 3 * D * 6                   # fused qkv (f32 accum + bf16 copy)
               + 3 * m * D * 2                   # head-split q/k/v views (bf16)
               + 2 * attn_blk * 4                # scores + probs (f32 transients)
               + m * D * 2                       # ctx scratch (bf16)
               + m * D * 12                      # ctx / attn_out / normed activations
               + m * mlp_chunk * 6               # one MLP hidden chunk (f32 + bf16)
               + m * D * 4)                      # MLP output accumulator
        return act + weight_bytes

    divisors = [d for d in range(B, 0, -1) if B % d == 0]
    preferred = [d for d in divisors if d <= B // 2] or divisors
    for d in preferred:
        if est(d) <= budget_bytes:
            return d
    return 1


def build_encoder(n_layers, B, S, D, H, params, *, block_b=None,
                  attn_dtype=jnp.bfloat16,
                  vmem_budget_bytes=44 * 1024 * 1024,
                  vmem_limit_bytes=56 * 1024 * 1024):
    """Fused TransformerEncoder forward.

    Defaults are sized for the most constrained chip (v7x: 64 MiB VMEM, 2 TensorCores).
    On v5e/v6e (128 MiB, single TC) pass block_b=B (or larger blocks) and raise
    vmem_budget_bytes / vmem_limit_bytes toward ~100 MiB so each matmul sees more rows.
    attn_dtype=bf16 halves the attention-weights HBM writeback/VMEM; pass jnp.float32 if
    exact-precision attention maps are required.
    """
    weights = _prep_weights(params, D, H)
    named = dict(zip(WEIGHT_NAMES, weights))
    Dr = named["w1"].shape[1]
    mlp_chunk = _pick_mlp_chunk(Dr)
    attn_itemsize = jnp.dtype(attn_dtype).itemsize
    weight_bytes = sum(int(w.size) * w.dtype.itemsize for w in weights)

    if block_b is None:
        block_b = _pick_block_b(B, S, D, H, mlp_chunk, attn_itemsize,
                                weight_bytes, vmem_budget_bytes)
    Bt = block_b
    assert B % Bt == 0
    nb = B // Bt

    kernel = functools.partial(encoder_kernel, num_heads=H, mlp_chunk=mlp_chunk)

    def make_call(single_buffer_inputs):
        kw = dict(pipeline_mode=pl.Buffered(1)) if single_buffer_inputs else {}
        in_specs = [pl.BlockSpec((Bt, S, D), lambda b, l: (b, 0, 0), **kw)]
        in_specs += [pl.BlockSpec(w.shape, _zero_index_map(w.ndim), **kw) for w in weights]
        out_specs = [
            pl.BlockSpec((Bt, S, D), lambda b, l: (b, 0, 0)),        # VMEM-resident x carry
            pl.BlockSpec((1, Bt, H, S, S), lambda b, l: (l, b, 0, 0, 0)),
        ]
        out_shape = [
            jax.ShapeDtypeStruct((B, S, D), jnp.float32),
            jax.ShapeDtypeStruct((n_layers, B, H, S, S), attn_dtype),
        ]
        return pl.pallas_call(
            kernel,
            grid=(nb, n_layers),
            in_specs=in_specs,
            out_specs=out_specs,
            out_shape=out_shape,
            scratch_shapes=[pltpu.VMEM((Bt * S, D), jnp.bfloat16)],   # head-merge buffer
            compiler_params=pltpu.CompilerParams(
                dimension_semantics=("parallel", "arbitrary"),
                vmem_limit_bytes=vmem_limit_bytes,
            ),
        )

    # Weights / x have a constant (or rarely changing) block index, so a single VMEM buffer
    # suffices (pl.Buffered(1)) and halves their resident footprint.  Fall back to the default
    # double-buffered pipeline if this jax build rejects single buffering.
    calls = [make_call(True), make_call(False)]
    state = {"idx": 0}

    def run(x):
        idx = state["idx"]
        while True:
            try:
                out, attn_all = calls[idx](x, *weights)
                state["idx"] = idx
                break
            except Exception:
                if idx + 1 >= len(calls):
                    raise
                idx += 1
        # attn_all is already (n_layers, B, H, S, S): per-layer slices, no transpose copy.
        return out, [attn_all[i] for i in range(n_layers)]

    return run


def init_params(key, embed_dim, r, num_heads):
    """f32 parameters matching the PyTorch module layout (x @ W convention)."""
    D = embed_dim
    ks = jax.random.split(key, 12)

    def u(k, shape, fan_in):
        bound = 1.0 / (fan_in ** 0.5)
        return jax.random.uniform(k, shape, jnp.float32, -bound, bound)

    wq, wk, wv = u(ks[0], (D, D), D), u(ks[1], (D, D), D), u(ks[2], (D, D), D)
    bq, bk, bv = u(ks[3], (1, D), D), u(ks[4], (1, D), D), u(ks[5], (1, D), D)
    return {
        # LayerNorm params (PyTorch default init: gamma=1, beta=0)
        "g1": jnp.ones((1, D), jnp.float32), "bn1": jnp.zeros((1, D), jnp.float32),
        "g2": jnp.ones((1, D), jnp.float32), "bn2": jnp.zeros((1, D), jnp.float32),
        # fused QKV projection (qkv_bias=True)
        "wqkv": jnp.concatenate([wq, wk, wv], axis=1),
        "bqkv": jnp.concatenate([bq, bk, bv], axis=1),
        # output projection, (D_in head-major, D_out)
        "wo": u(ks[6], (D, D), D), "bo": u(ks[7], (1, D), D),
        # MLP: Linear(D, D*r) -> (Dropout) -> LeakyReLU -> Linear(D*r, D)
        "w1": u(ks[8], (D, D * r), D), "b1": u(ks[9], (1, D * r), D),
        "w2": u(ks[10], (D * r, D), D * r), "b2": u(ks[11], (1, D), D * r),
    }


if __name__ == "__main__":
    B, S, D = 2, 8, 32
    num_heads = 4
    n_layers = 2
    r = 4

    key = jax.random.PRNGKey(0)
    kx, kp = jax.random.split(key)
    x = jax.random.normal(kx, (B, S, D), jnp.float32)
    params = init_params(kp, D, r, num_heads)

    encoder = build_encoder(n_layers, B, S, D, num_heads, params)
    out, attn_weights = encoder(x)
    out = jax.block_until_ready(out)
    attn_weights = [jax.block_until_ready(a) for a in attn_weights]

    assert out.shape == (B, S, D)
    assert len(attn_weights) == n_layers
    assert all(a.shape == (B, num_heads, S, S) for a in attn_weights)
    assert bool(jnp.all(jnp.isfinite(out)))
    # attention rows are (bf16-stored) probabilities: rows sum to ~1
    rowsum = jnp.sum(attn_weights[0].astype(jnp.float32), axis=-1)
    assert bool(jnp.all(jnp.abs(rowsum - 1.0) < 5e-2))
    print("KERNEL_OK")
</pallas_src>

<mosaic_0001>
module attributes {stable_mosaic.version = 11 : i64} {
  func.func @encoder_kernel(%arg0: i32, %arg1: i32, %arg2: memref<1x8x32xf32, #tpu.memory_space<vmem>>, %arg3: memref<1x32xf32, #tpu.memory_space<vmem>>, %arg4: memref<1x32xf32, #tpu.memory_space<vmem>>, %arg5: memref<1x32xf32, #tpu.memory_space<vmem>>, %arg6: memref<1x32xf32, #tpu.memory_space<vmem>>, %arg7: memref<32x96xbf16, #tpu.memory_space<vmem>>, %arg8: memref<1x96xf32, #tpu.memory_space<vmem>>, %arg9: memref<32x32xbf16, #tpu.memory_space<vmem>>, %arg10: memref<1x32xf32, #tpu.memory_space<vmem>>, %arg11: memref<32x128xbf16, #tpu.memory_space<vmem>>, %arg12: memref<1x128xf32, #tpu.memory_space<vmem>>, %arg13: memref<128x32xbf16, #tpu.memory_space<vmem>>, %arg14: memref<1x32xf32, #tpu.memory_space<vmem>>, %arg15: memref<1x8x32xf32, #tpu.memory_space<vmem>>, %arg16: memref<1x1x4x8x8xbf16, #tpu.memory_space<vmem>>, %arg17: memref<8x32xbf16, #tpu.memory_space<vmem>>) attributes {dimension_semantics = [#tpu.dimension_semantics<parallel>, #tpu.dimension_semantics<arbitrary>], iteration_bounds = array<i64: 2, 2>, scalar_prefetch = 0 : i64, scratch_operands = 1 : i64, tpu.core_type = #tpu.core_type<tc>, window_params = [{pipeline_mode = #tpu.pipeline_mode<synchronous>, transform_indices = @transform_0, window_bounds = array<i64: 1, 8, 32>}, {pipeline_mode = #tpu.pipeline_mode<synchronous>, transform_indices = @transform_1, window_bounds = array<i64: 1, 32>}, {pipeline_mode = #tpu.pipeline_mode<synchronous>, transform_indices = @transform_2, window_bounds = array<i64: 1, 32>}, {pipeline_mode = #tpu.pipeline_mode<synchronous>, transform_indices = @transform_3, window_bounds = array<i64: 1, 32>}, {pipeline_mode = #tpu.pipeline_mode<synchronous>, transform_indices = @transform_4, window_bounds = array<i64: 1, 32>}, {pipeline_mode = #tpu.pipeline_mode<synchronous>, transform_indices = @transform_5, window_bounds = array<i64: 32, 96>}, {pipeline_mode = #tpu.pipeline_mode<synchronous>, transform_indices = @transform_6, window_bounds = array<i64: 1, 96>}, {pipeline_mode = #tpu.pipeline_mode<synchronous>, transform_indices = @transform_7, window_bounds = array<i64: 32, 32>}, {pipeline_mode = #tpu.pipeline_mode<synchronous>, transform_indices = @transform_8, window_bounds = array<i64: 1, 32>}, {pipeline_mode = #tpu.pipeline_mode<synchronous>, transform_indices = @transform_9, window_bounds = array<i64: 32, 128>}, {pipeline_mode = #tpu.pipeline_mode<synchronous>, transform_indices = @transform_10, window_bounds = array<i64: 1, 128>}, {pipeline_mode = #tpu.pipeline_mode<synchronous>, transform_indices = @transform_11, window_bounds = array<i64: 128, 32>}, {pipeline_mode = #tpu.pipeline_mode<synchronous>, transform_indices = @transform_12, window_bounds = array<i64: 1, 32>}, {transform_indices = @transform_13, window_bounds = array<i64: 1, 8, 32>}, {transform_indices = @transform_14, window_bounds = array<i64: 1, 1, 4, 8, 8>}]} {
    %c0_i32 = arith.constant 0 : i32
    %0 = arith.cmpi eq, %arg1, %c0_i32 : i32
    %1 = arith.extui %0 : i1 to i32
    %c0_i32_0 = arith.constant 0 : i32
    %2 = arith.cmpi ne, %1, %c0_i32_0 : i32
    scf.if %2 {
      %c0_62 = arith.constant 0 : index
      %c0_63 = arith.constant 0 : index
      %c0_64 = arith.constant 0 : index
      %157 = vector.load %arg2[%c0_62, %c0_63, %c0_64] : memref<1x8x32xf32, #tpu.memory_space<vmem>>, vector<1x8x32xf32>
      %c0_65 = arith.constant 0 : index
      %c0_66 = arith.constant 0 : index
      %c0_67 = arith.constant 0 : index
      %158 = vector.load %arg15[%c0_65, %c0_66, %c0_67] : memref<1x8x32xf32, #tpu.memory_space<vmem>>, vector<1x8x32xf32>
      tpu.vector_store %arg15[%c0_65, %c0_66, %c0_67], %157 {strides = array<i32>} : memref<1x8x32xf32, #tpu.memory_space<vmem>>, vector<1x8x32xf32>,
    } else {
    }
    %c0 = arith.constant 0 : index
    %c0_1 = arith.constant 0 : index
    %c0_2 = arith.constant 0 : index
    %3 = vector.load %arg15[%c0, %c0_1, %c0_2] : memref<1x8x32xf32, #tpu.memory_space<vmem>>, vector<1x8x32xf32>
    %4 = vector.shape_cast %3 : vector<1x8x32xf32> to vector<8x32xf32>
    %c0_3 = arith.constant 0 : index
    %c0_4 = arith.constant 0 : index
    %5 = vector.load %arg3[%c0_3, %c0_4] : memref<1x32xf32, #tpu.memory_space<vmem>>, vector<1x32xf32>
    %c0_5 = arith.constant 0 : index
    %c0_6 = arith.constant 0 : index
    %6 = vector.load %arg4[%c0_5, %c0_6] : memref<1x32xf32, #tpu.memory_space<vmem>>, vector<1x32xf32>
    %cst = arith.constant dense<0.000000e+00> : vector<8xf32>
    %7 = vector.multi_reduction <add>, %4, %cst [1] : vector<8x32xf32> to vector<8xf32>
    %8 = vector.shape_cast %7 : vector<8xf32> to vector<8x1xf32>
    %cst_7 = arith.constant 3.200000e+01 : f32
    %9 = vector.broadcast %cst_7 : f32 to vector<8x1xf32>
    %10 = arith.divf %8, %9 : vector<8x1xf32>
    %11 = vector.broadcast %10 : vector<8x1xf32> to vector<8x32xf32>
    %12 = arith.subf %4, %11 : vector<8x32xf32>
    %13 = arith.mulf %12, %12 : vector<8x32xf32>
    %cst_8 = arith.constant dense<0.000000e+00> : vector<8xf32>
    %14 = vector.multi_reduction <add>, %13, %cst_8 [1] : vector<8x32xf32> to vector<8xf32>
    %15 = vector.shape_cast %14 : vector<8xf32> to vector<8x1xf32>
    %cst_9 = arith.constant 3.200000e+01 : f32
    %16 = vector.broadcast %cst_9 : f32 to vector<8x1xf32>
    %17 = arith.divf %15, %16 : vector<8x1xf32>
    %18 = vector.broadcast %10 : vector<8x1xf32> to vector<8x32xf32>
    %19 = arith.subf %4, %18 : vector<8x32xf32>
    %cst_10 = arith.constant 9.99999974E-6 : f32
    %20 = vector.broadcast %cst_10 : f32 to vector<8x1xf32>
    %21 = arith.addf %17, %20 : vector<8x1xf32>
    %22 = math.rsqrt %21 : vector<8x1xf32>
    %23 = vector.broadcast %22 : vector<8x1xf32> to vector<8x32xf32>
    %24 = arith.mulf %19, %23 : vector<8x32xf32>
    %25 = vector.broadcast %5 : vector<1x32xf32> to vector<8x32xf32>
    %26 = arith.mulf %24, %25 : vector<8x32xf32>
    %27 = vector.broadcast %6 : vector<1x32xf32> to vector<8x32xf32>
    %28 = arith.addf %26, %27 : vector<8x32xf32>
    %29 = arith.truncf %28 : vector<8x32xf32> to vector<8x32xbf16>
    %c0_11 = arith.constant 0 : index
    %c0_12 = arith.constant 0 : index
    %30 = vector.load %arg7[%c0_11, %c0_12] : memref<32x96xbf16, #tpu.memory_space<vmem>>, vector<32x96xbf16>
    %cst_13 = arith.constant dense<0.000000e+00> : vector<8x96xf32>
    %31 = tpu.matmul %29, %30, %cst_13 {dimension_numbers = #tpu.dot_dimension_numbers<[1], [0], [0], [1], [0, 0, 1, 1], [], []>} : vector<8x32xbf16>, vector<32x96xbf16>, vector<8x96xf32> -> vector<8x96xf32>
    %c0_14 = arith.constant 0 : index
    %c0_15 = arith.constant 0 : index
    %32 = vector.load %arg8[%c0_14, %c0_15] : memref<1x96xf32, #tpu.memory_space<vmem>>, vector<1x96xf32>
    %33 = vector.broadcast %32 : vector<1x96xf32> to vector<8x96xf32>
    %34 = arith.addf %31, %33 : vector<8x96xf32>
    %35 = arith.truncf %34 : vector<8x96xf32> to vector<8x96xbf16>
    %36 = vector.extract_strided_slice %35 {offsets = [0, 0], sizes = [8, 8], strides = [1, 1]} : vector<8x96xbf16> to vector<8x8xbf16>
    %37 = vector.shape_cast %36 : vector<8x8xbf16> to vector<1x1x8x8xbf16>
    %38 = vector.extract_strided_slice %35 {offsets = [0, 8], sizes = [8, 8], strides = [1, 1]} : vector<8x96xbf16> to vector<8x8xbf16>
    %39 = vector.shape_cast %38 : vector<8x8xbf16> to vector<1x1x8x8xbf16>
    %40 = vector.extract_strided_slice %35 {offsets = [0, 16], sizes = [8, 8], strides = [1, 1]} : vector<8x96xbf16> to vector<8x8xbf16>
    %41 = vector.shape_cast %40 : vector<8x8xbf16> to vector<1x1x8x8xbf16>
    %42 = vector.extract_strided_slice %35 {offsets = [0, 24], sizes = [8, 8], strides = [1, 1]} : vector<8x96xbf16> to vector<8x8xbf16>
    %43 = vector.shape_cast %42 : vector<8x8xbf16> to vector<1x1x8x8xbf16>
    %44 = tpu.concatenate %37, %39, %41, %43 in 1 : vector<1x1x8x8xbf16>, vector<1x1x8x8xbf16>, vector<1x1x8x8xbf16>, vector<1x1x8x8xbf16> -> vector<1x4x8x8xbf16>
    %45 = vector.shape_cast %44 : vector<1x4x8x8xbf16> to vector<4x8x8xbf16>
    %46 = vector.extract_strided_slice %35 {offsets = [0, 32], sizes = [8, 8], strides = [1, 1]} : vector<8x96xbf16> to vector<8x8xbf16>
    %47 = vector.shape_cast %46 : vector<8x8xbf16> to vector<1x1x8x8xbf16>
    %48 = vector.extract_strided_slice %35 {offsets = [0, 40], sizes = [8, 8], strides = [1, 1]} : vector<8x96xbf16> to vector<8x8xbf16>
    %49 = vector.shape_cast %48 : vector<8x8xbf16> to vector<1x1x8x8xbf16>
    %50 = vector.extract_strided_slice %35 {offsets = [0, 48], sizes = [8, 8], strides = [1, 1]} : vector<8x96xbf16> to vector<8x8xbf16>
    %51 = vector.shape_cast %50 : vector<8x8xbf16> to vector<1x1x8x8xbf16>
    %52 = vector.extract_strided_slice %35 {offsets = [0, 56], sizes = [8, 8], strides = [1, 1]} : vector<8x96xbf16> to vector<8x8xbf16>
    %53 = vector.shape_cast %52 : vector<8x8xbf16> to vector<1x1x8x8xbf16>
    %54 = tpu.concatenate %47, %49, %51, %53 in 1 : vector<1x1x8x8xbf16>, vector<1x1x8x8xbf16>, vector<1x1x8x8xbf16>, vector<1x1x8x8xbf16> -> vector<1x4x8x8xbf16>
    %55 = vector.shape_cast %54 : vector<1x4x8x8xbf16> to vector<4x8x8xbf16>
    %56 = vector.extract_strided_slice %35 {offsets = [0, 64], sizes = [8, 8], strides = [1, 1]} : vector<8x96xbf16> to vector<8x8xbf16>
    %57 = vector.shape_cast %56 : vector<8x8xbf16> to vector<1x1x8x8xbf16>
    %58 = vector.extract_strided_slice %35 {offsets = [0, 72], sizes = [8, 8], strides = [1, 1]} : vector<8x96xbf16> to vector<8x8xbf16>
    %59 = vector.shape_cast %58 : vector<8x8xbf16> to vector<1x1x8x8xbf16>
    %60 = vector.extract_strided_slice %35 {offsets = [0, 80], sizes = [8, 8], strides = [1, 1]} : vector<8x96xbf16> to vector<8x8xbf16>
    %61 = vector.shape_cast %60 : vector<8x8xbf16> to vector<1x1x8x8xbf16>
    %62 = vector.extract_strided_slice %35 {offsets = [0, 88], sizes = [8, 8], strides = [1, 1]} : vector<8x96xbf16> to vector<8x8xbf16>
    %63 = vector.shape_cast %62 : vector<8x8xbf16> to vector<1x1x8x8xbf16>
    %64 = tpu.concatenate %57, %59, %61, %63 in 1 : vector<1x1x8x8xbf16>, vector<1x1x8x8xbf16>, vector<1x1x8x8xbf16>, vector<1x1x8x8xbf16> -> vector<1x4x8x8xbf16>
    %65 = vector.shape_cast %64 : vector<1x4x8x8xbf16> to vector<4x8x8xbf16>
    "tpu.trace_start"() <{level = 10 : i32, message = "bqd,bkd->bqk"}> : () -> ()
    %cst_16 = arith.constant dense<0.000000e+00> : vector<4x8x8xf32>
    %66 = tpu.matmul %45, %55, %cst_16 {dimension_numbers = #tpu.dot_dimension_numbers<[2], [2], [1], [1], [0, 0, 0, 1, 1, 1], [0], [0]>} : vector<4x8x8xbf16>, vector<4x8x8xbf16>, vector<4x8x8xf32> -> vector<4x8x8xf32>
    "tpu.trace_stop"() : () -> ()
    %cst_17 = arith.constant dense<0xFF800000> : vector<4x8xf32>
    %67 = vector.multi_reduction <maximumf>, %66, %cst_17 [2] : vector<4x8x8xf32> to vector<4x8xf32>
    %68 = vector.shape_cast %67 : vector<4x8xf32> to vector<4x8x1xf32>
    %69 = vector.broadcast %68 : vector<4x8x1xf32> to vector<4x8x8xf32>
    %70 = arith.subf %66, %69 : vector<4x8x8xf32>
    %71 = math.exp %70 : vector<4x8x8xf32>
    %cst_18 = arith.constant dense<0.000000e+00> : vector<4x8xf32>
    %72 = vector.multi_reduction <add>, %71, %cst_18 [2] : vector<4x8x8xf32> to vector<4x8xf32>
    %73 = vector.shape_cast %72 : vector<4x8xf32> to vector<4x8x1xf32>
    %74 = vector.broadcast %73 : vector<4x8x1xf32> to vector<4x8x8xf32>
    %75 = arith.divf %71, %74 : vector<4x8x8xf32>
    %76 = vector.shape_cast %75 : vector<4x8x8xf32> to vector<1x4x8x8xf32>
    %77 = arith.truncf %76 : vector<1x4x8x8xf32> to vector<1x4x8x8xbf16>
    %c0_19 = arith.constant 0 : index
    %c0_20 = arith.constant 0 : index
    %c0_21 = arith.constant 0 : index
    %c0_22 = arith.constant 0 : index
    %c0_23 = arith.constant 0 : index
    %78 = vector.load %arg16[%c0_19, %c0_20, %c0_21, %c0_22, %c0_23] : memref<1x1x4x8x8xbf16, #tpu.memory_space<vmem>>, vector<1x1x4x8x8xbf16>
    %79 = vector.shape_cast %78 : vector<1x1x4x8x8xbf16> to vector<1x4x8x8xbf16>
    %80 = vector.shape_cast %77 : vector<1x4x8x8xbf16> to vector<1x1x4x8x8xbf16>
    tpu.vector_store %arg16[%c0_19, %c0_20, %c0_21, %c0_22, %c0_23], %80 {strides = array<i32>} : memref<1x1x4x8x8xbf16, #tpu.memory_space<vmem>>, vector<1x1x4x8x8xbf16>,
    %81 = arith.truncf %75 : vector<4x8x8xf32> to vector<4x8x8xbf16>
    "tpu.trace_start"() <{level = 10 : i32, message = "bqk,bkd->bqd"}> : () -> ()
    %cst_24 = arith.constant dense<0.000000e+00> : vector<4x8x8xf32>
    %82 = tpu.matmul %81, %65, %cst_24 {dimension_numbers = #tpu.dot_dimension_numbers<[2], [1], [1], [2], [0, 0, 0, 1, 1, 2], [0], [0]>} : vector<4x8x8xbf16>, vector<4x8x8xbf16>, vector<4x8x8xf32> -> vector<4x8x8xf32>
    "tpu.trace_stop"() : () -> ()
    %83 = vector.shape_cast %82 : vector<4x8x8xf32> to vector<1x4x8x8xf32>
    %84 = vector.extract_strided_slice %83 {offsets = [0, 0, 0, 0], sizes = [1, 1, 8, 8], strides = [1, 1, 1, 1]} : vector<1x4x8x8xf32> to vector<1x1x8x8xf32>
    %85 = vector.shape_cast %84 : vector<1x1x8x8xf32> to vector<1x8x8xf32>
    %86 = vector.shape_cast %85 : vector<1x8x8xf32> to vector<8x8xf32>
    %87 = arith.truncf %86 : vector<8x8xf32> to vector<8x8xbf16>
    %c0_25 = arith.constant 0 : index
    %c0_26 = arith.constant 0 : index
    %88 = vector.load %arg17[%c0_25, %c0_26] : memref<8x32xbf16, #tpu.memory_space<vmem>>, vector<8x8xbf16>
    tpu.vector_store %arg17[%c0_25, %c0_26], %87 {strides = array<i32>} : memref<8x32xbf16, #tpu.memory_space<vmem>>, vector<8x8xbf16>,
    %89 = vector.extract_strided_slice %83 {offsets = [0, 1, 0, 0], sizes = [1, 1, 8, 8], strides = [1, 1, 1, 1]} : vector<1x4x8x8xf32> to vector<1x1x8x8xf32>
    %90 = vector.shape_cast %89 : vector<1x1x8x8xf32> to vector<1x8x8xf32>
    %91 = vector.shape_cast %90 : vector<1x8x8xf32> to vector<8x8xf32>
    %92 = arith.truncf %91 : vector<8x8xf32> to vector<8x8xbf16>
    %c0_27 = arith.constant 0 : index
    %c8 = arith.constant 8 : index
    %93 = vector.load %arg17[%c0_27, %c8] : memref<8x32xbf16, #tpu.memory_space<vmem>>, vector<8x8xbf16>
    tpu.vector_store %arg17[%c0_27, %c8], %92 {strides = array<i32>} : memref<8x32xbf16, #tpu.memory_space<vmem>>, vector<8x8xbf16>,
    %94 = vector.extract_strided_slice %83 {offsets = [0, 2, 0, 0], sizes = [1, 1, 8, 8], strides = [1, 1, 1, 1]} : vector<1x4x8x8xf32> to vector<1x1x8x8xf32>
    %95 = vector.shape_cast %94 : vector<1x1x8x8xf32> to vector<1x8x8xf32>
    %96 = vector.shape_cast %95 : vector<1x8x8xf32> to vector<8x8xf32>
    %97 = arith.truncf %96 : vector<8x8xf32> to vector<8x8xbf16>
    %c0_28 = arith.constant 0 : index
    %c16 = arith.constant 16 : index
    %98 = vector.load %arg17[%c0_28, %c16] : memref<8x32xbf16, #tpu.memory_space<vmem>>, vector<8x8xbf16>
    tpu.vector_store %arg17[%c0_28, %c16], %97 {strides = array<i32>} : memref<8x32xbf16, #tpu.memory_space<vmem>>, vector<8x8xbf16>,
    %99 = vector.extract_strided_slice %83 {offsets = [0, 3, 0, 0], sizes = [1, 1, 8, 8], strides = [1, 1, 1, 1]} : vector<1x4x8x8xf32> to vector<1x1x8x8xf32>
    %100 = vector.shape_cast %99 : vector<1x1x8x8xf32> to vector<1x8x8xf32>
    %101 = vector.shape_cast %100 : vector<1x8x8xf32> to vector<8x8xf32>
    %102 = arith.truncf %101 : vector<8x8xf32> to vector<8x8xbf16>
    %c0_29 = arith.constant 0 : index
    %c24 = arith.constant 24 : index
    %103 = vector.load %arg17[%c0_29, %c24] : memref<8x32xbf16, #tpu.memory_space<vmem>>, vector<8x8xbf16>
    tpu.vector_store %arg17[%c0_29, %c24], %102 {strides = array<i32>} : memref<8x32xbf16, #tpu.memory_space<vmem>>, vector<8x8xbf16>,
    %c0_30 = arith.constant 0 : index
    %c0_31 = arith.constant 0 : index
    %104 = vector.load %arg17[%c0_30, %c0_31] : memref<8x32xbf16, #tpu.memory_space<vmem>>, vector<8x32xbf16>
    %c0_32 = arith.constant 0 : index
    %c0_33 = arith.constant 0 : index
    %105 = vector.load %arg9[%c0_32, %c0_33] : memref<32x32xbf16, #tpu.memory_space<vmem>>, vector<32x32xbf16>
    %cst_34 = arith.constant dense<0.000000e+00> : vector<8x32xf32>
    %106 = tpu.matmul %104, %105, %cst_34 {dimension_numbers = #tpu.dot_dimension_numbers<[1], [0], [0], [1], [0, 0, 1, 1], [], []>} : vector<8x32xbf16>, vector<32x32xbf16>, vector<8x32xf32> -> vector<8x32xf32>
    %c0_35 = arith.constant 0 : index
    %c0_36 = arith.constant 0 : index
    %107 = vector.load %arg10[%c0_35, %c0_36] : memref<1x32xf32, #tpu.memory_space<vmem>>, vector<1x32xf32>
    %108 = vector.broadcast %107 : vector<1x32xf32> to vector<8x32xf32>
    %109 = arith.addf %106, %108 : vector<8x32xf32>
    %110 = arith.addf %109, %109 : vector<8x32xf32>
    %c0_37 = arith.constant 0 : index
    %c0_38 = arith.constant 0 : index
    %111 = vector.load %arg5[%c0_37, %c0_38] : memref<1x32xf32, #tpu.memory_space<vmem>>, vector<1x32xf32>
    %c0_39 = arith.constant 0 : index
    %c0_40 = arith.constant 0 : index
    %112 = vector.load %arg6[%c0_39, %c0_40] : memref<1x32xf32, #tpu.memory_space<vmem>>, vector<1x32xf32>
    %cst_41 = arith.constant dense<0.000000e+00> : vector<8xf32>
    %113 = vector.multi_reduction <add>, %110, %cst_41 [1] : vector<8x32xf32> to vector<8xf32>
    %114 = vector.shape_cast %113 : vector<8xf32> to vector<8x1xf32>
    %cst_42 = arith.constant 3.200000e+01 : f32
    %115 = vector.broadcast %cst_42 : f32 to vector<8x1xf32>
    %116 = arith.divf %114, %115 : vector<8x1xf32>
    %117 = vector.broadcast %116 : vector<8x1xf32> to vector<8x32xf32>
    %118 = arith.subf %110, %117 : vector<8x32xf32>
    %119 = arith.mulf %118, %118 : vector<8x32xf32>
    %cst_43 = arith.constant dense<0.000000e+00> : vector<8xf32>
    %120 = vector.multi_reduction <add>, %119, %cst_43 [1] : vector<8x32xf32> to vector<8xf32>
    %121 = vector.shape_cast %120 : vector<8xf32> to vector<8x1xf32>
    %cst_44 = arith.constant 3.200000e+01 : f32
    %122 = vector.broadcast %cst_44 : f32 to vector<8x1xf32>
    %123 = arith.divf %121, %122 : vector<8x1xf32>
    %124 = vector.broadcast %116 : vector<8x1xf32> to vector<8x32xf32>
    %125 = arith.subf %110, %124 : vector<8x32xf32>
    %cst_45 = arith.constant 9.99999974E-6 : f32
    %126 = vector.broadcast %cst_45 : f32 to vector<8x1xf32>
    %127 = arith.addf %123, %126 : vector<8x1xf32>
    %128 = math.rsqrt %127 : vector<8x1xf32>
    %129 = vector.broadcast %128 : vector<8x1xf32> to vector<8x32xf32>
    %130 = arith.mulf %125, %129 : vector<8x32xf32>
    %131 = vector.broadcast %111 : vector<1x32xf32> to vector<8x32xf32>
    %132 = arith.mulf %130, %131 : vector<8x32xf32>
    %133 = vector.broadcast %112 : vector<1x32xf32> to vector<8x32xf32>
    %134 = arith.addf %132, %133 : vector<8x32xf32>
    %135 = arith.truncf %134 : vector<8x32xf32> to vector<8x32xbf16>
    %cst_46 = arith.constant 0.000000e+00 : f32
    %136 = vector.broadcast %cst_46 : f32 to vector<8x32xf32>
    %c0_47 = arith.constant 0 : index
    %c0_48 = arith.constant 0 : index
    %137 = vector.load %arg11[%c0_47, %c0_48] : memref<32x128xbf16, #tpu.memory_space<vmem>>, vector<32x128xbf16>
    %cst_49 = arith.constant dense<0.000000e+00> : vector<8x128xf32>
    %138 = tpu.matmul %135, %137, %cst_49 {dimension_numbers = #tpu.dot_dimension_numbers<[1], [0], [0], [1], [0, 0, 1, 1], [], []>} : vector<8x32xbf16>, vector<32x128xbf16>, vector<8x128xf32> -> vector<8x128xf32>
    %c0_50 = arith.constant 0 : index
    %c0_51 = arith.constant 0 : index
    %139 = vector.load %arg12[%c0_50, %c0_51] : memref<1x128xf32, #tpu.memory_space<vmem>>, vector<1x128xf32>
    %140 = vector.broadcast %139 : vector<1x128xf32> to vector<8x128xf32>
    %141 = arith.addf %138, %140 : vector<8x128xf32>
    %cst_52 = arith.constant 0.000000e+00 : f32
    %142 = vector.broadcast %cst_52 : f32 to vector<8x128xf32>
    %143 = arith.cmpf oge, %141, %142 : vector<8x128xf32>
    %cst_53 = arith.constant 0.00999999977 : f32
    %144 = vector.broadcast %cst_53 : f32 to vector<8x128xf32>
    %145 = arith.mulf %144, %141 : vector<8x128xf32>
    %146 = arith.select %143, %141, %145 : vector<8x128xi1>, vector<8x128xf32>
    %147 = arith.truncf %146 : vector<8x128xf32> to vector<8x128xbf16>
    %c0_54 = arith.constant 0 : index
    %c0_55 = arith.constant 0 : index
    %148 = vector.load %arg13[%c0_54, %c0_55] : memref<128x32xbf16, #tpu.memory_space<vmem>>, vector<128x32xbf16>
    %cst_56 = arith.constant dense<0.000000e+00> : vector<8x32xf32>
    %149 = tpu.matmul %147, %148, %cst_56 {dimension_numbers = #tpu.dot_dimension_numbers<[1], [0], [0], [1], [0, 0, 1, 1], [], []>} : vector<8x128xbf16>, vector<128x32xbf16>, vector<8x32xf32> -> vector<8x32xf32>
    %150 = arith.addf %136, %149 : vector<8x32xf32>
    %c0_57 = arith.constant 0 : index
    %c0_58 = arith.constant 0 : index
    %151 = vector.load %arg14[%c0_57, %c0_58] : memref<1x32xf32, #tpu.memory_space<vmem>>, vector<1x32xf32>
    %152 = vector.broadcast %151 : vector<1x32xf32> to vector<8x32xf32>
    %153 = arith.addf %150, %152 : vector<8x32xf32>
    %154 = arith.addf %153, %153 : vector<8x32xf32>
    %155 = vector.shape_cast %154 : vector<8x32xf32> to vector<1x8x32xf32>
    %c0_59 = arith.constant 0 : index
    %c0_60 = arith.constant 0 : index
    %c0_61 = arith.constant 0 : index
    %156 = vector.load %arg15[%c0_59, %c0_60, %c0_61] : memref<1x8x32xf32, #tpu.memory_space<vmem>>, vector<1x8x32xf32>
    tpu.vector_store %arg15[%c0_59, %c0_60, %c0_61], %155 {strides = array<i32>} : memref<1x8x32xf32, #tpu.memory_space<vmem>>, vector<1x8x32xf32>,
    return
  }
  func.func @transform_0(%arg0: i32, %arg1: i32) -> (i32, i32, i32) {
    %c0_i32 = arith.constant 0 : i32
    %c0_i32_0 = arith.constant 0 : i32
    %c0_i32_1 = arith.constant 0 : i32
    return %arg0, %c0_i32, %c0_i32_0 : i32, i32, i32
  }
  func.func @transform_1(%arg0: i32, %arg1: i32) -> (i32, i32) {
    %c0_i32 = arith.constant 0 : i32
    %c0_i32_0 = arith.constant 0 : i32
    %c0_i32_1 = arith.constant 0 : i32
    return %c0_i32, %c0_i32_0 : i32, i32
  }
  func.func @transform_2(%arg0: i32, %arg1: i32) -> (i32, i32) {
    %c0_i32 = arith.constant 0 : i32
    %c0_i32_0 = arith.constant 0 : i32
    %c0_i32_1 = arith.constant 0 : i32
    return %c0_i32, %c0_i32_0 : i32, i32
  }
  func.func @transform_3(%arg0: i32, %arg1: i32) -> (i32, i32) {
    %c0_i32 = arith.constant 0 : i32
    %c0_i32_0 = arith.constant 0 : i32
    %c0_i32_1 = arith.constant 0 : i32
    return %c0_i32, %c0_i32_0 : i32, i32
  }
  func.func @transform_4(%arg0: i32, %arg1: i32) -> (i32, i32) {
    %c0_i32 = arith.constant 0 : i32
    %c0_i32_0 = arith.constant 0 : i32
    %c0_i32_1 = arith.constant 0 : i32
    return %c0_i32, %c0_i32_0 : i32, i32
  }
  func.func @transform_5(%arg0: i32, %arg1: i32) -> (i32, i32) {
    %c0_i32 = arith.constant 0 : i32
    %c0_i32_0 = arith.constant 0 : i32
    %c0_i32_1 = arith.constant 0 : i32
    return %c0_i32, %c0_i32_0 : i32, i32
  }
  func.func @transform_6(%arg0: i32, %arg1: i32) -> (i32, i32) {
    %c0_i32 = arith.constant 0 : i32
    %c0_i32_0 = arith.constant 0 : i32
    %c0_i32_1 = arith.constant 0 : i32
    return %c0_i32, %c0_i32_0 : i32, i32
  }
  func.func @transform_7(%arg0: i32, %arg1: i32) -> (i32, i32) {
    %c0_i32 = arith.constant 0 : i32
    %c0_i32_0 = arith.constant 0 : i32
    %c0_i32_1 = arith.constant 0 : i32
    return %c0_i32, %c0_i32_0 : i32, i32
  }
  func.func @transform_8(%arg0: i32, %arg1: i32) -> (i32, i32) {
    %c0_i32 = arith.constant 0 : i32
    %c0_i32_0 = arith.constant 0 : i32
    %c0_i32_1 = arith.constant 0 : i32
    return %c0_i32, %c0_i32_0 : i32, i32
  }
  func.func @transform_9(%arg0: i32, %arg1: i32) -> (i32, i32) {
    %c0_i32 = arith.constant 0 : i32
    %c0_i32_0 = arith.constant 0 : i32
    %c0_i32_1 = arith.constant 0 : i32
    return %c0_i32, %c0_i32_0 : i32, i32
  }
  func.func @transform_10(%arg0: i32, %arg1: i32) -> (i32, i32) {
    %c0_i32 = arith.constant 0 : i32
    %c0_i32_0 = arith.constant 0 : i32
    %c0_i32_1 = arith.constant 0 : i32
    return %c0_i32, %c0_i32_0 : i32, i32
  }
  func.func @transform_11(%arg0: i32, %arg1: i32) -> (i32, i32) {
    %c0_i32 = arith.constant 0 : i32
    %c0_i32_0 = arith.constant 0 : i32
    %c0_i32_1 = arith.constant 0 : i32
    return %c0_i32, %c0_i32_0 : i32, i32
  }
  func.func @transform_12(%arg0: i32, %arg1: i32) -> (i32, i32) {
    %c0_i32 = arith.constant 0 : i32
    %c0_i32_0 = arith.constant 0 : i32
    %c0_i32_1 = arith.constant 0 : i32
    return %c0_i32, %c0_i32_0 : i32, i32
  }
  func.func @transform_13(%arg0: i32, %arg1: i32) -> (i32, i32, i32) {
    %c0_i32 = arith.constant 0 : i32
    %c0_i32_0 = arith.constant 0 : i32
    %c0_i32_1 = arith.constant 0 : i32
    return %arg0, %c0_i32, %c0_i32_0 : i32, i32, i32
  }
  func.func @transform_14(%arg0: i32, %arg1: i32) -> (i32, i32, i32, i32, i32) {
    %c0_i32 = arith.constant 0 : i32
    %c0_i32_0 = arith.constant 0 : i32
    %c0_i32_1 = arith.constant 0 : i32
    %c0_i32_2 = arith.constant 0 : i32
    return %arg1, %arg0, %c0_i32, %c0_i32_0, %c0_i32_1 : i32, i32, i32, i32, i32
  }
}

module attributes {stable_mosaic.version = 11 : i64} {
  func.func @encoder_kernel(%arg0: i32, %arg1: i32, %arg2: memref<1x8x32xf32, #tpu.memory_space<vmem>>, %arg3: memref<1x32xf32, #tpu.memory_space<vmem>>, %arg4: memref<1x32xf32, #tpu.memory_space<vmem>>, %arg5: memref<1x32xf32, #tpu.memory_space<vmem>>, %arg6: memref<1x32xf32, #tpu.memory_space<vmem>>, %arg7: memref<32x96xbf16, #tpu.memory_space<vmem>>, %arg8: memref<1x96xf32, #tpu.memory_space<vmem>>, %arg9: memref<32x32xbf16, #tpu.memory_space<vmem>>, %arg10: memref<1x32xf32, #tpu.memory_space<vmem>>, %arg11: memref<32x128xbf16, #tpu.memory_space<vmem>>, %arg12: memref<1x128xf32, #tpu.memory_space<vmem>>, %arg13: memref<128x32xbf16, #tpu.memory_space<vmem>>, %arg14: memref<1x32xf32, #tpu.memory_space<vmem>>, %arg15: memref<1x8x32xf32, #tpu.memory_space<vmem>>, %arg16: memref<1x1x4x8x8xbf16, #tpu.memory_space<vmem>>, %arg17: memref<8x32xbf16, #tpu.memory_space<vmem>>) attributes {dimension_semantics = [#tpu.dimension_semantics<parallel>, #tpu.dimension_semantics<arbitrary>], iteration_bounds = array<i64: 2, 2>, scalar_prefetch = 0 : i64, scratch_operands = 1 : i64, tpu.core_type = #tpu.core_type<tc>, window_params = [{transform_indices = @transform_0, window_bounds = array<i64: 1, 8, 32>}, {pipeline_mode = #tpu.pipeline_mode<synchronous>, transform_indices = @transform_1, window_bounds = array<i64: 1, 32>}, {pipeline_mode = #tpu.pipeline_mode<synchronous>, transform_indices = @transform_2, window_bounds = array<i64: 1, 32>}, {pipeline_mode = #tpu.pipeline_mode<synchronous>, transform_indices = @transform_3, window_bounds = array<i64: 1, 32>}, {pipeline_mode = #tpu.pipeline_mode<synchronous>, transform_indices = @transform_4, window_bounds = array<i64: 1, 32>}, {pipeline_mode = #tpu.pipeline_mode<synchronous>, transform_indices = @transform_5, window_bounds = array<i64: 32, 96>}, {pipeline_mode = #tpu.pipeline_mode<synchronous>, transform_indices = @transform_6, window_bounds = array<i64: 1, 96>}, {pipeline_mode = #tpu.pipeline_mode<synchronous>, transform_indices = @transform_7, window_bounds = array<i64: 32, 32>}, {pipeline_mode = #tpu.pipeline_mode<synchronous>, transform_indices = @transform_8, window_bounds = array<i64: 1, 32>}, {pipeline_mode = #tpu.pipeline_mode<synchronous>, transform_indices = @transform_9, window_bounds = array<i64: 32, 128>}, {pipeline_mode = #tpu.pipeline_mode<synchronous>, transform_indices = @transform_10, window_bounds = array<i64: 1, 128>}, {pipeline_mode = #tpu.pipeline_mode<synchronous>, transform_indices = @transform_11, window_bounds = array<i64: 128, 32>}, {pipeline_mode = #tpu.pipeline_mode<synchronous>, transform_indices = @transform_12, window_bounds = array<i64: 1, 32>}, {transform_indices = @transform_13, window_bounds = array<i64: 1, 8, 32>}, {transform_indices = @transform_14, window_bounds = array<i64: 1, 1, 4, 8, 8>}]} {
    %c0_i32 = arith.constant 0 : i32
    %0 = arith.cmpi eq, %arg1, %c0_i32 : i32
    %1 = arith.extui %0 : i1 to i32
    %c0_i32_0 = arith.constant 0 : i32
    %2 = arith.cmpi ne, %1, %c0_i32_0 : i32
    scf.if %2 {
      %c0_62 = arith.constant 0 : index
      %c0_63 = arith.constant 0 : index
      %c0_64 = arith.constant 0 : index
      %157 = vector.load %arg2[%c0_62, %c0_63, %c0_64] : memref<1x8x32xf32, #tpu.memory_space<vmem>>, vector<1x8x32xf32>
      %c0_65 = arith.constant 0 : index
      %c0_66 = arith.constant 0 : index
      %c0_67 = arith.constant 0 : index
      %158 = vector.load %arg15[%c0_65, %c0_66, %c0_67] : memref<1x8x32xf32, #tpu.memory_space<vmem>>, vector<1x8x32xf32>
      tpu.vector_store %arg15[%c0_65, %c0_66, %c0_67], %157 {strides = array<i32>} : memref<1x8x32xf32, #tpu.memory_space<vmem>>, vector<1x8x32xf32>,
    } else {
    }
    %c0 = arith.constant 0 : index
    %c0_1 = arith.constant 0 : index
    %c0_2 = arith.constant 0 : index
    %3 = vector.load %arg15[%c0, %c0_1, %c0_2] : memref<1x8x32xf32, #tpu.memory_space<vmem>>, vector<1x8x32xf32>
    %4 = vector.shape_cast %3 : vector<1x8x32xf32> to vector<8x32xf32>
    %c0_3 = arith.constant 0 : index
    %c0_4 = arith.constant 0 : index
    %5 = vector.load %arg3[%c0_3, %c0_4] : memref<1x32xf32, #tpu.memory_space<vmem>>, vector<1x32xf32>
    %c0_5 = arith.constant 0 : index
    %c0_6 = arith.constant 0 : index
    %6 = vector.load %arg4[%c0_5, %c0_6] : memref<1x32xf32, #tpu.memory_space<vmem>>, vector<1x32xf32>
    %cst = arith.constant dense<0.000000e+00> : vector<8xf32>
    %7 = vector.multi_reduction <add>, %4, %cst [1] : vector<8x32xf32> to vector<8xf32>
    %8 = vector.shape_cast %7 : vector<8xf32> to vector<8x1xf32>
    %cst_7 = arith.constant 3.200000e+01 : f32
    %9 = vector.broadcast %cst_7 : f32 to vector<8x1xf32>
    %10 = arith.divf %8, %9 : vector<8x1xf32>
    %11 = vector.broadcast %10 : vector<8x1xf32> to vector<8x32xf32>
    %12 = arith.subf %4, %11 : vector<8x32xf32>
    %13 = arith.mulf %12, %12 : vector<8x32xf32>
    %cst_8 = arith.constant dense<0.000000e+00> : vector<8xf32>
    %14 = vector.multi_reduction <add>, %13, %cst_8 [1] : vector<8x32xf32> to vector<8xf32>
    %15 = vector.shape_cast %14 : vector<8xf32> to vector<8x1xf32>
    %cst_9 = arith.constant 3.200000e+01 : f32
    %16 = vector.broadcast %cst_9 : f32 to vector<8x1xf32>
    %17 = arith.divf %15, %16 : vector<8x1xf32>
    %18 = vector.broadcast %10 : vector<8x1xf32> to vector<8x32xf32>
    %19 = arith.subf %4, %18 : vector<8x32xf32>
    %cst_10 = arith.constant 9.99999974E-6 : f32
    %20 = vector.broadcast %cst_10 : f32 to vector<8x1xf32>
    %21 = arith.addf %17, %20 : vector<8x1xf32>
    %22 = math.rsqrt %21 : vector<8x1xf32>
    %23 = vector.broadcast %22 : vector<8x1xf32> to vector<8x32xf32>
    %24 = arith.mulf %19, %23 : vector<8x32xf32>
    %25 = vector.broadcast %5 : vector<1x32xf32> to vector<8x32xf32>
    %26 = arith.mulf %24, %25 : vector<8x32xf32>
    %27 = vector.broadcast %6 : vector<1x32xf32> to vector<8x32xf32>
    %28 = arith.addf %26, %27 : vector<8x32xf32>
    %29 = arith.truncf %28 : vector<8x32xf32> to vector<8x32xbf16>
    %c0_11 = arith.constant 0 : index
    %c0_12 = arith.constant 0 : index
    %30 = vector.load %arg7[%c0_11, %c0_12] : memref<32x96xbf16, #tpu.memory_space<vmem>>, vector<32x96xbf16>
    %cst_13 = arith.constant dense<0.000000e+00> : vector<8x96xf32>
    %31 = tpu.matmul %29, %30, %cst_13 {dimension_numbers = #tpu.dot_dimension_numbers<[1], [0], [0], [1], [0, 0, 1, 1], [], []>} : vector<8x32xbf16>, vector<32x96xbf16>, vector<8x96xf32> -> vector<8x96xf32>
    %c0_14 = arith.constant 0 : index
    %c0_15 = arith.constant 0 : index
    %32 = vector.load %arg8[%c0_14, %c0_15] : memref<1x96xf32, #tpu.memory_space<vmem>>, vector<1x96xf32>
    %33 = vector.broadcast %32 : vector<1x96xf32> to vector<8x96xf32>
    %34 = arith.addf %31, %33 : vector<8x96xf32>
    %35 = arith.truncf %34 : vector<8x96xf32> to vector<8x96xbf16>
    %36 = vector.extract_strided_slice %35 {offsets = [0, 0], sizes = [8, 8], strides = [1, 1]} : vector<8x96xbf16> to vector<8x8xbf16>
    %37 = vector.shape_cast %36 : vector<8x8xbf16> to vector<1x1x8x8xbf16>
    %38 = vector.extract_strided_slice %35 {offsets = [0, 8], sizes = [8, 8], strides = [1, 1]} : vector<8x96xbf16> to vector<8x8xbf16>
    %39 = vector.shape_cast %38 : vector<8x8xbf16> to vector<1x1x8x8xbf16>
    %40 = vector.extract_strided_slice %35 {offsets = [0, 16], sizes = [8, 8], strides = [1, 1]} : vector<8x96xbf16> to vector<8x8xbf16>
    %41 = vector.shape_cast %40 : vector<8x8xbf16> to vector<1x1x8x8xbf16>
    %42 = vector.extract_strided_slice %35 {offsets = [0, 24], sizes = [8, 8], strides = [1, 1]} : vector<8x96xbf16> to vector<8x8xbf16>
    %43 = vector.shape_cast %42 : vector<8x8xbf16> to vector<1x1x8x8xbf16>
    %44 = tpu.concatenate %37, %39, %41, %43 in 1 : vector<1x1x8x8xbf16>, vector<1x1x8x8xbf16>, vector<1x1x8x8xbf16>, vector<1x1x8x8xbf16> -> vector<1x4x8x8xbf16>
    %45 = vector.shape_cast %44 : vector<1x4x8x8xbf16> to vector<4x8x8xbf16>
    %46 = vector.extract_strided_slice %35 {offsets = [0, 32], sizes = [8, 8], strides = [1, 1]} : vector<8x96xbf16> to vector<8x8xbf16>
    %47 = vector.shape_cast %46 : vector<8x8xbf16> to vector<1x1x8x8xbf16>
    %48 = vector.extract_strided_slice %35 {offsets = [0, 40], sizes = [8, 8], strides = [1, 1]} : vector<8x96xbf16> to vector<8x8xbf16>
    %49 = vector.shape_cast %48 : vector<8x8xbf16> to vector<1x1x8x8xbf16>
    %50 = vector.extract_strided_slice %35 {offsets = [0, 48], sizes = [8, 8], strides = [1, 1]} : vector<8x96xbf16> to vector<8x8xbf16>
    %51 = vector.shape_cast %50 : vector<8x8xbf16> to vector<1x1x8x8xbf16>
    %52 = vector.extract_strided_slice %35 {offsets = [0, 56], sizes = [8, 8], strides = [1, 1]} : vector<8x96xbf16> to vector<8x8xbf16>
    %53 = vector.shape_cast %52 : vector<8x8xbf16> to vector<1x1x8x8xbf16>
    %54 = tpu.concatenate %47, %49, %51, %53 in 1 : vector<1x1x8x8xbf16>, vector<1x1x8x8xbf16>, vector<1x1x8x8xbf16>, vector<1x1x8x8xbf16> -> vector<1x4x8x8xbf16>
    %55 = vector.shape_cast %54 : vector<1x4x8x8xbf16> to vector<4x8x8xbf16>
    %56 = vector.extract_strided_slice %35 {offsets = [0, 64], sizes = [8, 8], strides = [1, 1]} : vector<8x96xbf16> to vector<8x8xbf16>
    %57 = vector.shape_cast %56 : vector<8x8xbf16> to vector<1x1x8x8xbf16>
    %58 = vector.extract_strided_slice %35 {offsets = [0, 72], sizes = [8, 8], strides = [1, 1]} : vector<8x96xbf16> to vector<8x8xbf16>
    %59 = vector.shape_cast %58 : vector<8x8xbf16> to vector<1x1x8x8xbf16>
    %60 = vector.extract_strided_slice %35 {offsets = [0, 80], sizes = [8, 8], strides = [1, 1]} : vector<8x96xbf16> to vector<8x8xbf16>
    %61 = vector.shape_cast %60 : vector<8x8xbf16> to vector<1x1x8x8xbf16>
    %62 = vector.extract_strided_slice %35 {offsets = [0, 88], sizes = [8, 8], strides = [1, 1]} : vector<8x96xbf16> to vector<8x8xbf16>
    %63 = vector.shape_cast %62 : vector<8x8xbf16> to vector<1x1x8x8xbf16>
    %64 = tpu.concatenate %57, %59, %61, %63 in 1 : vector<1x1x8x8xbf16>, vector<1x1x8x8xbf16>, vector<1x1x8x8xbf16>, vector<1x1x8x8xbf16> -> vector<1x4x8x8xbf16>
    %65 = vector.shape_cast %64 : vector<1x4x8x8xbf16> to vector<4x8x8xbf16>
    "tpu.trace_start"() <{level = 10 : i32, message = "bqd,bkd->bqk"}> : () -> ()
    %cst_16 = arith.constant dense<0.000000e+00> : vector<4x8x8xf32>
    %66 = tpu.matmul %45, %55, %cst_16 {dimension_numbers = #tpu.dot_dimension_numbers<[2], [2], [1], [1], [0, 0, 0, 1, 1, 1], [0], [0]>} : vector<4x8x8xbf16>, vector<4x8x8xbf16>, vector<4x8x8xf32> -> vector<4x8x8xf32>
    "tpu.trace_stop"() : () -> ()
    %cst_17 = arith.constant dense<0xFF800000> : vector<4x8xf32>
    %67 = vector.multi_reduction <maximumf>, %66, %cst_17 [2] : vector<4x8x8xf32> to vector<4x8xf32>
    %68 = vector.shape_cast %67 : vector<4x8xf32> to vector<4x8x1xf32>
    %69 = vector.broadcast %68 : vector<4x8x1xf32> to vector<4x8x8xf32>
    %70 = arith.subf %66, %69 : vector<4x8x8xf32>
    %71 = math.exp %70 : vector<4x8x8xf32>
    %cst_18 = arith.constant dense<0.000000e+00> : vector<4x8xf32>
    %72 = vector.multi_reduction <add>, %71, %cst_18 [2] : vector<4x8x8xf32> to vector<4x8xf32>
    %73 = vector.shape_cast %72 : vector<4x8xf32> to vector<4x8x1xf32>
    %74 = vector.broadcast %73 : vector<4x8x1xf32> to vector<4x8x8xf32>
    %75 = arith.divf %71, %74 : vector<4x8x8xf32>
    %76 = vector.shape_cast %75 : vector<4x8x8xf32> to vector<1x4x8x8xf32>
    %77 = arith.truncf %76 : vector<1x4x8x8xf32> to vector<1x4x8x8xbf16>
    %c0_19 = arith.constant 0 : index
    %c0_20 = arith.constant 0 : index
    %c0_21 = arith.constant 0 : index
    %c0_22 = arith.constant 0 : index
    %c0_23 = arith.constant 0 : index
    %78 = vector.load %arg16[%c0_19, %c0_20, %c0_21, %c0_22, %c0_23] : memref<1x1x4x8x8xbf16, #tpu.memory_space<vmem>>, vector<1x1x4x8x8xbf16>
    %79 = vector.shape_cast %78 : vector<1x1x4x8x8xbf16> to vector<1x4x8x8xbf16>
    %80 = vector.shape_cast %77 : vector<1x4x8x8xbf16> to vector<1x1x4x8x8xbf16>
    tpu.vector_store %arg16[%c0_19, %c0_20, %c0_21, %c0_22, %c0_23], %80 {strides = array<i32>} : memref<1x1x4x8x8xbf16, #tpu.memory_space<vmem>>, vector<1x1x4x8x8xbf16>,
    %81 = arith.truncf %75 : vector<4x8x8xf32> to vector<4x8x8xbf16>
    "tpu.trace_start"() <{level = 10 : i32, message = "bqk,bkd->bqd"}> : () -> ()
    %cst_24 = arith.constant dense<0.000000e+00> : vector<4x8x8xf32>
    %82 = tpu.matmul %81, %65, %cst_24 {dimension_numbers = #tpu.dot_dimension_numbers<[2], [1], [1], [2], [0, 0, 0, 1, 1, 2], [0], [0]>} : vector<4x8x8xbf16>, vector<4x8x8xbf16>, vector<4x8x8xf32> -> vector<4x8x8xf32>
    "tpu.trace_stop"() : () -> ()
    %83 = vector.shape_cast %82 : vector<4x8x8xf32> to vector<1x4x8x8xf32>
    %84 = vector.extract_strided_slice %83 {offsets = [0, 0, 0, 0], sizes = [1, 1, 8, 8], strides = [1, 1, 1, 1]} : vector<1x4x8x8xf32> to vector<1x1x8x8xf32>
    %85 = vector.shape_cast %84 : vector<1x1x8x8xf32> to vector<1x8x8xf32>
    %86 = vector.shape_cast %85 : vector<1x8x8xf32> to vector<8x8xf32>
    %87 = arith.truncf %86 : vector<8x8xf32> to vector<8x8xbf16>
    %c0_25 = arith.constant 0 : index
    %c0_26 = arith.constant 0 : index
    %88 = vector.load %arg17[%c0_25, %c0_26] : memref<8x32xbf16, #tpu.memory_space<vmem>>, vector<8x8xbf16>
    tpu.vector_store %arg17[%c0_25, %c0_26], %87 {strides = array<i32>} : memref<8x32xbf16, #tpu.memory_space<vmem>>, vector<8x8xbf16>,
    %89 = vector.extract_strided_slice %83 {offsets = [0, 1, 0, 0], sizes = [1, 1, 8, 8], strides = [1, 1, 1, 1]} : vector<1x4x8x8xf32> to vector<1x1x8x8xf32>
    %90 = vector.shape_cast %89 : vector<1x1x8x8xf32> to vector<1x8x8xf32>
    %91 = vector.shape_cast %90 : vector<1x8x8xf32> to vector<8x8xf32>
    %92 = arith.truncf %91 : vector<8x8xf32> to vector<8x8xbf16>
    %c0_27 = arith.constant 0 : index
    %c8 = arith.constant 8 : index
    %93 = vector.load %arg17[%c0_27, %c8] : memref<8x32xbf16, #tpu.memory_space<vmem>>, vector<8x8xbf16>
    tpu.vector_store %arg17[%c0_27, %c8], %92 {strides = array<i32>} : memref<8x32xbf16, #tpu.memory_space<vmem>>, vector<8x8xbf16>,
    %94 = vector.extract_strided_slice %83 {offsets = [0, 2, 0, 0], sizes = [1, 1, 8, 8], strides = [1, 1, 1, 1]} : vector<1x4x8x8xf32> to vector<1x1x8x8xf32>
    %95 = vector.shape_cast %94 : vector<1x1x8x8xf32> to vector<1x8x8xf32>
    %96 = vector.shape_cast %95 : vector<1x8x8xf32> to vector<8x8xf32>
    %97 = arith.truncf %96 : vector<8x8xf32> to vector<8x8xbf16>
    %c0_28 = arith.constant 0 : index
    %c16 = arith.constant 16 : index
    %98 = vector.load %arg17[%c0_28, %c16] : memref<8x32xbf16, #tpu.memory_space<vmem>>, vector<8x8xbf16>
    tpu.vector_store %arg17[%c0_28, %c16], %97 {strides = array<i32>} : memref<8x32xbf16, #tpu.memory_space<vmem>>, vector<8x8xbf16>,
    %99 = vector.extract_strided_slice %83 {offsets = [0, 3, 0, 0], sizes = [1, 1, 8, 8], strides = [1, 1, 1, 1]} : vector<1x4x8x8xf32> to vector<1x1x8x8xf32>
    %100 = vector.shape_cast %99 : vector<1x1x8x8xf32> to vector<1x8x8xf32>
    %101 = vector.shape_cast %100 : vector<1x8x8xf32> to vector<8x8xf32>
    %102 = arith.truncf %101 : vector<8x8xf32> to vector<8x8xbf16>
    %c0_29 = arith.constant 0 : index
    %c24 = arith.constant 24 : index
    %103 = vector.load %arg17[%c0_29, %c24] : memref<8x32xbf16, #tpu.memory_space<vmem>>, vector<8x8xbf16>
    tpu.vector_store %arg17[%c0_29, %c24], %102 {strides = array<i32>} : memref<8x32xbf16, #tpu.memory_space<vmem>>, vector<8x8xbf16>,
    %c0_30 = arith.constant 0 : index
    %c0_31 = arith.constant 0 : index
    %104 = vector.load %arg17[%c0_30, %c0_31] : memref<8x32xbf16, #tpu.memory_space<vmem>>, vector<8x32xbf16>
    %c0_32 = arith.constant 0 : index
    %c0_33 = arith.constant 0 : index
    %105 = vector.load %arg9[%c0_32, %c0_33] : memref<32x32xbf16, #tpu.memory_space<vmem>>, vector<32x32xbf16>
    %cst_34 = arith.constant dense<0.000000e+00> : vector<8x32xf32>
    %106 = tpu.matmul %104, %105, %cst_34 {dimension_numbers = #tpu.dot_dimension_numbers<[1], [0], [0], [1], [0, 0, 1, 1], [], []>} : vector<8x32xbf16>, vector<32x32xbf16>, vector<8x32xf32> -> vector<8x32xf32>
    %c0_35 = arith.constant 0 : index
    %c0_36 = arith.constant 0 : index
    %107 = vector.load %arg10[%c0_35, %c0_36] : memref<1x32xf32, #tpu.memory_space<vmem>>, vector<1x32xf32>
    %108 = vector.broadcast %107 : vector<1x32xf32> to vector<8x32xf32>
    %109 = arith.addf %106, %108 : vector<8x32xf32>
    %110 = arith.addf %109, %109 : vector<8x32xf32>
    %c0_37 = arith.constant 0 : index
    %c0_38 = arith.constant 0 : index
    %111 = vector.load %arg5[%c0_37, %c0_38] : memref<1x32xf32, #tpu.memory_space<vmem>>, vector<1x32xf32>
    %c0_39 = arith.constant 0 : index
    %c0_40 = arith.constant 0 : index
    %112 = vector.load %arg6[%c0_39, %c0_40] : memref<1x32xf32, #tpu.memory_space<vmem>>, vector<1x32xf32>
    %cst_41 = arith.constant dense<0.000000e+00> : vector<8xf32>
    %113 = vector.multi_reduction <add>, %110, %cst_41 [1] : vector<8x32xf32> to vector<8xf32>
    %114 = vector.shape_cast %113 : vector<8xf32> to vector<8x1xf32>
    %cst_42 = arith.constant 3.200000e+01 : f32
    %115 = vector.broadcast %cst_42 : f32 to vector<8x1xf32>
    %116 = arith.divf %114, %115 : vector<8x1xf32>
    %117 = vector.broadcast %116 : vector<8x1xf32> to vector<8x32xf32>
    %118 = arith.subf %110, %117 : vector<8x32xf32>
    %119 = arith.mulf %118, %118 : vector<8x32xf32>
    %cst_43 = arith.constant dense<0.000000e+00> : vector<8xf32>
    %120 = vector.multi_reduction <add>, %119, %cst_43 [1] : vector<8x32xf32> to vector<8xf32>
    %121 = vector.shape_cast %120 : vector<8xf32> to vector<8x1xf32>
    %cst_44 = arith.constant 3.200000e+01 : f32
    %122 = vector.broadcast %cst_44 : f32 to vector<8x1xf32>
    %123 = arith.divf %121, %122 : vector<8x1xf32>
    %124 = vector.broadcast %116 : vector<8x1xf32> to vector<8x32xf32>
    %125 = arith.subf %110, %124 : vector<8x32xf32>
    %cst_45 = arith.constant 9.99999974E-6 : f32
    %126 = vector.broadcast %cst_45 : f32 to vector<8x1xf32>
    %127 = arith.addf %123, %126 : vector<8x1xf32>
    %128 = math.rsqrt %127 : vector<8x1xf32>
    %129 = vector.broadcast %128 : vector<8x1xf32> to vector<8x32xf32>
    %130 = arith.mulf %125, %129 : vector<8x32xf32>
    %131 = vector.broadcast %111 : vector<1x32xf32> to vector<8x32xf32>
    %132 = arith.mulf %130, %131 : vector<8x32xf32>
    %133 = vector.broadcast %112 : vector<1x32xf32> to vector<8x32xf32>
    %134 = arith.addf %132, %133 : vector<8x32xf32>
    %135 = arith.truncf %134 : vector<8x32xf32> to vector<8x32xbf16>
    %cst_46 = arith.constant 0.000000e+00 : f32
    %136 = vector.broadcast %cst_46 : f32 to vector<8x32xf32>
    %c0_47 = arith.constant 0 : index
    %c0_48 = arith.constant 0 : index
    %137 = vector.load %arg11[%c0_47, %c0_48] : memref<32x128xbf16, #tpu.memory_space<vmem>>, vector<32x128xbf16>
    %cst_49 = arith.constant dense<0.000000e+00> : vector<8x128xf32>
    %138 = tpu.matmul %135, %137, %cst_49 {dimension_numbers = #tpu.dot_dimension_numbers<[1], [0], [0], [1], [0, 0, 1, 1], [], []>} : vector<8x32xbf16>, vector<32x128xbf16>, vector<8x128xf32> -> vector<8x128xf32>
    %c0_50 = arith.constant 0 : index
    %c0_51 = arith.constant 0 : index
    %139 = vector.load %arg12[%c0_50, %c0_51] : memref<1x128xf32, #tpu.memory_space<vmem>>, vector<1x128xf32>
    %140 = vector.broadcast %139 : vector<1x128xf32> to vector<8x128xf32>
    %141 = arith.addf %138, %140 : vector<8x128xf32>
    %cst_52 = arith.constant 0.000000e+00 : f32
    %142 = vector.broadcast %cst_52 : f32 to vector<8x128xf32>
    %143 = arith.cmpf oge, %141, %142 : vector<8x128xf32>
    %cst_53 = arith.constant 0.00999999977 : f32
    %144 = vector.broadcast %cst_53 : f32 to vector<8x128xf32>
    %145 = arith.mulf %144, %141 : vector<8x128xf32>
    %146 = arith.select %143, %141, %145 : vector<8x128xi1>, vector<8x128xf32>
    %147 = arith.truncf %146 : vector<8x128xf32> to vector<8x128xbf16>
    %c0_54 = arith.constant 0 : index
    %c0_55 = arith.constant 0 : index
    %148 = vector.load %arg13[%c0_54, %c0_55] : memref<128x32xbf16, #tpu.memory_space<vmem>>, vector<128x32xbf16>
    %cst_56 = arith.constant dense<0.000000e+00> : vector<8x32xf32>
    %149 = tpu.matmul %147, %148, %cst_56 {dimension_numbers = #tpu.dot_dimension_numbers<[1], [0], [0], [1], [0, 0, 1, 1], [], []>} : vector<8x128xbf16>, vector<128x32xbf16>, vector<8x32xf32> -> vector<8x32xf32>
    %150 = arith.addf %136, %149 : vector<8x32xf32>
    %c0_57 = arith.constant 0 : index
    %c0_58 = arith.constant 0 : index
    %151 = vector.load %arg14[%c0_57, %c0_58] : memref<1x32xf32, #tpu.memory_space<vmem>>, vector<1x32xf32>
    %152 = vector.broadcast %151 : vector<1x32xf32> to vector<8x32xf32>
    %153 = arith.addf %150, %152 : vector<8x32xf32>
    %154 = arith.addf %153, %153 : vector<8x32xf32>
    %155 = vector.shape_cast %154 : vector<8x32xf32> to vector<1x8x32xf32>
    %c0_59 = arith.constant 0 : index
    %c0_60 = arith.constant 0 : index
    %c0_61 = arith.constant 0 : index
    %156 = vector.load %arg15[%c0_59, %c0_60, %c0_61] : memref<1x8x32xf32, #tpu.memory_space<vmem>>, vector<1x8x32xf32>
    tpu.vector_store %arg15[%c0_59, %c0_60, %c0_61], %155 {strides = array<i32>} : memref<1x8x32xf32, #tpu.memory_space<vmem>>, vector<1x8x32xf32>,
    return
  }
  func.func @transform_0(%arg0: i32, %arg1: i32) -> (i32, i32, i32) {
    %c0_i32 = arith.constant 0 : i32
    %c0_i32_0 = arith.constant 0 : i32
    %c0_i32_1 = arith.constant 0 : i32
    return %arg0, %c0_i32, %c0_i32_0 : i32, i32, i32
  }
  func.func @transform_1(%arg0: i32, %arg1: i32) -> (i32, i32) {
    %c0_i32 = arith.constant 0 : i32
    %c0_i32_0 = arith.constant 0 : i32
    %c0_i32_1 = arith.constant 0 : i32
    return %c0_i32, %c0_i32_0 : i32, i32
  }
  func.func @transform_2(%arg0: i32, %arg1: i32) -> (i32, i32) {
    %c0_i32 = arith.constant 0 : i32
    %c0_i32_0 = arith.constant 0 : i32
    %c0_i32_1 = arith.constant 0 : i32
    return %c0_i32, %c0_i32_0 : i32, i32
  }
  func.func @transform_3(%arg0: i32, %arg1: i32) -> (i32, i32) {
    %c0_i32 = arith.constant 0 : i32
    %c0_i32_0 = arith.constant 0 : i32
    %c0_i32_1 = arith.constant 0 : i32
    return %c0_i32, %c0_i32_0 : i32, i32
  }
  func.func @transform_4(%arg0: i32, %arg1: i32) -> (i32, i32) {
    %c0_i32 = arith.constant 0 : i32
    %c0_i32_0 = arith.constant 0 : i32
    %c0_i32_1 = arith.constant 0 : i32
    return %c0_i32, %c0_i32_0 : i32, i32
  }
  func.func @transform_5(%arg0: i32, %arg1: i32) -> (i32, i32) {
    %c0_i32 = arith.constant 0 : i32
    %c0_i32_0 = arith.constant 0 : i32
    %c0_i32_1 = arith.constant 0 : i32
    return %c0_i32, %c0_i32_0 : i32, i32
  }
  func.func @transform_6(%arg0: i32, %arg1: i32) -> (i32, i32) {
    %c0_i32 = arith.constant 0 : i32
    %c0_i32_0 = arith.constant 0 : i32
    %c0_i32_1 = arith.constant 0 : i32
    return %c0_i32, %c0_i32_0 : i32, i32
  }
  func.func @transform_7(%arg0: i32, %arg1: i32) -> (i32, i32) {
    %c0_i32 = arith.constant 0 : i32
    %c0_i32_0 = arith.constant 0 : i32
    %c0_i32_1 = arith.constant 0 : i32
    return %c0_i32, %c0_i32_0 : i32, i32
  }
  func.func @transform_8(%arg0: i32, %arg1: i32) -> (i32, i32) {
    %c0_i32 = arith.constant 0 : i32
    %c0_i32_0 = arith.constant 0 : i32
    %c0_i32_1 = arith.constant 0 : i32
    return %c0_i32, %c0_i32_0 : i32, i32
  }
  func.func @transform_9(%arg0: i32, %arg1: i32) -> (i32, i32) {
    %c0_i32 = arith.constant 0 : i32
    %c0_i32_0 = arith.constant 0 : i32
    %c0_i32_1 = arith.constant 0 : i32
    return %c0_i32, %c0_i32_0 : i32, i32
  }
  func.func @transform_10(%arg0: i32, %arg1: i32) -> (i32, i32) {
    %c0_i32 = arith.constant 0 : i32
    %c0_i32_0 = arith.constant 0 : i32
    %c0_i32_1 = arith.constant 0 : i32
    return %c0_i32, %c0_i32_0 : i32, i32
  }
  func.func @transform_11(%arg0: i32, %arg1: i32) -> (i32, i32) {
    %c0_i32 = arith.constant 0 : i32
    %c0_i32_0 = arith.constant 0 : i32
    %c0_i32_1 = arith.constant 0 : i32
    return %c0_i32, %c0_i32_0 : i32, i32
  }
  func.func @transform_12(%arg0: i32, %arg1: i32) -> (i32, i32) {
    %c0_i32 = arith.constant 0 : i32
    %c0_i32_0 = arith.constant 0 : i32
    %c0_i32_1 = arith.constant 0 : i32
    return %c0_i32, %c0_i32_0 : i32, i32
  }
  func.func @transform_13(%arg0: i32, %arg1: i32) -> (i32, i32, i32) {
    %c0_i32 = arith.constant 0 : i32
    %c0_i32_0 = arith.constant 0 : i32
    %c0_i32_1 = arith.constant 0 : i32
    return %arg0, %c0_i32, %c0_i32_0 : i32, i32, i32
  }
  func.func @transform_14(%arg0: i32, %arg1: i32) -> (i32, i32, i32, i32, i32) {
    %c0_i32 = arith.constant 0 : i32
    %c0_i32_0 = arith.constant 0 : i32
    %c0_i32_1 = arith.constant 0 : i32
    %c0_i32_2 = arith.constant 0 : i32
    return %arg1, %arg0, %c0_i32, %c0_i32_0, %c0_i32_1 : i32, i32, i32, i32, i32
  }
}

</mosaic_0001>

<llo_original>
// kernel: tpu_custom_call.1
$region0: #{tpu_custom_call.1}
  #allocation0 [shape = 'u32[]', space=smem, size = 0x4, offset = 0x4, fixed_abs, tag = 'smem constant byte address 0x4 - core index']
  #allocation1 [shape = 'u32[144,128]{1,0:T(1,128)}', space=vmem, size = 0x12000, scoped, tag = 'internal scratch']
  #allocation2 [shape = 'bf16[8,32]{1,0:T(8,128)(2,1)}', space=vmem, size = 0x800, scoped, tag = 'scratch operand']
  %s0 = inlined_call_operand.vmem [shape: f32[2,8,32], index: 0, kind: input, shape index: {}]
  %s1 = inlined_call_operand.vmem [shape: f32[1,32], index: 1, kind: input, shape index: {}]
  %s2 = inlined_call_operand.vmem [shape: f32[1,32], index: 2, kind: input, shape index: {}]
  %s3 = inlined_call_operand.vmem [shape: f32[1,32], index: 3, kind: input, shape index: {}]
  %s4 = inlined_call_operand.vmem [shape: f32[1,32], index: 4, kind: input, shape index: {}]
  %s5 = inlined_call_operand.vmem [shape: bf16[32,96], index: 5, kind: input, shape index: {}]
  %s6 = inlined_call_operand.vmem [shape: f32[1,96], index: 6, kind: input, shape index: {}]
  %s7 = inlined_call_operand.vmem [shape: bf16[32,32], index: 7, kind: input, shape index: {}]
  %s8 = inlined_call_operand.vmem [shape: f32[1,32], index: 8, kind: input, shape index: {}]
  %s9 = inlined_call_operand.vmem [shape: bf16[32,128], index: 9, kind: input, shape index: {}]
  %s10 = inlined_call_operand.vmem [shape: f32[1,128], index: 10, kind: input, shape index: {}]
  %s11 = inlined_call_operand.vmem [shape: bf16[128,32], index: 11, kind: input, shape index: {}]
  %s12 = inlined_call_operand.vmem [shape: f32[1,32], index: 12, kind: input, shape index: {}]
  %s13 = inlined_call_operand.hbm [shape: f32[2,8,32], index: 13, kind: output, shape index: {0}]
  %s14 = inlined_call_operand.hbm [shape: bf16[2,2,4,8,8], index: 14, kind: output, shape index: {1}]
  %15 = xla_tuple %s13, %s14
  %s16 = sld [smem:[#allocation0]]
  $region97: #{tpu_custom_call.1} parent=0
    _
  %s18 = ssub.s32 1, %s16
  %s19 = scalar_select 0, %s18, %s16
  $region1: #{tpu_custom_call.1} parent=0
    #allocation3 [shape = 'u8[8192]{0}', space=vmem, size = 0x2000, scoped, tag = 'output window, operand 0']
    #allocation4 [shape = 's32[2]{0}', space=sflag, size = 0x8, scoped, tag = 'scoped memory for tpu_custom_call.1']
    #allocation5 [shape = 'u8[16384]{0}', space=vmem, size = 0x4000, scoped, tag = 'output window, operand 1']
    #allocation6 [shape = 's32[2]{0}', space=sflag, size = 0x8, scoped, tag = 'scoped memory for tpu_custom_call.1']
    %20 = vsyncpa [#allocation4], 0
    %s21 = scalar_lea.sflag [#allocation4], 1
    %22 = vsyncpa %s21, 0
    %23 = vsyncpa [#allocation6], 0
    %s24 = scalar_lea.sflag [#allocation6], 1
    %25 = vsyncpa %s24, 0
    loop: start=0, step=1, limit=6
    $region2: #{tpu_custom_call.1} parent=1 // loop_pre_header
      _
    $region3: #{tpu_custom_call.1} parent=1 // loop_header
      %s27 = sphi 0, %s31
      %p28 = scmp.ge.s32.totalorder %s27, 6
      %s34 = sphi 0, %s46
      %s35 = sphi 0, %s42
      %s36 = sphi 0, %s34
      %s37 = sphi 0, %s35
      %s38 = sphi 0, %s36
      %s39 = sphi 0, %s37
      %s49 = sphi 0, %s51
      %s52 = sphi 0, %s49
      %s53 = sphi 0, %s52
      %s69 = sphi 0, %s53
      %s73 = sphi 0, %s73
      %s75 = sphi 0, %s73
      %s76 = sphi 0, %s75
      %s90 = sphi 0, %s76
      %s94 = sphi 0, %s94
      %s96 = sphi 0, %s94
      %s97 = sphi 0, %s96
      %s111 = sphi 0, %s97
      %s115 = sphi 0, %s115
      %s117 = sphi 0, %s115
      %s118 = sphi 0, %s117
      %s132 = sphi 0, %s118
      %s136 = sphi 0, %s136
      %s138 = sphi 0, %s136
      %s139 = sphi 0, %s138
      %s153 = sphi 0, %s139
      %s157 = sphi 0, %s157
      %s159 = sphi 0, %s157
      %s160 = sphi 0, %s159
      %s174 = sphi 0, %s160
      %s178 = sphi 0, %s178
      %s180 = sphi 0, %s178
      %s181 = sphi 0, %s180
      %s195 = sphi 0, %s181
      %s199 = sphi 0, %s199
      %s201 = sphi 0, %s199
      %s202 = sphi 0, %s201
      %s216 = sphi 0, %s202
      %s220 = sphi 0, %s220
      %s222 = sphi 0, %s220
      %s223 = sphi 0, %s222
      %s237 = sphi 0, %s223
      %s241 = sphi 0, %s241
      %s243 = sphi 0, %s241
      %s244 = sphi 0, %s243
      %s258 = sphi 0, %s244
      %s262 = sphi 0, %s262
      %s264 = sphi 0, %s262
      %s265 = sphi 0, %s264
      %s279 = sphi 0, %s265
      %s283 = sphi 0, %s283
      %s285 = sphi 0, %s283
      %s286 = sphi 0, %s285
      %s300 = sphi 0, %s286
      %s304 = sphi 0, %s304
      %s306 = sphi 0, %s304
      %s307 = sphi 0, %s306
      %s321 = sphi 0, %s307
      %s327 = sphi 0, %s329
      %s330 = sphi 0, %s327
      %s331 = sphi 0, %s330
      %s347 = sphi 0, %s331
      %s355 = sphi 0, %s357
      %s358 = sphi 0, %s355
      %s359 = sphi 0, %s358
      %s375 = sphi 0, %s359
    $region4: #{tpu_custom_call.1} parent=1 // loop_header_branch
      %30 = sbr.rel (%p28) target = $region8
    $region5: #{tpu_custom_call.1} parent=1 // loop_body
      %s32 = ssub.s32 %s27, 1
      %s33 = ssub.s32 %s27, 2
      %s40 = sadd.s32 1, %s35
      %p41 = scmp.ge.s32.totalorder %s40, 2
      %s42 = scalar_select %p41, 0, %s40
      %s43 = sadd.s32 1, %s34
      %s44 = scalar_select %p41, %s43, %s34
      %p45 = scmp.ge.s32.totalorder %s44, 2
      %s46 = scalar_select %p45, 0, %s44
      %s47 = ssub.s32 %s34, %s46
      %p48 = scmp.eq.s32.totalorder %s47, 0
      %s50 = sadd.s32 %s49, 1
      %s51 = scalar_select %p48, %s49, %s50
      %p54 = pneg %p48
      %p55 = scmp.eq.s32.totalorder %s27, 3
      %p56 = por %p54, %p55
      %p57 = scmp.ne.s32.totalorder %s49, %s52
      %p58 = scmp.eq.s32.totalorder %s27, 0
      %p59 = por %p57, %p58
      %p60 = scmp.ne.s32.totalorder %s49, %s52
      %p61 = scmp.eq.s32.totalorder %s32, 3
      %p62 = por %p60, %p61
      %p63 = scmp.ne.s32.totalorder %s52, %s53
      %p64 = scmp.eq.s32.totalorder %s32, 0
      %p65 = por %p63, %p64
      %p66 = scmp.ne.s32.totalorder %s52, %s53
      %p67 = scmp.eq.s32.totalorder %s33, 3
      %p68 = por %p66, %p67
      %p70 = scmp.ne.s32.totalorder %s53, %s69
      %p71 = scmp.eq.s32.totalorder %s33, 0
      %p72 = por %p70, %p71
      %s74 = sadd.s32 %s73, 1
      %p77 = scmp.eq.s32.totalorder %s27, 3
      %p78 = scmp.ne.s32.totalorder %s73, %s75
      %p79 = scmp.eq.s32.totalorder %s27, 0
      %p80 = por %p78, %p79
      %p81 = scmp.ne.s32.totalorder %s73, %s75
      %p82 = scmp.eq.s32.totalorder %s32, 3
      %p83 = por %p81, %p82
      %p84 = scmp.ne.s32.totalorder %s75, %s76
      %p85 = scmp.eq.s32.totalorder %s32, 0
      %p86 = por %p84, %p85
      %p87 = scmp.ne.s32.totalorder %s75, %s76
      %p88 = scmp.eq.s32.totalorder %s33, 3
      %p89 = por %p87, %p88
      %p91 = scmp.ne.s32.totalorder %s76, %s90
      %p92 = scmp.eq.s32.totalorder %s33, 0
      %p93 = por %p91, %p92
      %s95 = sadd.s32 %s94, 1
      %p98 = scmp.eq.s32.totalorder %s27, 3
      %p99 = scmp.ne.s32.totalorder %s94, %s96
      %p100 = scmp.eq.s32.totalorder %s27, 0
      %p101 = por %p99, %p100
      %p102 = scmp.ne.s32.totalorder %s94, %s96
      %p103 = scmp.eq.s32.totalorder %s32, 3
      %p104 = por %p102, %p103
      %p105 = scmp.ne.s32.totalorder %s96, %s97
      %p106 = scmp.eq.s32.totalorder %s32, 0
      %p107 = por %p105, %p106
      %p108 = scmp.ne.s32.totalorder %s96, %s97
      %p109 = scmp.eq.s32.totalorder %s33, 3
      %p110 = por %p108, %p109
      %p112 = scmp.ne.s32.totalorder %s97, %s111
      %p113 = scmp.eq.s32.totalorder %s33, 0
      %p114 = por %p112, %p113
      %s116 = sadd.s32 %s115, 1
      %p119 = scmp.eq.s32.totalorder %s27, 3
      %p120 = scmp.ne.s32.totalorder %s115, %s117
      %p121 = scmp.eq.s32.totalorder %s27, 0
      %p122 = por %p120, %p121
      %p123 = scmp.ne.s32.totalorder %s115, %s117
      %p124 = scmp.eq.s32.totalorder %s32, 3
      %p125 = por %p123, %p124
      %p126 = scmp.ne.s32.totalorder %s117, %s118
      %p127 = scmp.eq.s32.totalorder %s32, 0
      %p128 = por %p126, %p127
      %p129 = scmp.ne.s32.totalorder %s117, %s118
      %p130 = scmp.eq.s32.totalorder %s33, 3
      %p131 = por %p129, %p130
      %p133 = scmp.ne.s32.totalorder %s118, %s132
      %p134 = scmp.eq.s32.totalorder %s33, 0
      %p135 = por %p133, %p134
      %s137 = sadd.s32 %s136, 1
      %p140 = scmp.eq.s32.totalorder %s27, 3
      %p141 = scmp.ne.s32.totalorder %s136, %s138
      %p142 = scmp.eq.s32.totalorder %s27, 0
      %p143 = por %p141, %p142
      %p144 = scmp.ne.s32.totalorder %s136, %s138
      %p145 = scmp.eq.s32.totalorder %s32, 3
      %p146 = por %p144, %p145
      %p147 = scmp.ne.s32.totalorder %s138, %s139
      %p148 = scmp.eq.s32.totalorder %s32, 0
      %p149 = por %p147, %p148
      %p150 = scmp.ne.s32.totalorder %s138, %s139
      %p151 = scmp.eq.s32.totalorder %s33, 3
      %p152 = por %p150, %p151
      %p154 = scmp.ne.s32.totalorder %s139, %s153
      %p155 = scmp.eq.s32.totalorder %s33, 0
      %p156 = por %p154, %p155
      %s158 = sadd.s32 %s157, 1
      %p161 = scmp.eq.s32.totalorder %s27, 3
      %p162 = scmp.ne.s32.totalorder %s157, %s159
      %p163 = scmp.eq.s32.totalorder %s27, 0
      %p164 = por %p162, %p163
      %p165 = scmp.ne.s32.totalorder %s157, %s159
      %p166 = scmp.eq.s32.totalorder %s32, 3
      %p167 = por %p165, %p166
      %p168 = scmp.ne.s32.totalorder %s159, %s160
      %p169 = scmp.eq.s32.totalorder %s32, 0
      %p170 = por %p168, %p169
      %p171 = scmp.ne.s32.totalorder %s159, %s160
      %p172 = scmp.eq.s32.totalorder %s33, 3
      %p173 = por %p171, %p172
      %p175 = scmp.ne.s32.totalorder %s160, %s174
      %p176 = scmp.eq.s32.totalorder %s33, 0
      %p177 = por %p175, %p176
      %s179 = sadd.s32 %s178, 1
      %p182 = scmp.eq.s32.totalorder %s27, 3
      %p183 = scmp.ne.s32.totalorder %s178, %s180
      %p184 = scmp.eq.s32.totalorder %s27, 0
      %p185 = por %p183, %p184
      %p186 = scmp.ne.s32.totalorder %s178, %s180
      %p187 = scmp.eq.s32.totalorder %s32, 3
      %p188 = por %p186, %p187
      %p189 = scmp.ne.s32.totalorder %s180, %s181
      %p190 = scmp.eq.s32.totalorder %s32, 0
      %p191 = por %p189, %p190
      %p192 = scmp.ne.s32.totalorder %s180, %s181
      %p193 = scmp.eq.s32.totalorder %s33, 3
      %p194 = por %p192, %p193
      %p196 = scmp.ne.s32.totalorder %s181, %s195
      %p197 = scmp.eq.s32.totalorder %s33, 0
      %p198 = por %p196, %p197
      %s200 = sadd.s32 %s199, 1
      %p203 = scmp.eq.s32.totalorder %s27, 3
      %p204 = scmp.ne.s32.totalorder %s199, %s201
      %p205 = scmp.eq.s32.totalorder %s27, 0
      %p206 = por %p204, %p205
      %p207 = scmp.ne.s32.totalorder %s199, %s201
      %p208 = scmp.eq.s32.totalorder %s32, 3
      %p209 = por %p207, %p208
      %p210 = scmp.ne.s32.totalorder %s201, %s202
      %p211 = scmp.eq.s32.totalorder %s32, 0
      %p212 = por %p210, %p211
      %p213 = scmp.ne.s32.totalorder %s201, %s202
      %p214 = scmp.eq.s32.totalorder %s33, 3
      %p215 = por %p213, %p214
      %p217 = scmp.ne.s32.totalorder %s202, %s216
      %p218 = scmp.eq.s32.totalorder %s33, 0
      %p219 = por %p217, %p218
      %s221 = sadd.s32 %s220, 1
      %p224 = scmp.eq.s32.totalorder %s27, 3
      %p225 = scmp.ne.s32.totalorder %s220, %s222
      %p226 = scmp.eq.s32.totalorder %s27, 0
      %p227 = por %p225, %p226
      %p228 = scmp.ne.s32.totalorder %s220, %s222
      %p229 = scmp.eq.s32.totalorder %s32, 3
      %p230 = por %p228, %p229
      %p231 = scmp.ne.s32.totalorder %s222, %s223
      %p232 = scmp.eq.s32.totalorder %s32, 0
      %p233 = por %p231, %p232
      %p234 = scmp.ne.s32.totalorder %s222, %s223
      %p235 = scmp.eq.s32.totalorder %s33, 3
      %p236 = por %p234, %p235
      %p238 = scmp.ne.s32.totalorder %s223, %s237
      %p239 = scmp.eq.s32.totalorder %s33, 0
      %p240 = por %p238, %p239
      %s242 = sadd.s32 %s241, 1
      %p245 = scmp.eq.s32.totalorder %s27, 3
      %p246 = scmp.ne.s32.totalorder %s241, %s243
      %p247 = scmp.eq.s32.totalorder %s27, 0
      %p248 = por %p246, %p247
      %p249 = scmp.ne.s32.totalorder %s241, %s243
      %p250 = scmp.eq.s32.totalorder %s32, 3
      %p251 = por %p249, %p250
      %p252 = scmp.ne.s32.totalorder %s243, %s244
      %p253 = scmp.eq.s32.totalorder %s32, 0
      %p254 = por %p252, %p253
      %p255 = scmp.ne.s32.totalorder %s243, %s244
      %p256 = scmp.eq.s32.totalorder %s33, 3
      %p257 = por %p255, %p256
      %p259 = scmp.ne.s32.totalorder %s244, %s258
      %p260 = scmp.eq.s32.totalorder %s33, 0
      %p261 = por %p259, %p260
      %s263 = sadd.s32 %s262, 1
      %p266 = scmp.eq.s32.totalorder %s27, 3
      %p267 = scmp.ne.s32.totalorder %s262, %s264
      %p268 = scmp.eq.s32.totalorder %s27, 0
      %p269 = por %p267, %p268
      %p270 = scmp.ne.s32.totalorder %s262, %s264
      %p271 = scmp.eq.s32.totalorder %s32, 3
      %p272 = por %p270, %p271
      %p273 = scmp.ne.s32.totalorder %s264, %s265
      %p274 = scmp.eq.s32.totalorder %s32, 0
      %p275 = por %p273, %p274
      %p276 = scmp.ne.s32.totalorder %s264, %s265
      %p277 = scmp.eq.s32.totalorder %s33, 3
      %p278 = por %p276, %p277
      %p280 = scmp.ne.s32.totalorder %s265, %s279
      %p281 = scmp.eq.s32.totalorder %s33, 0
      %p282 = por %p280, %p281
      %s284 = sadd.s32 %s283, 1
      %p287 = scmp.eq.s32.totalorder %s27, 3
      %p288 = scmp.ne.s32.totalorder %s283, %s285
      %p289 = scmp.eq.s32.totalorder %s27, 0
      %p290 = por %p288, %p289
      %p291 = scmp.ne.s32.totalorder %s283, %s285
      %p292 = scmp.eq.s32.totalorder %s32, 3
      %p293 = por %p291, %p292
      %p294 = scmp.ne.s32.totalorder %s285, %s286
      %p295 = scmp.eq.s32.totalorder %s32, 0
      %p296 = por %p294, %p295
      %p297 = scmp.ne.s32.totalorder %s285, %s286
      %p298 = scmp.eq.s32.totalorder %s33, 3
      %p299 = por %p297, %p298
      %p301 = scmp.ne.s32.totalorder %s286, %s300
      %p302 = scmp.eq.s32.totalorder %s33, 0
      %p303 = por %p301, %p302
      %s305 = sadd.s32 %s304, 1
      %p308 = scmp.eq.s32.totalorder %s27, 3
      %p309 = scmp.ne.s32.totalorder %s304, %s306
      %p310 = scmp.eq.s32.totalorder %s27, 0
      %p311 = por %p309, %p310
      %p312 = scmp.ne.s32.totalorder %s304, %s306
      %p313 = scmp.eq.s32.totalorder %s32, 3
      %p314 = por %p312, %p313
      %p315 = scmp.ne.s32.totalorder %s306, %s307
      %p316 = scmp.eq.s32.totalorder %s32, 0
      %p317 = por %p315, %p316
      %p318 = scmp.ne.s32.totalorder %s306, %s307
      %p319 = scmp.eq.s32.totalorder %s33, 3
      %p320 = por %p318, %p319
      %p322 = scmp.ne.s32.totalorder %s307, %s321
      %p323 = scmp.eq.s32.totalorder %s33, 0
      %p324 = por %p322, %p323
      %s325 = ssub.s32 %s34, %s46
      %p326 = scmp.eq.s32.totalorder %s325, 0
      %s328 = sadd.s32 %s327, 1
      %s329 = scalar_select %p326, %s327, %s328
      %p332 = pneg %p326
      %p333 = scmp.eq.s32.totalorder %s27, 3
      %p334 = por %p332, %p333
      %p335 = scmp.ne.s32.totalorder %s327, %s330
      %p336 = scmp.eq.s32.totalorder %s27, 0
      %p337 = por %p335, %p336
      %p338 = scmp.ne.s32.totalorder %s327, %s330
      %p339 = scmp.eq.s32.totalorder %s32, 3
      %p340 = por %p338, %p339
      %p341 = scmp.ne.s32.totalorder %s330, %s331
      %p342 = scmp.eq.s32.totalorder %s32, 0
      %p343 = por %p341, %p342
      %p344 = scmp.ne.s32.totalorder %s330, %s331
      %p345 = scmp.eq.s32.totalorder %s33, 3
      %p346 = por %p344, %p345
      %p348 = scmp.ne.s32.totalorder %s331, %s347
      %p349 = scmp.eq.s32.totalorder %s33, 0
      %p350 = por %p348, %p349
      %s351 = ssub.s32 %s35, %s42
      %s352 = ssub.s32 %s34, %s46
      %s353 = sor.u32 %s351, %s352
      %p354 = scmp.eq.s32.totalorder %s353, 0
      %s356 = sadd.s32 %s355, 1
      %s357 = scalar_select %p354, %s355, %s356
      %p360 = pneg %p354
      %p361 = scmp.eq.s32.totalorder %s27, 3
      %p362 = por %p360, %p361
      %p363 = scmp.ne.s32.totalorder %s355, %s358
      %p364 = scmp.eq.s32.totalorder %s27, 0
      %p365 = por %p363, %p364
      %p366 = scmp.ne.s32.totalorder %s355, %s358
      %p367 = scmp.eq.s32.totalorder %s32, 3
      %p368 = por %p366, %p367
      %p369 = scmp.ne.s32.totalorder %s358, %s359
      %p370 = scmp.eq.s32.totalorder %s32, 0
      %p371 = por %p369, %p370
      %p372 = scmp.ne.s32.totalorder %s358, %s359
      %p373 = scmp.eq.s32.totalorder %s33, 3
      %p374 = por %p372, %p373
      %p376 = scmp.ne.s32.totalorder %s359, %s375
      %p377 = scmp.eq.s32.totalorder %s33, 0
      %p378 = por %p376, %p377
      %p379 = scmp.le.s32.totalorder 1, %s27
      %p380 = scmp.lt.s32.totalorder %s27, 5
      %p381 = pnand %p379, %p380
      %p382 = pneg %p381
      // Predicated region
      $region9: #{tpu_custom_call.1} parent=5 // pred_check
        _
      $region10: #{tpu_custom_call.1} parent=5 // pred_check_branch
        %384 = sbr.rel (%p381) target = $region12
      $region11: #{tpu_custom_call.1} parent=5 // pred_region
        %s385 = ssub.s32 %s27, 1
        // Predicated region
        $region13: #{tpu_custom_call.1} parent=11 // pred_check
          %p386 = pneg %p65
        $region14: #{tpu_custom_call.1} parent=11 // pred_check_branch
          %388 = sbr.rel (%p386) target = $region16
        $region15: #{tpu_custom_call.1} parent=11 // pred_region
          %p389 = scmp.lt.s32.totalorder %s36, 1
          %s390 = scalar_select %p389, %s36, 1
          %s391 = smul.addr %s390, 8
          %s392 = scalar_lea.vmem %s0, %s391
        $region16: #{tpu_custom_call.1} parent=11 // pred_fallthru
          _
        // Predicated region
        $region17: #{tpu_custom_call.1} parent=11 // pred_check
          %p393 = pneg %p86
        $region18: #{tpu_custom_call.1} parent=11 // pred_check_branch
          %395 = sbr.rel (%p393) target = $region20
        $region19: #{tpu_custom_call.1} parent=11 // pred_region
          _
        $region20: #{tpu_custom_call.1} parent=11 // pred_fallthru
          _
        // Predicated region
        $region21: #{tpu_custom_call.1} parent=11 // pred_check
          %p396 = pneg %p107
        $region22: #{tpu_custom_call.1} parent=11 // pred_check_branch
          %398 = sbr.rel (%p396) target = $region24
        $region23: #{tpu_custom_call.1} parent=11 // pred_region
          _
        $region24: #{tpu_custom_call.1} parent=11 // pred_fallthru
          _
        // Predicated region
        $region25: #{tpu_custom_call.1} parent=11 // pred_check
          %p399 = pneg %p128
        $region26: #{tpu_custom_call.1} parent=11 // pred_check_branch
          %401 = sbr.rel (%p399) target = $region28
        $region27: #{tpu_custom_call.1} parent=11 // pred_region
          _
        $region28: #{tpu_custom_call.1} parent=11 // pred_fallthru
          _
        // Predicated region
        $region29: #{tpu_custom_call.1} parent=11 // pred_check
          %p402 = pneg %p149
        $region30: #{tpu_custom_call.1} parent=11 // pred_check_branch
          %404 = sbr.rel (%p402) target = $region32
        $region31: #{tpu_custom_call.1} parent=11 // pred_region
          _
        $region32: #{tpu_custom_call.1} parent=11 // pred_fallthru
          _
        // Predicated region
        $region33: #{tpu_custom_call.1} parent=11 // pred_check
          %p405 = pneg %p170
        $region34: #{tpu_custom_call.1} parent=11 // pred_check_branch
          %407 = sbr.rel (%p405) target = $region36
        $region35: #{tpu_custom_call.1} parent=11 // pred_region
          _
        $region36: #{tpu_custom_call.1} parent=11 // pred_fallthru
          _
        // Predicated region
        $region37: #{tpu_custom_call.1} parent=11 // pred_check
          %p408 = pneg %p191
        $region38: #{tpu_custom_call.1} parent=11 // pred_check_branch
          %410 = sbr.rel (%p408) target = $region40
        $region39: #{tpu_custom_call.1} parent=11 // pred_region
          _
        $region40: #{tpu_custom_call.1} parent=11 // pred_fallthru
          _
        // Predicated region
        $region41: #{tpu_custom_call.1} parent=11 // pred_check
          %p411 = pneg %p212
        $region42: #{tpu_custom_call.1} parent=11 // pred_check_branch
          %413 = sbr.rel (%p411) target = $region44
        $region43: #{tpu_custom_call.1} parent=11 // pred_region
          _
        $region44: #{tpu_custom_call.1} parent=11 // pred_fallthru
          _
        // Predicated region
        $region45: #{tpu_custom_call.1} parent=11 // pred_check
          %p414 = pneg %p233
        $region46: #{tpu_custom_call.1} parent=11 // pred_check_branch
          %416 = sbr.rel (%p414) target = $region48
        $region47: #{tpu_custom_call.1} parent=11 // pred_region
          _
        $region48: #{tpu_custom_call.1} parent=11 // pred_fallthru
          _
        // Predicated region
        $region49: #{tpu_custom_call.1} parent=11 // pred_check
          %p417 = pneg %p254
        $region50: #{tpu_custom_call.1} parent=11 // pred_check_branch
          %419 = sbr.rel (%p417) target = $region52
        $region51: #{tpu_custom_call.1} parent=11 // pred_region
          _
        $region52: #{tpu_custom_call.1} parent=11 // pred_fallthru
          _
        // Predicated region
        $region53: #{tpu_custom_call.1} parent=11 // pred_check
          %p420 = pneg %p275
        $region54: #{tpu_custom_call.1} parent=11 // pred_check_branch
          %422 = sbr.rel (%p420) target = $region56
        $region55: #{tpu_custom_call.1} parent=11 // pred_region
          _
        $region56: #{tpu_custom_call.1} parent=11 // pred_fallthru
          _
        // Predicated region
        $region57: #{tpu_custom_call.1} parent=11 // pred_check
          %p423 = pneg %p296
        $region58: #{tpu_custom_call.1} parent=11 // pred_check_branch
          %425 = sbr.rel (%p423) target = $region60
        $region59: #{tpu_custom_call.1} parent=11 // pred_region
          _
        $region60: #{tpu_custom_call.1} parent=11 // pred_fallthru
          _
        // Predicated region
        $region61: #{tpu_custom_call.1} parent=11 // pred_check
          %p426 = pneg %p317
        $region62: #{tpu_custom_call.1} parent=11 // pred_check_branch
          %428 = sbr.rel (%p426) target = $region64
        $region63: #{tpu_custom_call.1} parent=11 // pred_region
          _
        $region64: #{tpu_custom_call.1} parent=11 // pred_fallthru
          _
      $region12: #{tpu_custom_call.1} parent=5 // pred_fallthru
        _
      %p429 = scmp.lt.s32.totalorder %s27, 4
      // Predicated region
      $region65: #{tpu_custom_call.1} parent=5 // pred_check
        %p430 = pneg %p429
      $region66: #{tpu_custom_call.1} parent=5 // pred_check_branch
        %432 = sbr.rel (%p430) target = $region68
      $region67: #{tpu_custom_call.1} parent=5 // pred_region
        _
      $region68: #{tpu_custom_call.1} parent=5 // pred_fallthru
        _
      %p433 = scmp.le.s32.totalorder 1, %s27
      %p434 = scmp.lt.s32.totalorder %s27, 5
      %p435 = pnand %p433, %p434
      %p436 = pneg %p435
      // Predicated region
      $region69: #{tpu_custom_call.1} parent=5 // pred_check
        _
      $region70: #{tpu_custom_call.1} parent=5 // pred_check_branch
        %438 = sbr.rel (%p435) target = $region72
      $region71: #{tpu_custom_call.1} parent=5 // pred_region
        %s439 = ssub.s32 %s27, 1
        %p440 = scmp.lt.s32.totalorder %s36, 1
        %s441 = scalar_select %p440, %s36, 1
        %s442 = smul.addr %s441, 8
        %s443 = scalar_lea.vmem %s0, %s442
        %p444 = pneg %p65
        %p445 = pneg %p62
        %p446 = pneg %p86
        %p447 = pneg %p83
        %p448 = pneg %p107
        %p449 = pneg %p104
        %p450 = pneg %p128
        %p451 = pneg %p125
        %p452 = pneg %p149
        %p453 = pneg %p146
        %p454 = pneg %p170
        %p455 = pneg %p167
        %p456 = pneg %p191
        %p457 = pneg %p188
        %p458 = pneg %p212
        %p459 = pneg %p209
        %p460 = pneg %p233
        %p461 = pneg %p230
        %p462 = pneg %p254
        %p463 = pneg %p251
        %p464 = pneg %p275
        %p465 = pneg %p272
        %p466 = pneg %p296
        %p467 = pneg %p293
        %p468 = pneg %p317
        %p469 = pneg %p314
        %p470 = pneg %p343
        %p471 = pneg %p340
        %s472 = sand.u32 %s330, 1
        %s473 = scalar_lea.sflag [#allocation4], %s472
        %s474 = sand.u32 %s330, 1
        %s475 = smul.addr %s474, 8
        %s476 = scalar_lea.vmem [#allocation3], %s475
        %p477 = pneg %p371
        %p478 = pneg %p368
        %s479 = sand.u32 %s358, 1
        %s480 = scalar_lea.sflag [#allocation6], %s479
        %s481 = sand.u32 %s358, 1
        %s482 = smul.addr %s481, 16
        %s483 = scalar_lea.vmem [#allocation5], %s482
        %p484 = scmp.lt.s32.totalorder %s36, 1
        %s485 = scalar_select %p484, %s36, 1
        %s486 = smul.addr %s485, 8
        %s487 = scalar_lea.vmem %s0, %s486
        %p489 = scmp.eq.s32.totalorder %s37, 0
        // Predicated region
        $region73: #{tpu_custom_call.1} parent=71 // pred_check
          %p490 = pneg %p489
        $region74: #{tpu_custom_call.1} parent=71 // pred_check_branch
          %492 = sbr.rel (%p490) target = $region76
        $region75: #{tpu_custom_call.1} parent=71 // pred_region
          %v493 = vld [vmem:[%s487] sm:$0xff]
          %vm494 = vcmask 261120
          %495 = vst.msk [vmem:[%s476] sm:$0xff] %vm494, %v493
        $region76: #{tpu_custom_call.1} parent=71 // pred_fallthru
          _
        %v496 = vld [vmem:[%s476] sm:$0xff]
        %v497 = vld [vmem:[%s1] sm:$0x1]
        %v498 = vld [vmem:[%s2] sm:$0x1]
        %vm499 = vcmask 261120
        %v500 = vsel %vm499, %v496, 0.0
        %501 = vadd.xlane.f32.xlu0 %v500
        %v502 = vpop.xlane.xlu0 %501
        %v503 = vrcp.pop 32.0
        %v504 = vmul.f32 %v502, %v503
        %v505 = vsub.f32 %v496, %v504
        %v506 = vmul.f32 %v505, %v505
        %v507 = vsel %vm499, %v506, 0.0
        %508 = vadd.xlane.f32.xlu0 %v507
        %v509 = vpop.xlane.xlu0 %508
        %v510 = vmul.f32 %v509, %v503
        %v511 = vadd.f32 %v510, 1e-05
        %v512 = vrsqrt.pop %v511
        %v513 = vmul.f32 %v505, %v512
        %v515 = vlaneseq
        %v516 = vshrl.u32 %v515, 7
        %v517 = vsub.s32 0, %v516
        %v518 = vrot.slane %v497, %v517
        %v520 = vmul.f32 %v513, %v518
        %v522 = vlaneseq
        %v523 = vshrl.u32 %v522, 7
        %v524 = vsub.s32 0, %v523
        %v525 = vrot.slane %v498, %v524
        %v527 = vadd.f32 %v520, %v525
        %v528 = vpack.c.bf16 %v527, %v527
        %v529 = vld [vmem:[%s5] sm:$0xf]
        %v530 = vld [vmem:[%s5 + $0x4] sm:$0xf]
        %v531 = vld [vmem:[%s5 + $0x8] sm:$0xf]
        %v532 = vld [vmem:[%s5 + $0xc] sm:$0xf]
        %v533 = vld [vmem:[%s6] sm:$0x1]
        %v535 = vlaneseq
        %v536 = vshrl.u32 %v535, 7
        %v537 = vsub.s32 0, %v536
        %v538 = vrot.slane %v533, %v537
        %v544 = vunpack.c.l.b16 %v529
        %v545 = vunpack.c.l.b16 %v530
        %v546 = vunpack.c.l.b16 %v531
        %v547 = vunpack.c.l.b16 %v532
        %v548 = vpack.c.b16 %v545, %v544
        %v549 = vpack.c.b16 %v547, %v546
        %v553 = vsel %vm499, %v528, 0
        %555 = vmatprep.subr.bf16.mxu0 0
        %556 = vmatpush1.bf16.msra.mxu0 %v548
        %557 = vmatprep.subr.bf16.mxu0 0
        %558 = vmatpush1.bf16.msra.mxu0 %v549
        %559 = vmatprep.subr.bf16.mxu0 0
        %560 = vmatpush1.bf16.msra.mxu0 0
        %561 = vmatprep.subr.bf16.mxu0 0
        %562 = vmatpush1.bf16.msra.mxu0 0
        %563 = vmatprep.subr.bf16.mxu0 0
        %564 = vmatpush1.bf16.msra.mxu0 0
        %565 = vmatprep.subr.bf16.mxu0 0
        %566 = vmatpush1.bf16.msra.mxu0 0
        %567 = vmatprep.subr.bf16.mxu0 0
        %568 = vmatpush1.bf16.msra.mxu0 0
        %569 = vmatprep.subr.bf16.mxu0 0
        %570 = vmatpush1.bf16.msra.mxu0 0
        %571 = vmatprep.subr.bf16.mxu0 0
        %572 = vmatpush1.bf16.msra.mxu0 0
        %573 = vmatprep.subr.bf16.mxu0 0
        %574 = vmatpush1.bf16.msra.mxu0 0
        %575 = vmatprep.subr.bf16.mxu0 0
        %576 = vmatpush1.bf16.msra.mxu0 0
        %577 = vmatprep.subr.bf16.mxu0 0
        %578 = vmatpush1.bf16.msra.mxu0 0
        %579 = vmatprep.subr.bf16.mxu0 0
        %580 = vmatpush1.bf16.msra.mxu0 0
        %581 = vmatprep.subr.bf16.mxu0 0
        %582 = vmatpush1.bf16.msra.mxu0 0
        %583 = vmatprep.subr.bf16.mxu0 0
        %584 = vmatpush1.bf16.msra.mxu0 0
        %585 = vmatprep.subr.bf16.mxu0 0
        %586 = vmatpush1.bf16.msra.mxu0 0
        %587 = vmatprep.mubr.bf16.mxu0 0
        %588 = vmatmul.mubr.bf16.gmra.mrb[0].mxu0 %v553
        %v589 = vpop.f32.mrb[0].mxu0
        %v590 = vadd.f32 %v538, %v589
        %v591 = vpop.f32.mrb[0].mxu0
        %v592 = vpop.f32.mrb[0].mxu0
        %v593 = vpop.f32.mrb[0].mxu0
        %594 = vdwg.mxu0
        %v595 = vpack.c.bf16 %v590, %v590
        %597 = vrot.lane.b32.xlu0 %v595, 120
        %v598 = vpop.permute.xlu0 %597
        %599 = vrot.lane.b32.xlu0 %v595, 112
        %v600 = vpop.permute.xlu0 %599
        %601 = vrot.lane.b32.xlu0 %v595, 104
        %v602 = vpop.permute.xlu0 %601
        %603 = vrot.lane.b32.xlu0 %v595, 96
        %v604 = vpop.permute.xlu0 %603
        %vm605 = vcmask 64512
        %v607 = vsel %vm605, %v595, 0
        %v610 = vsel %vm605, %v604, 0
        %612 = vmatprep.subr.bf16.mxu0 0
        %613 = vmatpush1.bf16.xpose.msra.mxu0 %v610
        %614 = vmatprep.subr.bf16.mxu0 0
        %615 = vmatpush1.bf16.xpose.msra.mxu0 0
        %616 = vmatprep.subr.bf16.mxu0 0
        %617 = vmatpush1.bf16.xpose.msra.mxu0 0
        %618 = vmatprep.subr.bf16.mxu0 0
        %619 = vmatpush1.bf16.xpose.msra.mxu0 0
        %620 = vmatprep.subr.bf16.mxu0 0
        %621 = vmatpush1.bf16.xpose.msra.mxu0 0
        %622 = vmatprep.subr.bf16.mxu0 0
        %623 = vmatpush1.bf16.xpose.msra.mxu0 0
        %624 = vmatprep.subr.bf16.mxu0 0
        %625 = vmatpush1.bf16.xpose.msra.mxu0 0
        %626 = vmatprep.subr.bf16.mxu0 0
        %627 = vmatpush1.bf16.xpose.msra.mxu0 0
        %628 = vmatprep.subr.bf16.mxu0 0
        %629 = vmatpush1.bf16.xpose.msra.mxu0 0
        %630 = vmatprep.subr.bf16.mxu0 0
        %631 = vmatpush1.bf16.xpose.msra.mxu0 0
        %632 = vmatprep.subr.bf16.mxu0 0
        %633 = vmatpush1.bf16.xpose.msra.mxu0 0
        %634 = vmatprep.subr.bf16.mxu0 0
        %635 = vmatpush1.bf16.xpose.msra.mxu0 0
        %636 = vmatprep.subr.bf16.mxu0 0
        %637 = vmatpush1.bf16.xpose.msra.mxu0 0
        %638 = vmatprep.subr.bf16.mxu0 0
        %639 = vmatpush1.bf16.xpose.msra.mxu0 0
        %640 = vmatprep.subr.bf16.mxu0 0
        %641 = vmatpush1.bf16.xpose.msra.mxu0 0
        %642 = vmatprep.subr.bf16.mxu0 0
        %643 = vmatpush1.bf16.xpose.msra.mxu0 0
        %644 = vmatprep.mubr.bf16.mxu0 0
        %645 = vmatmul.mubr.bf16.gmra.mrb[0].mxu0 %v607
        %v646 = vpop.f32.mrb[0].mxu0
        %v647 = vadd.f32 0.0, %v646
        %v648 = vpop.f32.mrb[0].mxu0
        %v649 = vpop.f32.mrb[0].mxu0
        %v650 = vpop.f32.mrb[0].mxu0
        %651 = vdwg.mxu0
        %652 = vrot.lane.b32.xlu0 %v598, 96
        %v653 = vpop.permute.xlu0 %652
        %v655 = vsel %vm605, %v598, 0
        %v658 = vsel %vm605, %v653, 0
        %660 = vmatprep.subr.bf16.mxu0 0
        %661 = vmatpush1.bf16.xpose.msra.mxu0 %v658
        %662 = vmatprep.subr.bf16.mxu0 0
        %663 = vmatpush1.bf16.xpose.msra.mxu0 0
        %664 = vmatprep.subr.bf16.mxu0 0
        %665 = vmatpush1.bf16.xpose.msra.mxu0 0
        %666 = vmatprep.subr.bf16.mxu0 0
        %667 = vmatpush1.bf16.xpose.msra.mxu0 0
        %668 = vmatprep.subr.bf16.mxu0 0
        %669 = vmatpush1.bf16.xpose.msra.mxu0 0
        %670 = vmatprep.subr.bf16.mxu0 0
        %671 = vmatpush1.bf16.xpose.msra.mxu0 0
        %672 = vmatprep.subr.bf16.mxu0 0
        %673 = vmatpush1.bf16.xpose.msra.mxu0 0
        %674 = vmatprep.subr.bf16.mxu0 0
        %675 = vmatpush1.bf16.xpose.msra.mxu0 0
        %676 = vmatprep.subr.bf16.mxu0 0
        %677 = vmatpush1.bf16.xpose.msra.mxu0 0
        %678 = vmatprep.subr.bf16.mxu0 0
        %679 = vmatpush1.bf16.xpose.msra.mxu0 0
        %680 = vmatprep.subr.bf16.mxu0 0
        %681 = vmatpush1.bf16.xpose.msra.mxu0 0
        %682 = vmatprep.subr.bf16.mxu0 0
        %683 = vmatpush1.bf16.xpose.msra.mxu0 0
        %684 = vmatprep.subr.bf16.mxu0 0
        %685 = vmatpush1.bf16.xpose.msra.mxu0 0
        %686 = vmatprep.subr.bf16.mxu0 0
        %687 = vmatpush1.bf16.xpose.msra.mxu0 0
        %688 = vmatprep.subr.bf16.mxu0 0
        %689 = vmatpush1.bf16.xpose.msra.mxu0 0
        %690 = vmatprep.subr.bf16.mxu0 0
        %691 = vmatpush1.bf16.xpose.msra.mxu0 0
        %692 = vmatprep.mubr.bf16.mxu0 0
        %693 = vmatmul.mubr.bf16.gmra.mrb[0].mxu0 %v655
        %v694 = vpop.f32.mrb[0].mxu0
        %v695 = vadd.f32 0.0, %v694
        %v696 = vpop.f32.mrb[0].mxu0
        %v697 = vpop.f32.mrb[0].mxu0
        %v698 = vpop.f32.mrb[0].mxu0
        %699 = vdwg.mxu0
        %700 = vrot.lane.b32.xlu0 %v600, 96
        %v701 = vpop.permute.xlu0 %700
        %v703 = vsel %vm605, %v600, 0
        %v706 = vsel %vm605, %v701, 0
        %708 = vmatprep.subr.bf16.mxu0 0
        %709 = vmatpush1.bf16.xpose.msra.mxu0 %v706
        %710 = vmatprep.subr.bf16.mxu0 0
        %711 = vmatpush1.bf16.xpose.msra.mxu0 0
        %712 = vmatprep.subr.bf16.mxu0 0
        %713 = vmatpush1.bf16.xpose.msra.mxu0 0
        %714 = vmatprep.subr.bf16.mxu0 0
        %715 = vmatpush1.bf16.xpose.msra.mxu0 0
        %716 = vmatprep.subr.bf16.mxu0 0
        %717 = vmatpush1.bf16.xpose.msra.mxu0 0
        %718 = vmatprep.subr.bf16.mxu0 0
        %719 = vmatpush1.bf16.xpose.msra.mxu0 0
        %720 = vmatprep.subr.bf16.mxu0 0
        %721 = vmatpush1.bf16.xpose.msra.mxu0 0
        %722 = vmatprep.subr.bf16.mxu0 0
        %723 = vmatpush1.bf16.xpose.msra.mxu0 0
        %724 = vmatprep.subr.bf16.mxu0 0
        %725 = vmatpush1.bf16.xpose.msra.mxu0 0
        %726 = vmatprep.subr.bf16.mxu0 0
        %727 = vmatpush1.bf16.xpose.msra.mxu0 0
        %728 = vmatprep.subr.bf16.mxu0 0
        %729 = vmatpush1.bf16.xpose.msra.mxu0 0
        %730 = vmatprep.subr.bf16.mxu0 0
        %731 = vmatpush1.bf16.xpose.msra.mxu0 0
        %732 = vmatprep.subr.bf16.mxu0 0
        %733 = vmatpush1.bf16.xpose.msra.mxu0 0
        %734 = vmatprep.subr.bf16.mxu0 0
        %735 = vmatpush1.bf16.xpose.msra.mxu0 0
        %736 = vmatprep.subr.bf16.mxu0 0
        %737 = vmatpush1.bf16.xpose.msra.mxu0 0
        %738 = vmatprep.subr.bf16.mxu0 0
        %739 = vmatpush1.bf16.xpose.msra.mxu0 0
        %740 = vmatprep.mubr.bf16.mxu0 0
        %741 = vmatmul.mubr.bf16.gmra.mrb[0].mxu0 %v703
        %v742 = vpop.f32.mrb[0].mxu0
        %v743 = vadd.f32 0.0, %v742
        %v744 = vpop.f32.mrb[0].mxu0
        %v745 = vpop.f32.mrb[0].mxu0
        %v746 = vpop.f32.mrb[0].mxu0
        %747 = vdwg.mxu0
        %748 = vrot.lane.b32.xlu0 %v602, 96
        %v749 = vpop.permute.xlu0 %748
        %v751 = vsel %vm605, %v602, 0
        %v754 = vsel %vm605, %v749, 0
        %756 = vmatprep.subr.bf16.mxu0 0
        %757 = vmatpush1.bf16.xpose.msra.mxu0 %v754
        %758 = vmatprep.subr.bf16.mxu0 0
        %759 = vmatpush1.bf16.xpose.msra.mxu0 0
        %760 = vmatprep.subr.bf16.mxu0 0
        %761 = vmatpush1.bf16.xpose.msra.mxu0 0
        %762 = vmatprep.subr.bf16.mxu0 0
        %763 = vmatpush1.bf16.xpose.msra.mxu0 0
        %764 = vmatprep.subr.bf16.mxu0 0
        %765 = vmatpush1.bf16.xpose.msra.mxu0 0
        %766 = vmatprep.subr.bf16.mxu0 0
        %767 = vmatpush1.bf16.xpose.msra.mxu0 0
        %768 = vmatprep.subr.bf16.mxu0 0
        %769 = vmatpush1.bf16.xpose.msra.mxu0 0
        %770 = vmatprep.subr.bf16.mxu0 0
        %771 = vmatpush1.bf16.xpose.msra.mxu0 0
        %772 = vmatprep.subr.bf16.mxu0 0
        %773 = vmatpush1.bf16.xpose.msra.mxu0 0
        %774 = vmatprep.subr.bf16.mxu0 0
        %775 = vmatpush1.bf16.xpose.msra.mxu0 0
        %776 = vmatprep.subr.bf16.mxu0 0
        %777 = vmatpush1.bf16.xpose.msra.mxu0 0
        %778 = vmatprep.subr.bf16.mxu0 0
        %779 = vmatpush1.bf16.xpose.msra.mxu0 0
        %780 = vmatprep.subr.bf16.mxu0 0
        %781 = vmatpush1.bf16.xpose.msra.mxu0 0
        %782 = vmatprep.subr.bf16.mxu0 0
        %783 = vmatpush1.bf16.xpose.msra.mxu0 0
        %784 = vmatprep.subr.bf16.mxu0 0
        %785 = vmatpush1.bf16.xpose.msra.mxu0 0
        %786 = vmatprep.subr.bf16.mxu0 0
        %787 = vmatpush1.bf16.xpose.msra.mxu0 0
        %788 = vmatprep.mubr.bf16.mxu0 0
        %789 = vmatmul.mubr.bf16.gmra.mrb[0].mxu0 %v751
        %v790 = vpop.f32.mrb[0].mxu0
        %v791 = vadd.f32 0.0, %v790
        %v792 = vpop.f32.mrb[0].mxu0
        %v793 = vpop.f32.mrb[0].mxu0
        %v794 = vpop.f32.mrb[0].mxu0
        %795 = vdwg.mxu0
        %v796 = vsel %vm605, %v647, -inf
        %797 = vmax.xlane.f32.xlu0 %v796
        %v798 = vpop.xlane.xlu0 %797
        %v799 = vsel %vm605, %v695, -inf
        %800 = vmax.xlane.f32.xlu0 %v799
        %v801 = vpop.xlane.xlu0 %800
        %v802 = vsel %vm605, %v743, -inf
        %803 = vmax.xlane.f32.xlu0 %v802
        %v804 = vpop.xlane.xlu0 %803
        %v805 = vsel %vm605, %v791, -inf
        %806 = vmax.xlane.f32.xlu0 %v805
        %v807 = vpop.xlane.xlu0 %806
        %v808 = vsub.f32 %v647, %v798
        %v809 = vsub.f32 %v695, %v801
        %v810 = vsub.f32 %v743, %v804
        %v811 = vsub.f32 %v791, %v807
        %v812 = vmul.f32 %v808, 1.442695
        %v813 = vpow.pop %v812
        %v814 = vmul.f32 %v809, 1.442695
        %v815 = vpow.pop %v814
        %v816 = vmul.f32 %v810, 1.442695
        %v817 = vpow.pop %v816
        %v818 = vmul.f32 %v811, 1.442695
        %v819 = vpow.pop %v818
        %v820 = vsel %vm605, %v813, 0.0
        %821 = vadd.xlane.f32.xlu0 %v820
        %v822 = vpop.xlane.xlu0 %821
        %v823 = vsel %vm605, %v815, 0.0
        %824 = vadd.xlane.f32.xlu0 %v823
        %v825 = vpop.xlane.xlu0 %824
        %v826 = vsel %vm605, %v817, 0.0
        %827 = vadd.xlane.f32.xlu0 %v826
        %v828 = vpop.xlane.xlu0 %827
        %v829 = vsel %vm605, %v819, 0.0
        %830 = vadd.xlane.f32.xlu0 %v829
        %v831 = vpop.xlane.xlu0 %830
        %v832 = vrcp.pop %v822
        %v833 = vmul.f32 %v813, %v832
        %v834 = vrcp.pop %v825
        %v835 = vmul.f32 %v815, %v834
        %v836 = vrcp.pop %v828
        %v837 = vmul.f32 %v817, %v836
        %v838 = vrcp.pop %v831
        %v839 = vmul.f32 %v819, %v838
        %v840 = vpack.c.bf16 %v833, %v833
        %v841 = vpack.c.bf16 %v835, %v835
        %v842 = vpack.c.bf16 %v837, %v837
        %v843 = vpack.c.bf16 %v839, %v839
        %vm844 = vcmask 60416
        %845 = vst.msk [vmem:[%s483] sm:$0xf] %vm844, %v840
        %846 = vst.msk [vmem:[%s483 + $0x4] sm:$0xf] %vm844, %v841
        %847 = vst.msk [vmem:[%s483 + $0x8] sm:$0xf] %vm844, %v842
        %848 = vst.msk [vmem:[%s483 + $0xc] sm:$0xf] %vm844, %v843
        %849 = vrot.lane.b32.xlu0 %v595, 64
        %v850 = vpop.permute.xlu0 %849
        %v852 = vsel %vm605, %v840, 0
        %vm854 = vcmask 1043456
        %v856 = vsel %vm854, %v850, 0
        %858 = vmatprep.subr.bf16.mxu0 0
        %859 = vmatpush1.bf16.msra.mxu0 %v856
        %860 = vmatprep.subr.bf16.mxu0 0
        %861 = vmatpush1.bf16.msra.mxu0 0
        %862 = vmatprep.subr.bf16.mxu0 0
        %863 = vmatpush1.bf16.msra.mxu0 0
        %864 = vmatprep.subr.bf16.mxu0 0
        %865 = vmatpush1.bf16.msra.mxu0 0
        %866 = vmatprep.subr.bf16.mxu0 0
        %867 = vmatpush1.bf16.msra.mxu0 0
        %868 = vmatprep.subr.bf16.mxu0 0
        %869 = vmatpush1.bf16.msra.mxu0 0
        %870 = vmatprep.subr.bf16.mxu0 0
        %871 = vmatpush1.bf16.msra.mxu0 0
        %872 = vmatprep.subr.bf16.mxu0 0
        %873 = vmatpush1.bf16.msra.mxu0 0
        %874 = vmatprep.subr.bf16.mxu0 0
        %875 = vmatpush1.bf16.msra.mxu0 0
        %876 = vmatprep.subr.bf16.mxu0 0
        %877 = vmatpush1.bf16.msra.mxu0 0
        %878 = vmatprep.subr.bf16.mxu0 0
        %879 = vmatpush1.bf16.msra.mxu0 0
        %880 = vmatprep.subr.bf16.mxu0 0
        %881 = vmatpush1.bf16.msra.mxu0 0
        %882 = vmatprep.subr.bf16.mxu0 0
        %883 = vmatpush1.bf16.msra.mxu0 0
        %884 = vmatprep.subr.bf16.mxu0 0
        %885 = vmatpush1.bf16.msra.mxu0 0
        %886 = vmatprep.subr.bf16.mxu0 0
        %887 = vmatpush1.bf16.msra.mxu0 0
        %888 = vmatprep.subr.bf16.mxu0 0
        %889 = vmatpush1.bf16.msra.mxu0 0
        %890 = vmatprep.mubr.bf16.mxu0 0
        %891 = vmatmul.mubr.bf16.gmra.mrb[0].mxu0 %v852
        %v892 = vpop.f32.mrb[0].mxu0
        %v893 = vadd.f32 0.0, %v892
        %v894 = vpop.f32.mrb[0].mxu0
        %v895 = vpop.f32.mrb[0].mxu0
        %v896 = vpop.f32.mrb[0].mxu0
        %897 = vdwg.mxu0
        %898 = vrot.lane.b32.xlu0 %v598, 64
        %v899 = vpop.permute.xlu0 %898
        %v901 = vsel %vm605, %v841, 0
        %v904 = vsel %vm854, %v899, 0
        %906 = vmatprep.subr.bf16.mxu0 0
        %907 = vmatpush1.bf16.msra.mxu0 %v904
        %908 = vmatprep.subr.bf16.mxu0 0
        %909 = vmatpush1.bf16.msra.mxu0 0
        %910 = vmatprep.subr.bf16.mxu0 0
        %911 = vmatpush1.bf16.msra.mxu0 0
        %912 = vmatprep.subr.bf16.mxu0 0
        %913 = vmatpush1.bf16.msra.mxu0 0
        %914 = vmatprep.subr.bf16.mxu0 0
        %915 = vmatpush1.bf16.msra.mxu0 0
        %916 = vmatprep.subr.bf16.mxu0 0
        %917 = vmatpush1.bf16.msra.mxu0 0
        %918 = vmatprep.subr.bf16.mxu0 0
        %919 = vmatpush1.bf16.msra.mxu0 0
        %920 = vmatprep.subr.bf16.mxu0 0
        %921 = vmatpush1.bf16.msra.mxu0 0
        %922 = vmatprep.subr.bf16.mxu0 0
        %923 = vmatpush1.bf16.msra.mxu0 0
        %924 = vmatprep.subr.bf16.mxu0 0
        %925 = vmatpush1.bf16.msra.mxu0 0
        %926 = vmatprep.subr.bf16.mxu0 0
        %927 = vmatpush1.bf16.msra.mxu0 0
        %928 = vmatprep.subr.bf16.mxu0 0
        %929 = vmatpush1.bf16.msra.mxu0 0
        %930 = vmatprep.subr.bf16.mxu0 0
        %931 = vmatpush1.bf16.msra.mxu0 0
        %932 = vmatprep.subr.bf16.mxu0 0
        %933 = vmatpush1.bf16.msra.mxu0 0
        %934 = vmatprep.subr.bf16.mxu0 0
        %935 = vmatpush1.bf16.msra.mxu0 0
        %936 = vmatprep.subr.bf16.mxu0 0
        %937 = vmatpush1.bf16.msra.mxu0 0
        %938 = vmatprep.mubr.bf16.mxu0 0
        %939 = vmatmul.mubr.bf16.gmra.mrb[0].mxu0 %v901
        %v940 = vpop.f32.mrb[0].mxu0
        %v941 = vadd.f32 0.0, %v940
        %v942 = vpop.f32.mrb[0].mxu0
        %v943 = vpop.f32.mrb[0].mxu0
        %v944 = vpop.f32.mrb[0].mxu0
        %945 = vdwg.mxu0
        %946 = vrot.lane.b32.xlu0 %v600, 64
        %v947 = vpop.permute.xlu0 %946
        %v949 = vsel %vm605, %v842, 0
        %v952 = vsel %vm854, %v947, 0
        %954 = vmatprep.subr.bf16.mxu0 0
        %955 = vmatpush1.bf16.msra.mxu0 %v952
        %956 = vmatprep.subr.bf16.mxu0 0
        %957 = vmatpush1.bf16.msra.mxu0 0
        %958 = vmatprep.subr.bf16.mxu0 0
        %959 = vmatpush1.bf16.msra.mxu0 0
        %960 = vmatprep.subr.bf16.mxu0 0
        %961 = vmatpush1.bf16.msra.mxu0 0
        %962 = vmatprep.subr.bf16.mxu0 0
        %963 = vmatpush1.bf16.msra.mxu0 0
        %964 = vmatprep.subr.bf16.mxu0 0
        %965 = vmatpush1.bf16.msra.mxu0 0
        %966 = vmatprep.subr.bf16.mxu0 0
        %967 = vmatpush1.bf16.msra.mxu0 0
        %968 = vmatprep.subr.bf16.mxu0 0
        %969 = vmatpush1.bf16.msra.mxu0 0
        %970 = vmatprep.subr.bf16.mxu0 0
        %971 = vmatpush1.bf16.msra.mxu0 0
        %972 = vmatprep.subr.bf16.mxu0 0
        %973 = vmatpush1.bf16.msra.mxu0 0
        %974 = vmatprep.subr.bf16.mxu0 0
        %975 = vmatpush1.bf16.msra.mxu0 0
        %976 = vmatprep.subr.bf16.mxu0 0
        %977 = vmatpush1.bf16.msra.mxu0 0
        %978 = vmatprep.subr.bf16.mxu0 0
        %979 = vmatpush1.bf16.msra.mxu0 0
        %980 = vmatprep.subr.bf16.mxu0 0
        %981 = vmatpush1.bf16.msra.mxu0 0
        %982 = vmatprep.subr.bf16.mxu0 0
        %983 = vmatpush1.bf16.msra.mxu0 0
        %984 = vmatprep.subr.bf16.mxu0 0
        %985 = vmatpush1.bf16.msra.mxu0 0
        %986 = vmatprep.mubr.bf16.mxu0 0
        %987 = vmatmul.mubr.bf16.gmra.mrb[0].mxu0 %v949
        %v988 = vpop.f32.mrb[0].mxu0
        %v989 = vadd.f32 0.0, %v988
        %v990 = vpop.f32.mrb[0].mxu0
        %v991 = vpop.f32.mrb[0].mxu0
        %v992 = vpop.f32.mrb[0].mxu0
        %993 = vdwg.mxu0
        %994 = vrot.lane.b32.xlu0 %v602, 64
        %v995 = vpop.permute.xlu0 %994
        %v997 = vsel %vm605, %v843, 0
        %v1000 = vsel %vm854, %v995, 0
        %1002 = vmatprep.subr.bf16.mxu0 0
        %1003 = vmatpush1.bf16.msra.mxu0 %v1000
        %1004 = vmatprep.subr.bf16.mxu0 0
        %1005 = vmatpush1.bf16.msra.mxu0 0
        %1006 = vmatprep.subr.bf16.mxu0 0
        %1007 = vmatpush1.bf16.msra.mxu0 0
        %1008 = vmatprep.subr.bf16.mxu0 0
        %1009 = vmatpush1.bf16.msra.mxu0 0
        %1010 = vmatprep.subr.bf16.mxu0 0
        %1011 = vmatpush1.bf16.msra.mxu0 0
        %1012 = vmatprep.subr.bf16.mxu0 0
        %1013 = vmatpush1.bf16.msra.mxu0 0
        %1014 = vmatprep.subr.bf16.mxu0 0
        %1015 = vmatpush1.bf16.msra.mxu0 0
        %1016 = vmatprep.subr.bf16.mxu0 0
        %1017 = vmatpush1.bf16.msra.mxu0 0
        %1018 = vmatprep.subr.bf16.mxu0 0
        %1019 = vmatpush1.bf16.msra.mxu0 0
        %1020 = vmatprep.subr.bf16.mxu0 0
        %1021 = vmatpush1.bf16.msra.mxu0 0
        %1022 = vmatprep.subr.bf16.mxu0 0
        %1023 = vmatpush1.bf16.msra.mxu0 0
        %1024 = vmatprep.subr.bf16.mxu0 0
        %1025 = vmatpush1.bf16.msra.mxu0 0
        %1026 = vmatprep.subr.bf16.mxu0 0
        %1027 = vmatpush1.bf16.msra.mxu0 0
        %1028 = vmatprep.subr.bf16.mxu0 0
        %1029 = vmatpush1.bf16.msra.mxu0 0
        %1030 = vmatprep.subr.bf16.mxu0 0
        %1031 = vmatpush1.bf16.msra.mxu0 0
        %1032 = vmatprep.subr.bf16.mxu0 0
        %1033 = vmatpush1.bf16.msra.mxu0 0
        %1034 = vmatprep.mubr.bf16.mxu0 0
        %1035 = vmatmul.mubr.bf16.gmra.mrb[0].mxu0 %v997
        %v1036 = vpop.f32.mrb[0].mxu0
        %v1037 = vadd.f32 0.0, %v1036
        %v1038 = vpop.f32.mrb[0].mxu0
        %v1039 = vpop.f32.mrb[0].mxu0
        %v1040 = vpop.f32.mrb[0].mxu0
        %1041 = vdwg.mxu0
        %v1042 = vpack.c.bf16 %v893, %v893
        %1043 = vst.msk [vmem:[#allocation2] sm:$0xf] %vm844, %v1042
        %v1044 = vpack.c.bf16 %v941, %v941
        %v1046 = vunpack.c.l.b16 %v1044
        %v1047 = vpack.c.b16 %v1046, %v1046
        %1048 = vrot.lane.b32.xlu0 %v1047, 8
        %v1049 = vpop.permute.xlu0 %1048
        %vm1051 = vcmask 126016
        %1052 = vst.msk [vmem:[#allocation2] sm:$0xf] %vm1051, %v1049
        %v1053 = vpack.c.bf16 %v989, %v989
        %v1055 = vunpack.c.l.b16 %v1053
        %v1056 = vpack.c.b16 %v1055, %v1055
        %1057 = vrot.lane.b32.xlu0 %v1056, 16
        %v1058 = vpop.permute.xlu0 %1057
        %vm1060 = vcmask 191616
        %1061 = vst.msk [vmem:[#allocation2] sm:$0xf] %vm1060, %v1058
        %v1062 = vpack.c.bf16 %v1037, %v1037
        %v1064 = vunpack.c.l.b16 %v1062
        %v1065 = vpack.c.b16 %v1064, %v1064
        %1066 = vrot.lane.b32.xlu0 %v1065, 24
        %v1067 = vpop.permute.xlu0 %1066
        %vm1069 = vcmask 257216
        %1070 = vst.msk [vmem:[#allocation2] sm:$0xf] %vm1069, %v1067
        %v1071 = vld [vmem:[#allocation2] sm:$0xf]
        %v1072 = vld [vmem:[%s7] sm:$0xf]
        %v1073 = vld [vmem:[%s7 + $0x4] sm:$0xf]
        %v1074 = vld [vmem:[%s7 + $0x8] sm:$0xf]
        %v1075 = vld [vmem:[%s7 + $0xc] sm:$0xf]
        %v1076 = vld [vmem:[%s8] sm:$0x1]
        %v1078 = vlaneseq
        %v1079 = vshrl.u32 %v1078, 7
        %v1080 = vsub.s32 0, %v1079
        %v1081 = vrot.slane %v1076, %v1080
        %v1087 = vunpack.c.l.b16 %v1072
        %v1088 = vunpack.c.l.b16 %v1073
        %v1089 = vunpack.c.l.b16 %v1074
        %v1090 = vunpack.c.l.b16 %v1075
        %v1091 = vpack.c.b16 %v1088, %v1087
        %v1092 = vpack.c.b16 %v1090, %v1089
        %v1096 = vsel %vm499, %v1071, 0
        %1098 = vmatprep.subr.bf16.mxu0 0
        %1099 = vmatpush1.bf16.msra.mxu0 %v1091
        %1100 = vmatprep.subr.bf16.mxu0 0
        %1101 = vmatpush1.bf16.msra.mxu0 %v1092
        %1102 = vmatprep.subr.bf16.mxu0 0
        %1103 = vmatpush1.bf16.msra.mxu0 0
        %1104 = vmatprep.subr.bf16.mxu0 0
        %1105 = vmatpush1.bf16.msra.mxu0 0
        %1106 = vmatprep.subr.bf16.mxu0 0
        %1107 = vmatpush1.bf16.msra.mxu0 0
        %1108 = vmatprep.subr.bf16.mxu0 0
        %1109 = vmatpush1.bf16.msra.mxu0 0
        %1110 = vmatprep.subr.bf16.mxu0 0
        %1111 = vmatpush1.bf16.msra.mxu0 0
        %1112 = vmatprep.subr.bf16.mxu0 0
        %1113 = vmatpush1.bf16.msra.mxu0 0
        %1114 = vmatprep.subr.bf16.mxu0 0
        %1115 = vmatpush1.bf16.msra.mxu0 0
        %1116 = vmatprep.subr.bf16.mxu0 0
        %1117 = vmatpush1.bf16.msra.mxu0 0
        %1118 = vmatprep.subr.bf16.mxu0 0
        %1119 = vmatpush1.bf16.msra.mxu0 0
        %1120 = vmatprep.subr.bf16.mxu0 0
        %1121 = vmatpush1.bf16.msra.mxu0 0
        %1122 = vmatprep.subr.bf16.mxu0 0
        %1123 = vmatpush1.bf16.msra.mxu0 0
        %1124 = vmatprep.subr.bf16.mxu0 0
        %1125 = vmatpush1.bf16.msra.mxu0 0
        %1126 = vmatprep.subr.bf16.mxu0 0
        %1127 = vmatpush1.bf16.msra.mxu0 0
        %1128 = vmatprep.subr.bf16.mxu0 0
        %1129 = vmatpush1.bf16.msra.mxu0 0
        %1130 = vmatprep.mubr.bf16.mxu0 0
        %1131 = vmatmul.mubr.bf16.gmra.mrb[0].mxu0 %v1096
        %v1132 = vpop.f32.mrb[0].mxu0
        %v1133 = vadd.f32 %v1081, %v1132
        %v1134 = vpop.f32.mrb[0].mxu0
        %v1135 = vpop.f32.mrb[0].mxu0
        %v1136 = vpop.f32.mrb[0].mxu0
        %1137 = vdwg.mxu0
        %v1138 = vadd.f32 %v1133, %v1133
        %v1139 = vld [vmem:[%s3] sm:$0x1]
        %v1140 = vld [vmem:[%s4] sm:$0x1]
        %v1141 = vsel %vm499, %v1138, 0.0
        %1142 = vadd.xlane.f32.xlu0 %v1141
        %v1143 = vpop.xlane.xlu0 %1142
        %v1144 = vmul.f32 %v1143, %v503
        %v1145 = vsub.f32 %v1138, %v1144
        %v1146 = vmul.f32 %v1145, %v1145
        %v1147 = vsel %vm499, %v1146, 0.0
        %1148 = vadd.xlane.f32.xlu0 %v1147
        %v1149 = vpop.xlane.xlu0 %1148
        %v1150 = vmul.f32 %v1149, %v503
        %v1151 = vadd.f32 %v1150, 1e-05
        %v1152 = vrsqrt.pop %v1151
        %v1153 = vmul.f32 %v1145, %v1152
        %v1155 = vlaneseq
        %v1156 = vshrl.u32 %v1155, 7
        %v1157 = vsub.s32 0, %v1156
        %v1158 = vrot.slane %v1139, %v1157
        %v1160 = vmul.f32 %v1153, %v1158
        %v1162 = vlaneseq
        %v1163 = vshrl.u32 %v1162, 7
        %v1164 = vsub.s32 0, %v1163
        %v1165 = vrot.slane %v1140, %v1164
        %v1167 = vadd.f32 %v1160, %v1165
        %v1168 = vpack.c.bf16 %v1167, %v1167
        %v1169 = vld [vmem:[%s9] sm:$0xf]
        %v1170 = vld [vmem:[%s9 + $0x4] sm:$0xf]
        %v1171 = vld [vmem:[%s9 + $0x8] sm:$0xf]
        %v1172 = vld [vmem:[%s9 + $0xc] sm:$0xf]
        %v1173 = vld [vmem:[%s10] sm:$0x1]
        %v1175 = vlaneseq
        %v1176 = vshrl.u32 %v1175, 7
        %v1177 = vsub.s32 0, %v1176
        %v1178 = vrot.slane %v1173, %v1177
        %v1184 = vunpack.c.l.b16 %v1169
        %v1185 = vunpack.c.l.b16 %v1170
        %v1186 = vunpack.c.l.b16 %v1171
        %v1187 = vunpack.c.l.b16 %v1172
        %v1188 = vpack.c.b16 %v1185, %v1184
        %v1189 = vpack.c.b16 %v1187, %v1186
        %v1193 = vsel %vm499, %v1168, 0
        %1195 = vmatprep.subr.bf16.mxu0 0
        %1196 = vmatpush1.bf16.msra.mxu0 %v1188
        %1197 = vmatprep.subr.bf16.mxu0 0
        %1198 = vmatpush1.bf16.msra.mxu0 %v1189
        %1199 = vmatprep.subr.bf16.mxu0 0
        %1200 = vmatpush1.bf16.msra.mxu0 0
        %1201 = vmatprep.subr.bf16.mxu0 0
        %1202 = vmatpush1.bf16.msra.mxu0 0
        %1203 = vmatprep.subr.bf16.mxu0 0
        %1204 = vmatpush1.bf16.msra.mxu0 0
        %1205 = vmatprep.subr.bf16.mxu0 0
        %1206 = vmatpush1.bf16.msra.mxu0 0
        %1207 = vmatprep.subr.bf16.mxu0 0
        %1208 = vmatpush1.bf16.msra.mxu0 0
        %1209 = vmatprep.subr.bf16.mxu0 0
        %1210 = vmatpush1.bf16.msra.mxu0 0
        %1211 = vmatprep.subr.bf16.mxu0 0
        %1212 = vmatpush1.bf16.msra.mxu0 0
        %1213 = vmatprep.subr.bf16.mxu0 0
        %1214 = vmatpush1.bf16.msra.mxu0 0
        %1215 = vmatprep.subr.bf16.mxu0 0
        %1216 = vmatpush1.bf16.msra.mxu0 0
        %1217 = vmatprep.subr.bf16.mxu0 0
        %1218 = vmatpush1.bf16.msra.mxu0 0
        %1219 = vmatprep.subr.bf16.mxu0 0
        %1220 = vmatpush1.bf16.msra.mxu0 0
        %1221 = vmatprep.subr.bf16.mxu0 0
        %1222 = vmatpush1.bf16.msra.mxu0 0
        %1223 = vmatprep.subr.bf16.mxu0 0
        %1224 = vmatpush1.bf16.msra.mxu0 0
        %1225 = vmatprep.subr.bf16.mxu0 0
        %1226 = vmatpush1.bf16.msra.mxu0 0
        %1227 = vmatprep.mubr.bf16.mxu0 0
        %1228 = vmatmul.mubr.bf16.gmra.mrb[0].mxu0 %v1193
        %v1229 = vpop.f32.mrb[0].mxu0
        %v1230 = vadd.f32 %v1178, %v1229
        %v1231 = vpop.f32.mrb[0].mxu0
        %v1232 = vpop.f32.mrb[0].mxu0
        %v1233 = vpop.f32.mrb[0].mxu0
        %1234 = vdwg.mxu0
        %vm1235 = vcmp.ge.f32.partialorder %v1230, 0.0
        %v1236 = vmul.f32 %v1230, 0.01
        %v1237 = vsel %vm1235, %v1230, %v1236
        %v1238 = vpack.c.bf16 %v1237, %v1237
        %v1239 = vld [vmem:[%s11] sm:$0xf]
        %v1240 = vld [vmem:[%s11 + $0x4] sm:$0xf]
        %v1241 = vld [vmem:[%s11 + $0x8] sm:$0xf]
        %v1242 = vld [vmem:[%s11 + $0xc] sm:$0xf]
        %v1243 = vld [vmem:[%s11 + $0x10] sm:$0xf]
        %v1244 = vld [vmem:[%s11 + $0x14] sm:$0xf]
        %v1245 = vld [vmem:[%s11 + $0x18] sm:$0xf]
        %v1246 = vld [vmem:[%s11 + $0x1c] sm:$0xf]
        %v1247 = vld [vmem:[%s11 + $0x20] sm:$0xf]
        %v1248 = vld [vmem:[%s11 + $0x24] sm:$0xf]
        %v1249 = vld [vmem:[%s11 + $0x28] sm:$0xf]
        %v1250 = vld [vmem:[%s11 + $0x2c] sm:$0xf]
        %v1251 = vld [vmem:[%s11 + $0x30] sm:$0xf]
        %v1252 = vld [vmem:[%s11 + $0x34] sm:$0xf]
        %v1253 = vld [vmem:[%s11 + $0x38] sm:$0xf]
        %v1254 = vld [vmem:[%s11 + $0x3c] sm:$0xf]
        %v1255 = vld [vmem:[%s12] sm:$0x1]
        %v1257 = vlaneseq
        %v1258 = vshrl.u32 %v1257, 7
        %v1259 = vsub.s32 0, %v1258
        %v1260 = vrot.slane %v1255, %v1259
        %v1278 = vunpack.c.l.b16 %v1239
        %v1279 = vunpack.c.l.b16 %v1240
        %v1280 = vunpack.c.l.b16 %v1241
        %v1281 = vunpack.c.l.b16 %v1242
        %v1282 = vunpack.c.l.b16 %v1243
        %v1283 = vunpack.c.l.b16 %v1244
        %v1284 = vunpack.c.l.b16 %v1245
        %v1285 = vunpack.c.l.b16 %v1246
        %v1286 = vunpack.c.l.b16 %v1247
        %v1287 = vunpack.c.l.b16 %v1248
        %v1288 = vunpack.c.l.b16 %v1249
        %v1289 = vunpack.c.l.b16 %v1250
        %v1290 = vunpack.c.l.b16 %v1251
        %v1291 = vunpack.c.l.b16 %v1252
        %v1292 = vunpack.c.l.b16 %v1253
        %v1293 = vunpack.c.l.b16 %v1254
        %v1294 = vpack.c.b16 %v1279, %v1278
        %v1295 = vpack.c.b16 %v1281, %v1280
        %v1296 = vpack.c.b16 %v1283, %v1282
        %v1297 = vpack.c.b16 %v1285, %v1284
        %v1298 = vpack.c.b16 %v1287, %v1286
        %v1299 = vpack.c.b16 %v1289, %v1288
        %v1300 = vpack.c.b16 %v1291, %v1290
        %v1301 = vpack.c.b16 %v1293, %v1292
        %1310 = vmatprep.subr.bf16.mxu0 0
        %1311 = vmatpush1.bf16.msra.mxu0 %v1294
        %1312 = vmatprep.subr.bf16.mxu0 0
        %1313 = vmatpush1.bf16.msra.mxu0 %v1295
        %1314 = vmatprep.subr.bf16.mxu0 0
        %1315 = vmatpush1.bf16.msra.mxu0 %v1296
        %1316 = vmatprep.subr.bf16.mxu0 0
        %1317 = vmatpush1.bf16.msra.mxu0 %v1297
        %1318 = vmatprep.subr.bf16.mxu0 0
        %1319 = vmatpush1.bf16.msra.mxu0 %v1298
        %1320 = vmatprep.subr.bf16.mxu0 0
        %1321 = vmatpush1.bf16.msra.mxu0 %v1299
        %1322 = vmatprep.subr.bf16.mxu0 0
        %1323 = vmatpush1.bf16.msra.mxu0 %v1300
        %1324 = vmatprep.subr.bf16.mxu0 0
        %1325 = vmatpush1.bf16.msra.mxu0 %v1301
        %1326 = vmatprep.subr.bf16.mxu0 0
        %1327 = vmatpush1.bf16.msra.mxu0 0
        %1328 = vmatprep.subr.bf16.mxu0 0
        %1329 = vmatpush1.bf16.msra.mxu0 0
        %1330 = vmatprep.subr.bf16.mxu0 0
        %1331 = vmatpush1.bf16.msra.mxu0 0
        %1332 = vmatprep.subr.bf16.mxu0 0
        %1333 = vmatpush1.bf16.msra.mxu0 0
        %1334 = vmatprep.subr.bf16.mxu0 0
        %1335 = vmatpush1.bf16.msra.mxu0 0
        %1336 = vmatprep.subr.bf16.mxu0 0
        %1337 = vmatpush1.bf16.msra.mxu0 0
        %1338 = vmatprep.subr.bf16.mxu0 0
        %1339 = vmatpush1.bf16.msra.mxu0 0
        %1340 = vmatprep.subr.bf16.mxu0 0
        %1341 = vmatpush1.bf16.msra.mxu0 0
        %1342 = vmatprep.mubr.bf16.mxu0 0
        %1343 = vmatmul.mubr.bf16.gmra.mrb[0].mxu0 %v1238
        %v1344 = vpop.f32.mrb[0].mxu0
        %v1345 = vadd.f32 %v1260, %v1344
        %v1346 = vpop.f32.mrb[0].mxu0
        %v1347 = vpop.f32.mrb[0].mxu0
        %v1348 = vpop.f32.mrb[0].mxu0
        %1349 = vdwg.mxu0
        %v1350 = vadd.f32 %v1345, %v1345
        %1351 = vst.msk [vmem:[%s476] sm:$0xff] %vm499, %v1350
        %s1352 = sand.u32 %s330, 1
        %s1353 = scalar_lea.sflag [#allocation4], %s1352
        %s1354 = sand.u32 %s330, 1
        %s1355 = smul.addr %s1354, 8
        %s1356 = scalar_lea.vmem [#allocation3], %s1355
        %s1357 = sand.u32 %s358, 1
        %s1358 = scalar_lea.sflag [#allocation6], %s1357
        %s1359 = sand.u32 %s358, 1
        %s1360 = smul.addr %s1359, 16
        %s1361 = scalar_lea.vmem [#allocation5], %s1360
        // Predicated region
        $region77: #{tpu_custom_call.1} parent=71 // pred_check
          %p1362 = pneg %p340
        $region78: #{tpu_custom_call.1} parent=71 // pred_check_branch
          %1364 = sbr.rel (%p1362) target = $region80
        $region79: #{tpu_custom_call.1} parent=71 // pred_region
          %s1366 = ssub.s32 128, 128
          %1367 = vsyncadd %s1353, %s1366
          %s1368 = smul.addr %s36, 128
          %s1369 = scalar_lea.hbm %s13, %s1368
          %s1371 = sshll.u32 %s1356, 4
          %s1372 = int_to_ptr.vmem [resolvable:$true] %s1371
          %1374 = dma.vmem_to_hbm [thread:$0]  %s1372, 128, %s1369, %s1353
        $region80: #{tpu_custom_call.1} parent=71 // pred_fallthru
          _
        // Predicated region
        $region81: #{tpu_custom_call.1} parent=71 // pred_check
          %p1375 = pneg %p368
        $region82: #{tpu_custom_call.1} parent=71 // pred_check_branch
          %1377 = sbr.rel (%p1375) target = $region84
        $region83: #{tpu_custom_call.1} parent=71 // pred_region
          %s1379 = ssub.s32 256, 256
          %1380 = vsyncadd %s1358, %s1379
          %s1381 = smul.addr %s36, 4
          %s1382 = smul.addr %s37, 8
          %s1383 = sadd.s32 %s1381, %s1382
          %s1384 = smul.addr %s1383, 64
          %s1385 = scalar_lea.hbm %s14, %s1384
          %s1386 = sshll.u32 %s1361, 4
          %s1387 = int_to_ptr.vmem [resolvable:$true] %s1386
          %1392 = dma.vmem_to_hbm [thread:$0]  %s1387, 256, %s1385, %s1358, 64, 64, 4
        $region84: #{tpu_custom_call.1} parent=71 // pred_fallthru
          _
      $region72: #{tpu_custom_call.1} parent=5 // pred_fallthru
        _
      %p1393 = scmp.le.s32.totalorder 2, %s27
      // Predicated region
      $region85: #{tpu_custom_call.1} parent=5 // pred_check
        %p1394 = pneg %p1393
      $region86: #{tpu_custom_call.1} parent=5 // pred_check_branch
        %1396 = sbr.rel (%p1394) target = $region88
      $region87: #{tpu_custom_call.1} parent=5 // pred_region
        %s1397 = ssub.s32 %s27, 2
        // Predicated region
        $region89: #{tpu_custom_call.1} parent=87 // pred_check
          %p1398 = pneg %p346
        $region90: #{tpu_custom_call.1} parent=87 // pred_check_branch
          %1400 = sbr.rel (%p1398) target = $region92
        $region91: #{tpu_custom_call.1} parent=87 // pred_region
          %s1401 = sand.u32 %s331, 1
          %s1402 = scalar_lea.sflag [#allocation4], %s1401
          %s1403 = sand.u32 %s331, 1
          %s1404 = smul.addr %s1403, 8
          %s1405 = scalar_lea.vmem [#allocation3], %s1404
          %1406 = dma.done %s1402, 128
        $region92: #{tpu_custom_call.1} parent=87 // pred_fallthru
          _
        // Predicated region
        $region93: #{tpu_custom_call.1} parent=87 // pred_check
          %p1407 = pneg %p374
        $region94: #{tpu_custom_call.1} parent=87 // pred_check_branch
          %1409 = sbr.rel (%p1407) target = $region96
        $region95: #{tpu_custom_call.1} parent=87 // pred_region
          %s1410 = sand.u32 %s359, 1
          %s1411 = scalar_lea.sflag [#allocation6], %s1410
          %s1412 = sand.u32 %s359, 1
          %s1413 = smul.addr %s1412, 16
          %s1414 = scalar_lea.vmem [#allocation5], %s1413
          %1415 = dma.done %s1411, 256
        $region96: #{tpu_custom_call.1} parent=87 // pred_fallthru
          _
      $region88: #{tpu_custom_call.1} parent=5 // pred_fallthru
        _
    $region6: #{tpu_custom_call.1} parent=1 // loop_footer
      %s31 = sadd.s32 1, %s27
    $region7: #{tpu_custom_call.1} parent=1 // loop_footer_branch
      %26 = sbr.rel target = $region3
    $region8: #{tpu_custom_call.1} parent=1 // loop_exit
      _
    %1416 = vsyncpa [#allocation4], 1
    %s1417 = scalar_lea.sflag [#allocation4], 1
    %1418 = vsyncpa %s1417, 1
    %1419 = vsyncpa [#allocation6], 1
    %s1420 = scalar_lea.sflag [#allocation6], 1
    %1421 = vsyncpa %s1420, 1

// kernel: tpu_custom_call.1
$region0: #{tpu_custom_call.1}
  #allocation0 [shape = 'u32[]', space=smem, size = 0x4, offset = 0x4, fixed_abs, tag = 'smem constant byte address 0x4 - core index']
  #allocation1 [shape = 'u32[144,128]{1,0:T(1,128)}', space=vmem, size = 0x12000, scoped, tag = 'internal scratch']
  #allocation2 [shape = 'bf16[8,32]{1,0:T(8,128)(2,1)}', space=vmem, size = 0x800, scoped, tag = 'scratch operand']
  %s0 = inlined_call_operand.vmem [shape: f32[2,8,32], index: 0, kind: input, shape index: {}]
  %s1 = inlined_call_operand.vmem [shape: f32[1,32], index: 1, kind: input, shape index: {}]
  %s2 = inlined_call_operand.vmem [shape: f32[1,32], index: 2, kind: input, shape index: {}]
  %s3 = inlined_call_operand.vmem [shape: f32[1,32], index: 3, kind: input, shape index: {}]
  %s4 = inlined_call_operand.vmem [shape: f32[1,32], index: 4, kind: input, shape index: {}]
  %s5 = inlined_call_operand.vmem [shape: bf16[32,96], index: 5, kind: input, shape index: {}]
  %s6 = inlined_call_operand.vmem [shape: f32[1,96], index: 6, kind: input, shape index: {}]
  %s7 = inlined_call_operand.vmem [shape: bf16[32,32], index: 7, kind: input, shape index: {}]
  %s8 = inlined_call_operand.vmem [shape: f32[1,32], index: 8, kind: input, shape index: {}]
  %s9 = inlined_call_operand.vmem [shape: bf16[32,128], index: 9, kind: input, shape index: {}]
  %s10 = inlined_call_operand.vmem [shape: f32[1,128], index: 10, kind: input, shape index: {}]
  %s11 = inlined_call_operand.vmem [shape: bf16[128,32], index: 11, kind: input, shape index: {}]
  %s12 = inlined_call_operand.vmem [shape: f32[1,32], index: 12, kind: input, shape index: {}]
  %s13 = inlined_call_operand.hbm [shape: f32[2,8,32], index: 13, kind: output, shape index: {0}]
  %s14 = inlined_call_operand.hbm [shape: bf16[2,2,4,8,8], index: 14, kind: output, shape index: {1}]
  %15 = xla_tuple %s13, %s14
  %s16 = sld [smem:[#allocation0]]
  $region97: #{tpu_custom_call.1} parent=0
    _
  %s18 = ssub.s32 1, %s16
  %s19 = scalar_select 0, %s18, %s16
  $region1: #{tpu_custom_call.1} parent=0
    #allocation3 [shape = 'u8[8192]{0}', space=vmem, size = 0x2000, scoped, tag = 'output window, operand 0']
    #allocation4 [shape = 's32[2]{0}', space=sflag, size = 0x8, scoped, tag = 'scoped memory for tpu_custom_call.1']
    #allocation5 [shape = 'u8[16384]{0}', space=vmem, size = 0x4000, scoped, tag = 'output window, operand 1']
    #allocation6 [shape = 's32[2]{0}', space=sflag, size = 0x8, scoped, tag = 'scoped memory for tpu_custom_call.1']
    %20 = vsyncpa [#allocation4], 0
    %s21 = scalar_lea.sflag [#allocation4], 1
    %22 = vsyncpa %s21, 0
    %23 = vsyncpa [#allocation6], 0
    %s24 = scalar_lea.sflag [#allocation6], 1
    %25 = vsyncpa %s24, 0
    loop: start=0, step=1, limit=6
    $region2: #{tpu_custom_call.1} parent=1 // loop_pre_header
      _
    $region3: #{tpu_custom_call.1} parent=1 // loop_header
      %s27 = sphi 0, %s31
      %p28 = scmp.ge.s32.totalorder %s27, 6
      %s34 = sphi 0, %s46
      %s35 = sphi 0, %s42
      %s36 = sphi 0, %s34
      %s37 = sphi 0, %s35
      %s38 = sphi 0, %s36
      %s39 = sphi 0, %s37
      %s49 = sphi 0, %s51
      %s52 = sphi 0, %s49
      %s53 = sphi 0, %s52
      %s69 = sphi 0, %s53
      %s73 = sphi 0, %s73
      %s75 = sphi 0, %s73
      %s76 = sphi 0, %s75
      %s90 = sphi 0, %s76
      %s94 = sphi 0, %s94
      %s96 = sphi 0, %s94
      %s97 = sphi 0, %s96
      %s111 = sphi 0, %s97
      %s115 = sphi 0, %s115
      %s117 = sphi 0, %s115
      %s118 = sphi 0, %s117
      %s132 = sphi 0, %s118
      %s136 = sphi 0, %s136
      %s138 = sphi 0, %s136
      %s139 = sphi 0, %s138
      %s153 = sphi 0, %s139
      %s157 = sphi 0, %s157
      %s159 = sphi 0, %s157
      %s160 = sphi 0, %s159
      %s174 = sphi 0, %s160
      %s178 = sphi 0, %s178
      %s180 = sphi 0, %s178
      %s181 = sphi 0, %s180
      %s195 = sphi 0, %s181
      %s199 = sphi 0, %s199
      %s201 = sphi 0, %s199
      %s202 = sphi 0, %s201
      %s216 = sphi 0, %s202
      %s220 = sphi 0, %s220
      %s222 = sphi 0, %s220
      %s223 = sphi 0, %s222
      %s237 = sphi 0, %s223
      %s241 = sphi 0, %s241
      %s243 = sphi 0, %s241
      %s244 = sphi 0, %s243
      %s258 = sphi 0, %s244
      %s262 = sphi 0, %s262
      %s264 = sphi 0, %s262
      %s265 = sphi 0, %s264
      %s279 = sphi 0, %s265
      %s283 = sphi 0, %s283
      %s285 = sphi 0, %s283
      %s286 = sphi 0, %s285
      %s300 = sphi 0, %s286
      %s304 = sphi 0, %s304
      %s306 = sphi 0, %s304
      %s307 = sphi 0, %s306
      %s321 = sphi 0, %s307
      %s327 = sphi 0, %s329
      %s330 = sphi 0, %s327
      %s331 = sphi 0, %s330
      %s347 = sphi 0, %s331
      %s355 = sphi 0, %s357
      %s358 = sphi 0, %s355
      %s359 = sphi 0, %s358
      %s375 = sphi 0, %s359
    $region4: #{tpu_custom_call.1} parent=1 // loop_header_branch
      %30 = sbr.rel (%p28) target = $region8
    $region5: #{tpu_custom_call.1} parent=1 // loop_body
      %s32 = ssub.s32 %s27, 1
      %s33 = ssub.s32 %s27, 2
      %s40 = sadd.s32 1, %s35
      %p41 = scmp.ge.s32.totalorder %s40, 2
      %s42 = scalar_select %p41, 0, %s40
      %s43 = sadd.s32 1, %s34
      %s44 = scalar_select %p41, %s43, %s34
      %p45 = scmp.ge.s32.totalorder %s44, 2
      %s46 = scalar_select %p45, 0, %s44
      %s47 = ssub.s32 %s34, %s46
      %p48 = scmp.eq.s32.totalorder %s47, 0
      %s50 = sadd.s32 %s49, 1
      %s51 = scalar_select %p48, %s49, %s50
      %p54 = pneg %p48
      %p55 = scmp.eq.s32.totalorder %s27, 3
      %p56 = por %p54, %p55
      %p57 = scmp.ne.s32.totalorder %s49, %s52
      %p58 = scmp.eq.s32.totalorder %s27, 0
      %p59 = por %p57, %p58
      %p60 = scmp.ne.s32.totalorder %s49, %s52
      %p61 = scmp.eq.s32.totalorder %s32, 3
      %p62 = por %p60, %p61
      %p63 = scmp.ne.s32.totalorder %s52, %s53
      %p64 = scmp.eq.s32.totalorder %s32, 0
      %p65 = por %p63, %p64
      %p66 = scmp.ne.s32.totalorder %s52, %s53
      %p67 = scmp.eq.s32.totalorder %s33, 3
      %p68 = por %p66, %p67
      %p70 = scmp.ne.s32.totalorder %s53, %s69
      %p71 = scmp.eq.s32.totalorder %s33, 0
      %p72 = por %p70, %p71
      %s74 = sadd.s32 %s73, 1
      %p77 = scmp.eq.s32.totalorder %s27, 3
      %p78 = scmp.ne.s32.totalorder %s73, %s75
      %p79 = scmp.eq.s32.totalorder %s27, 0
      %p80 = por %p78, %p79
      %p81 = scmp.ne.s32.totalorder %s73, %s75
      %p82 = scmp.eq.s32.totalorder %s32, 3
      %p83 = por %p81, %p82
      %p84 = scmp.ne.s32.totalorder %s75, %s76
      %p85 = scmp.eq.s32.totalorder %s32, 0
      %p86 = por %p84, %p85
      %p87 = scmp.ne.s32.totalorder %s75, %s76
      %p88 = scmp.eq.s32.totalorder %s33, 3
      %p89 = por %p87, %p88
      %p91 = scmp.ne.s32.totalorder %s76, %s90
      %p92 = scmp.eq.s32.totalorder %s33, 0
      %p93 = por %p91, %p92
      %s95 = sadd.s32 %s94, 1
      %p98 = scmp.eq.s32.totalorder %s27, 3
      %p99 = scmp.ne.s32.totalorder %s94, %s96
      %p100 = scmp.eq.s32.totalorder %s27, 0
      %p101 = por %p99, %p100
      %p102 = scmp.ne.s32.totalorder %s94, %s96
      %p103 = scmp.eq.s32.totalorder %s32, 3
      %p104 = por %p102, %p103
      %p105 = scmp.ne.s32.totalorder %s96, %s97
      %p106 = scmp.eq.s32.totalorder %s32, 0
      %p107 = por %p105, %p106
      %p108 = scmp.ne.s32.totalorder %s96, %s97
      %p109 = scmp.eq.s32.totalorder %s33, 3
      %p110 = por %p108, %p109
      %p112 = scmp.ne.s32.totalorder %s97, %s111
      %p113 = scmp.eq.s32.totalorder %s33, 0
      %p114 = por %p112, %p113
      %s116 = sadd.s32 %s115, 1
      %p119 = scmp.eq.s32.totalorder %s27, 3
      %p120 = scmp.ne.s32.totalorder %s115, %s117
      %p121 = scmp.eq.s32.totalorder %s27, 0
      %p122 = por %p120, %p121
      %p123 = scmp.ne.s32.totalorder %s115, %s117
      %p124 = scmp.eq.s32.totalorder %s32, 3
      %p125 = por %p123, %p124
      %p126 = scmp.ne.s32.totalorder %s117, %s118
      %p127 = scmp.eq.s32.totalorder %s32, 0
      %p128 = por %p126, %p127
      %p129 = scmp.ne.s32.totalorder %s117, %s118
      %p130 = scmp.eq.s32.totalorder %s33, 3
      %p131 = por %p129, %p130
      %p133 = scmp.ne.s32.totalorder %s118, %s132
      %p134 = scmp.eq.s32.totalorder %s33, 0
      %p135 = por %p133, %p134
      %s137 = sadd.s32 %s136, 1
      %p140 = scmp.eq.s32.totalorder %s27, 3
      %p141 = scmp.ne.s32.totalorder %s136, %s138
      %p142 = scmp.eq.s32.totalorder %s27, 0
      %p143 = por %p141, %p142
      %p144 = scmp.ne.s32.totalorder %s136, %s138
      %p145 = scmp.eq.s32.totalorder %s32, 3
      %p146 = por %p144, %p145
      %p147 = scmp.ne.s32.totalorder %s138, %s139
      %p148 = scmp.eq.s32.totalorder %s32, 0
      %p149 = por %p147, %p148
      %p150 = scmp.ne.s32.totalorder %s138, %s139
      %p151 = scmp.eq.s32.totalorder %s33, 3
      %p152 = por %p150, %p151
      %p154 = scmp.ne.s32.totalorder %s139, %s153
      %p155 = scmp.eq.s32.totalorder %s33, 0
      %p156 = por %p154, %p155
      %s158 = sadd.s32 %s157, 1
      %p161 = scmp.eq.s32.totalorder %s27, 3
      %p162 = scmp.ne.s32.totalorder %s157, %s159
      %p163 = scmp.eq.s32.totalorder %s27, 0
      %p164 = por %p162, %p163
      %p165 = scmp.ne.s32.totalorder %s157, %s159
      %p166 = scmp.eq.s32.totalorder %s32, 3
      %p167 = por %p165, %p166
      %p168 = scmp.ne.s32.totalorder %s159, %s160
      %p169 = scmp.eq.s32.totalorder %s32, 0
      %p170 = por %p168, %p169
      %p171 = scmp.ne.s32.totalorder %s159, %s160
      %p172 = scmp.eq.s32.totalorder %s33, 3
      %p173 = por %p171, %p172
      %p175 = scmp.ne.s32.totalorder %s160, %s174
      %p176 = scmp.eq.s32.totalorder %s33, 0
      %p177 = por %p175, %p176
      %s179 = sadd.s32 %s178, 1
      %p182 = scmp.eq.s32.totalorder %s27, 3
      %p183 = scmp.ne.s32.totalorder %s178, %s180
      %p184 = scmp.eq.s32.totalorder %s27, 0
      %p185 = por %p183, %p184
      %p186 = scmp.ne.s32.totalorder %s178, %s180
      %p187 = scmp.eq.s32.totalorder %s32, 3
      %p188 = por %p186, %p187
      %p189 = scmp.ne.s32.totalorder %s180, %s181
      %p190 = scmp.eq.s32.totalorder %s32, 0
      %p191 = por %p189, %p190
      %p192 = scmp.ne.s32.totalorder %s180, %s181
      %p193 = scmp.eq.s32.totalorder %s33, 3
      %p194 = por %p192, %p193
      %p196 = scmp.ne.s32.totalorder %s181, %s195
      %p197 = scmp.eq.s32.totalorder %s33, 0
      %p198 = por %p196, %p197
      %s200 = sadd.s32 %s199, 1
      %p203 = scmp.eq.s32.totalorder %s27, 3
      %p204 = scmp.ne.s32.totalorder %s199, %s201
      %p205 = scmp.eq.s32.totalorder %s27, 0
      %p206 = por %p204, %p205
      %p207 = scmp.ne.s32.totalorder %s199, %s201
      %p208 = scmp.eq.s32.totalorder %s32, 3
      %p209 = por %p207, %p208
      %p210 = scmp.ne.s32.totalorder %s201, %s202
      %p211 = scmp.eq.s32.totalorder %s32, 0
      %p212 = por %p210, %p211
      %p213 = scmp.ne.s32.totalorder %s201, %s202
      %p214 = scmp.eq.s32.totalorder %s33, 3
      %p215 = por %p213, %p214
      %p217 = scmp.ne.s32.totalorder %s202, %s216
      %p218 = scmp.eq.s32.totalorder %s33, 0
      %p219 = por %p217, %p218
      %s221 = sadd.s32 %s220, 1
      %p224 = scmp.eq.s32.totalorder %s27, 3
      %p225 = scmp.ne.s32.totalorder %s220, %s222
      %p226 = scmp.eq.s32.totalorder %s27, 0
      %p227 = por %p225, %p226
      %p228 = scmp.ne.s32.totalorder %s220, %s222
      %p229 = scmp.eq.s32.totalorder %s32, 3
      %p230 = por %p228, %p229
      %p231 = scmp.ne.s32.totalorder %s222, %s223
      %p232 = scmp.eq.s32.totalorder %s32, 0
      %p233 = por %p231, %p232
      %p234 = scmp.ne.s32.totalorder %s222, %s223
      %p235 = scmp.eq.s32.totalorder %s33, 3
      %p236 = por %p234, %p235
      %p238 = scmp.ne.s32.totalorder %s223, %s237
      %p239 = scmp.eq.s32.totalorder %s33, 0
      %p240 = por %p238, %p239
      %s242 = sadd.s32 %s241, 1
      %p245 = scmp.eq.s32.totalorder %s27, 3
      %p246 = scmp.ne.s32.totalorder %s241, %s243
      %p247 = scmp.eq.s32.totalorder %s27, 0
      %p248 = por %p246, %p247
      %p249 = scmp.ne.s32.totalorder %s241, %s243
      %p250 = scmp.eq.s32.totalorder %s32, 3
      %p251 = por %p249, %p250
      %p252 = scmp.ne.s32.totalorder %s243, %s244
      %p253 = scmp.eq.s32.totalorder %s32, 0
      %p254 = por %p252, %p253
      %p255 = scmp.ne.s32.totalorder %s243, %s244
      %p256 = scmp.eq.s32.totalorder %s33, 3
      %p257 = por %p255, %p256
      %p259 = scmp.ne.s32.totalorder %s244, %s258
      %p260 = scmp.eq.s32.totalorder %s33, 0
      %p261 = por %p259, %p260
      %s263 = sadd.s32 %s262, 1
      %p266 = scmp.eq.s32.totalorder %s27, 3
      %p267 = scmp.ne.s32.totalorder %s262, %s264
      %p268 = scmp.eq.s32.totalorder %s27, 0
      %p269 = por %p267, %p268
      %p270 = scmp.ne.s32.totalorder %s262, %s264
      %p271 = scmp.eq.s32.totalorder %s32, 3
      %p272 = por %p270, %p271
      %p273 = scmp.ne.s32.totalorder %s264, %s265
      %p274 = scmp.eq.s32.totalorder %s32, 0
      %p275 = por %p273, %p274
      %p276 = scmp.ne.s32.totalorder %s264, %s265
      %p277 = scmp.eq.s32.totalorder %s33, 3
      %p278 = por %p276, %p277
      %p280 = scmp.ne.s32.totalorder %s265, %s279
      %p281 = scmp.eq.s32.totalorder %s33, 0
      %p282 = por %p280, %p281
      %s284 = sadd.s32 %s283, 1
      %p287 = scmp.eq.s32.totalorder %s27, 3
      %p288 = scmp.ne.s32.totalorder %s283, %s285
      %p289 = scmp.eq.s32.totalorder %s27, 0
      %p290 = por %p288, %p289
      %p291 = scmp.ne.s32.totalorder %s283, %s285
      %p292 = scmp.eq.s32.totalorder %s32, 3
      %p293 = por %p291, %p292
      %p294 = scmp.ne.s32.totalorder %s285, %s286
      %p295 = scmp.eq.s32.totalorder %s32, 0
      %p296 = por %p294, %p295
      %p297 = scmp.ne.s32.totalorder %s285, %s286
      %p298 = scmp.eq.s32.totalorder %s33, 3
      %p299 = por %p297, %p298
      %p301 = scmp.ne.s32.totalorder %s286, %s300
      %p302 = scmp.eq.s32.totalorder %s33, 0
      %p303 = por %p301, %p302
      %s305 = sadd.s32 %s304, 1
      %p308 = scmp.eq.s32.totalorder %s27, 3
      %p309 = scmp.ne.s32.totalorder %s304, %s306
      %p310 = scmp.eq.s32.totalorder %s27, 0
      %p311 = por %p309, %p310
      %p312 = scmp.ne.s32.totalorder %s304, %s306
      %p313 = scmp.eq.s32.totalorder %s32, 3
      %p314 = por %p312, %p313
      %p315 = scmp.ne.s32.totalorder %s306, %s307
      %p316 = scmp.eq.s32.totalorder %s32, 0
      %p317 = por %p315, %p316
      %p318 = scmp.ne.s32.totalorder %s306, %s307
      %p319 = scmp.eq.s32.totalorder %s33, 3
      %p320 = por %p318, %p319
      %p322 = scmp.ne.s32.totalorder %s307, %s321
      %p323 = scmp.eq.s32.totalorder %s33, 0
      %p324 = por %p322, %p323
      %s325 = ssub.s32 %s34, %s46
      %p326 = scmp.eq.s32.totalorder %s325, 0
      %s328 = sadd.s32 %s327, 1
      %s329 = scalar_select %p326, %s327, %s328
      %p332 = pneg %p326
      %p333 = scmp.eq.s32.totalorder %s27, 3
      %p334 = por %p332, %p333
      %p335 = scmp.ne.s32.totalorder %s327, %s330
      %p336 = scmp.eq.s32.totalorder %s27, 0
      %p337 = por %p335, %p336
      %p338 = scmp.ne.s32.totalorder %s327, %s330
      %p339 = scmp.eq.s32.totalorder %s32, 3
      %p340 = por %p338, %p339
      %p341 = scmp.ne.s32.totalorder %s330, %s331
      %p342 = scmp.eq.s32.totalorder %s32, 0
      %p343 = por %p341, %p342
      %p344 = scmp.ne.s32.totalorder %s330, %s331
      %p345 = scmp.eq.s32.totalorder %s33, 3
      %p346 = por %p344, %p345
      %p348 = scmp.ne.s32.totalorder %s331, %s347
      %p349 = scmp.eq.s32.totalorder %s33, 0
      %p350 = por %p348, %p349
      %s351 = ssub.s32 %s35, %s42
      %s352 = ssub.s32 %s34, %s46
      %s353 = sor.u32 %s351, %s352
      %p354 = scmp.eq.s32.totalorder %s353, 0
      %s356 = sadd.s32 %s355, 1
      %s357 = scalar_select %p354, %s355, %s356
      %p360 = pneg %p354
      %p361 = scmp.eq.s32.totalorder %s27, 3
      %p362 = por %p360, %p361
      %p363 = scmp.ne.s32.totalorder %s355, %s358
      %p364 = scmp.eq.s32.totalorder %s27, 0
      %p365 = por %p363, %p364
      %p366 = scmp.ne.s32.totalorder %s355, %s358
      %p367 = scmp.eq.s32.totalorder %s32, 3
      %p368 = por %p366, %p367
      %p369 = scmp.ne.s32.totalorder %s358, %s359
      %p370 = scmp.eq.s32.totalorder %s32, 0
      %p371 = por %p369, %p370
      %p372 = scmp.ne.s32.totalorder %s358, %s359
      %p373 = scmp.eq.s32.totalorder %s33, 3
      %p374 = por %p372, %p373
      %p376 = scmp.ne.s32.totalorder %s359, %s375
      %p377 = scmp.eq.s32.totalorder %s33, 0
      %p378 = por %p376, %p377
      %p379 = scmp.le.s32.totalorder 1, %s27
      %p380 = scmp.lt.s32.totalorder %s27, 5
      %p381 = pnand %p379, %p380
      %p382 = pneg %p381
      // Predicated region
      $region9: #{tpu_custom_call.1} parent=5 // pred_check
        _
      $region10: #{tpu_custom_call.1} parent=5 // pred_check_branch
        %384 = sbr.rel (%p381) target = $region12
      $region11: #{tpu_custom_call.1} parent=5 // pred_region
        %s385 = ssub.s32 %s27, 1
        // Predicated region
        $region13: #{tpu_custom_call.1} parent=11 // pred_check
          %p386 = pneg %p86
        $region14: #{tpu_custom_call.1} parent=11 // pred_check_branch
          %388 = sbr.rel (%p386) target = $region16
        $region15: #{tpu_custom_call.1} parent=11 // pred_region
          _
        $region16: #{tpu_custom_call.1} parent=11 // pred_fallthru
          _
        // Predicated region
        $region17: #{tpu_custom_call.1} parent=11 // pred_check
          %p389 = pneg %p107
        $region18: #{tpu_custom_call.1} parent=11 // pred_check_branch
          %391 = sbr.rel (%p389) target = $region20
        $region19: #{tpu_custom_call.1} parent=11 // pred_region
          _
        $region20: #{tpu_custom_call.1} parent=11 // pred_fallthru
          _
        // Predicated region
        $region21: #{tpu_custom_call.1} parent=11 // pred_check
          %p392 = pneg %p128
        $region22: #{tpu_custom_call.1} parent=11 // pred_check_branch
          %394 = sbr.rel (%p392) target = $region24
        $region23: #{tpu_custom_call.1} parent=11 // pred_region
          _
        $region24: #{tpu_custom_call.1} parent=11 // pred_fallthru
          _
        // Predicated region
        $region25: #{tpu_custom_call.1} parent=11 // pred_check
          %p395 = pneg %p149
        $region26: #{tpu_custom_call.1} parent=11 // pred_check_branch
          %397 = sbr.rel (%p395) target = $region28
        $region27: #{tpu_custom_call.1} parent=11 // pred_region
          _
        $region28: #{tpu_custom_call.1} parent=11 // pred_fallthru
          _
        // Predicated region
        $region29: #{tpu_custom_call.1} parent=11 // pred_check
          %p398 = pneg %p170
        $region30: #{tpu_custom_call.1} parent=11 // pred_check_branch
          %400 = sbr.rel (%p398) target = $region32
        $region31: #{tpu_custom_call.1} parent=11 // pred_region
          _
        $region32: #{tpu_custom_call.1} parent=11 // pred_fallthru
          _
        // Predicated region
        $region33: #{tpu_custom_call.1} parent=11 // pred_check
          %p401 = pneg %p191
        $region34: #{tpu_custom_call.1} parent=11 // pred_check_branch
          %403 = sbr.rel (%p401) target = $region36
        $region35: #{tpu_custom_call.1} parent=11 // pred_region
          _
        $region36: #{tpu_custom_call.1} parent=11 // pred_fallthru
          _
        // Predicated region
        $region37: #{tpu_custom_call.1} parent=11 // pred_check
          %p404 = pneg %p212
        $region38: #{tpu_custom_call.1} parent=11 // pred_check_branch
          %406 = sbr.rel (%p404) target = $region40
        $region39: #{tpu_custom_call.1} parent=11 // pred_region
          _
        $region40: #{tpu_custom_call.1} parent=11 // pred_fallthru
          _
        // Predicated region
        $region41: #{tpu_custom_call.1} parent=11 // pred_check
          %p407 = pneg %p233
        $region42: #{tpu_custom_call.1} parent=11 // pred_check_branch
          %409 = sbr.rel (%p407) target = $region44
        $region43: #{tpu_custom_call.1} parent=11 // pred_region
          _
        $region44: #{tpu_custom_call.1} parent=11 // pred_fallthru
          _
        // Predicated region
        $region45: #{tpu_custom_call.1} parent=11 // pred_check
          %p410 = pneg %p254
        $region46: #{tpu_custom_call.1} parent=11 // pred_check_branch
          %412 = sbr.rel (%p410) target = $region48
        $region47: #{tpu_custom_call.1} parent=11 // pred_region
          _
        $region48: #{tpu_custom_call.1} parent=11 // pred_fallthru
          _
        // Predicated region
        $region49: #{tpu_custom_call.1} parent=11 // pred_check
          %p413 = pneg %p275
        $region50: #{tpu_custom_call.1} parent=11 // pred_check_branch
          %415 = sbr.rel (%p413) target = $region52
        $region51: #{tpu_custom_call.1} parent=11 // pred_region
          _
        $region52: #{tpu_custom_call.1} parent=11 // pred_fallthru
          _
        // Predicated region
        $region53: #{tpu_custom_call.1} parent=11 // pred_check
          %p416 = pneg %p296
        $region54: #{tpu_custom_call.1} parent=11 // pred_check_branch
          %418 = sbr.rel (%p416) target = $region56
        $region55: #{tpu_custom_call.1} parent=11 // pred_region
          _
        $region56: #{tpu_custom_call.1} parent=11 // pred_fallthru
          _
        // Predicated region
        $region57: #{tpu_custom_call.1} parent=11 // pred_check
          %p419 = pneg %p317
        $region58: #{tpu_custom_call.1} parent=11 // pred_check_branch
          %421 = sbr.rel (%p419) target = $region60
        $region59: #{tpu_custom_call.1} parent=11 // pred_region
          _
        $region60: #{tpu_custom_call.1} parent=11 // pred_fallthru
          _
      $region12: #{tpu_custom_call.1} parent=5 // pred_fallthru
        _
      %p422 = scmp.lt.s32.totalorder %s27, 4
      // Predicated region
      $region61: #{tpu_custom_call.1} parent=5 // pred_check
        %p423 = pneg %p422
      $region62: #{tpu_custom_call.1} parent=5 // pred_check_branch
        %425 = sbr.rel (%p423) target = $region64
      $region63: #{tpu_custom_call.1} parent=5 // pred_region
        // Predicated region
        $region65: #{tpu_custom_call.1} parent=63 // pred_check
          %p426 = pneg %p59
        $region66: #{tpu_custom_call.1} parent=63 // pred_check_branch
          %428 = sbr.rel (%p426) target = $region68
        $region67: #{tpu_custom_call.1} parent=63 // pred_region
          %p429 = scmp.lt.s32.totalorder %s34, 1
          %s430 = scalar_select %p429, %s34, 1
          %s431 = smul.addr %s430, 8
          %s432 = scalar_lea.vmem %s0, %s431
        $region68: #{tpu_custom_call.1} parent=63 // pred_fallthru
          _
      $region64: #{tpu_custom_call.1} parent=5 // pred_fallthru
        _
      %p433 = scmp.le.s32.totalorder 1, %s27
      %p434 = scmp.lt.s32.totalorder %s27, 5
      %p435 = pnand %p433, %p434
      %p436 = pneg %p435
      // Predicated region
      $region69: #{tpu_custom_call.1} parent=5 // pred_check
        _
      $region70: #{tpu_custom_call.1} parent=5 // pred_check_branch
        %438 = sbr.rel (%p435) target = $region72
      $region71: #{tpu_custom_call.1} parent=5 // pred_region
        %s439 = ssub.s32 %s27, 1
        %p440 = scmp.lt.s32.totalorder %s36, 1
        %s441 = scalar_select %p440, %s36, 1
        %s442 = smul.addr %s441, 8
        %s443 = scalar_lea.vmem %s0, %s442
        %p444 = pneg %p65
        %p445 = pneg %p62
        %p446 = pneg %p86
        %p447 = pneg %p83
        %p448 = pneg %p107
        %p449 = pneg %p104
        %p450 = pneg %p128
        %p451 = pneg %p125
        %p452 = pneg %p149
        %p453 = pneg %p146
        %p454 = pneg %p170
        %p455 = pneg %p167
        %p456 = pneg %p191
        %p457 = pneg %p188
        %p458 = pneg %p212
        %p459 = pneg %p209
        %p460 = pneg %p233
        %p461 = pneg %p230
        %p462 = pneg %p254
        %p463 = pneg %p251
        %p464 = pneg %p275
        %p465 = pneg %p272
        %p466 = pneg %p296
        %p467 = pneg %p293
        %p468 = pneg %p317
        %p469 = pneg %p314
        %p470 = pneg %p343
        %p471 = pneg %p340
        %s472 = sand.u32 %s330, 1
        %s473 = scalar_lea.sflag [#allocation4], %s472
        %s474 = sand.u32 %s330, 1
        %s475 = smul.addr %s474, 8
        %s476 = scalar_lea.vmem [#allocation3], %s475
        %p477 = pneg %p371
        %p478 = pneg %p368
        %s479 = sand.u32 %s358, 1
        %s480 = scalar_lea.sflag [#allocation6], %s479
        %s481 = sand.u32 %s358, 1
        %s482 = smul.addr %s481, 16
        %s483 = scalar_lea.vmem [#allocation5], %s482
        %p484 = scmp.lt.s32.totalorder %s36, 1
        %s485 = scalar_select %p484, %s36, 1
        %s486 = smul.addr %s485, 8
        %s487 = scalar_lea.vmem %s0, %s486
        %p489 = scmp.eq.s32.totalorder %s37, 0
        // Predicated region
        $region73: #{tpu_custom_call.1} parent=71 // pred_check
          %p490 = pneg %p489
        $region74: #{tpu_custom_call.1} parent=71 // pred_check_branch
          %492 = sbr.rel (%p490) target = $region76
        $region75: #{tpu_custom_call.1} parent=71 // pred_region
          %v493 = vld [vmem:[%s487] sm:$0xff]
          %vm494 = vcmask 261120
          %495 = vst.msk [vmem:[%s476] sm:$0xff] %vm494, %v493
        $region76: #{tpu_custom_call.1} parent=71 // pred_fallthru
          _
        %v496 = vld [vmem:[%s476] sm:$0xff]
        %v497 = vld [vmem:[%s1] sm:$0x1]
        %v498 = vld [vmem:[%s2] sm:$0x1]
        %vm499 = vcmask 261120
        %v500 = vsel %vm499, %v496, 0.0
        %501 = vadd.xlane.f32.xlu0 %v500
        %v502 = vpop.xlane.xlu0 %501
        %v503 = vrcp.pop 32.0
        %v504 = vmul.f32 %v502, %v503
        %v505 = vsub.f32 %v496, %v504
        %v506 = vmul.f32 %v505, %v505
        %v507 = vsel %vm499, %v506, 0.0
        %508 = vadd.xlane.f32.xlu0 %v507
        %v509 = vpop.xlane.xlu0 %508
        %v510 = vmul.f32 %v509, %v503
        %v511 = vadd.f32 %v510, 1e-05
        %v512 = vrsqrt.pop %v511
        %v513 = vmul.f32 %v505, %v512
        %v515 = vlaneseq
        %v516 = vshrl.u32 %v515, 7
        %v517 = vsub.s32 0, %v516
        %v518 = vrot.slane %v497, %v517
        %v520 = vmul.f32 %v513, %v518
        %v522 = vlaneseq
        %v523 = vshrl.u32 %v522, 7
        %v524 = vsub.s32 0, %v523
        %v525 = vrot.slane %v498, %v524
        %v527 = vadd.f32 %v520, %v525
        %v528 = vpack.c.bf16 %v527, %v527
        %v529 = vld [vmem:[%s5] sm:$0xf]
        %v530 = vld [vmem:[%s5 + $0x4] sm:$0xf]
        %v531 = vld [vmem:[%s5 + $0x8] sm:$0xf]
        %v532 = vld [vmem:[%s5 + $0xc] sm:$0xf]
        %v533 = vld [vmem:[%s6] sm:$0x1]
        %v535 = vlaneseq
        %v536 = vshrl.u32 %v535, 7
        %v537 = vsub.s32 0, %v536
        %v538 = vrot.slane %v533, %v537
        %v544 = vunpack.c.l.b16 %v529
        %v545 = vunpack.c.l.b16 %v530
        %v546 = vunpack.c.l.b16 %v531
        %v547 = vunpack.c.l.b16 %v532
        %v548 = vpack.c.b16 %v545, %v544
        %v549 = vpack.c.b16 %v547, %v546
        %v553 = vsel %vm499, %v528, 0
        %555 = vmatprep.subr.bf16.mxu0 0
        %556 = vmatpush1.bf16.msra.mxu0 %v548
        %557 = vmatprep.subr.bf16.mxu0 0
        %558 = vmatpush1.bf16.msra.mxu0 %v549
        %559 = vmatprep.subr.bf16.mxu0 0
        %560 = vmatpush1.bf16.msra.mxu0 0
        %561 = vmatprep.subr.bf16.mxu0 0
        %562 = vmatpush1.bf16.msra.mxu0 0
        %563 = vmatprep.subr.bf16.mxu0 0
        %564 = vmatpush1.bf16.msra.mxu0 0
        %565 = vmatprep.subr.bf16.mxu0 0
        %566 = vmatpush1.bf16.msra.mxu0 0
        %567 = vmatprep.subr.bf16.mxu0 0
        %568 = vmatpush1.bf16.msra.mxu0 0
        %569 = vmatprep.subr.bf16.mxu0 0
        %570 = vmatpush1.bf16.msra.mxu0 0
        %571 = vmatprep.subr.bf16.mxu0 0
        %572 = vmatpush1.bf16.msra.mxu0 0
        %573 = vmatprep.subr.bf16.mxu0 0
        %574 = vmatpush1.bf16.msra.mxu0 0
        %575 = vmatprep.subr.bf16.mxu0 0
        %576 = vmatpush1.bf16.msra.mxu0 0
        %577 = vmatprep.subr.bf16.mxu0 0
        %578 = vmatpush1.bf16.msra.mxu0 0
        %579 = vmatprep.subr.bf16.mxu0 0
        %580 = vmatpush1.bf16.msra.mxu0 0
        %581 = vmatprep.subr.bf16.mxu0 0
        %582 = vmatpush1.bf16.msra.mxu0 0
        %583 = vmatprep.subr.bf16.mxu0 0
        %584 = vmatpush1.bf16.msra.mxu0 0
        %585 = vmatprep.subr.bf16.mxu0 0
        %586 = vmatpush1.bf16.msra.mxu0 0
        %587 = vmatprep.mubr.bf16.mxu0 0
        %588 = vmatmul.mubr.bf16.gmra.mrb[0].mxu0 %v553
        %v589 = vpop.f32.mrb[0].mxu0
        %v590 = vadd.f32 %v538, %v589
        %v591 = vpop.f32.mrb[0].mxu0
        %v592 = vpop.f32.mrb[0].mxu0
        %v593 = vpop.f32.mrb[0].mxu0
        %594 = vdwg.mxu0
        %v595 = vpack.c.bf16 %v590, %v590
        %597 = vrot.lane.b32.xlu0 %v595, 120
        %v598 = vpop.permute.xlu0 %597
        %599 = vrot.lane.b32.xlu0 %v595, 112
        %v600 = vpop.permute.xlu0 %599
        %601 = vrot.lane.b32.xlu0 %v595, 104
        %v602 = vpop.permute.xlu0 %601
        %603 = vrot.lane.b32.xlu0 %v595, 96
        %v604 = vpop.permute.xlu0 %603
        %vm605 = vcmask 64512
        %v607 = vsel %vm605, %v595, 0
        %v610 = vsel %vm605, %v604, 0
        %612 = vmatprep.subr.bf16.mxu0 0
        %613 = vmatpush1.bf16.xpose.msra.mxu0 %v610
        %614 = vmatprep.subr.bf16.mxu0 0
        %615 = vmatpush1.bf16.xpose.msra.mxu0 0
        %616 = vmatprep.subr.bf16.mxu0 0
        %617 = vmatpush1.bf16.xpose.msra.mxu0 0
        %618 = vmatprep.subr.bf16.mxu0 0
        %619 = vmatpush1.bf16.xpose.msra.mxu0 0
        %620 = vmatprep.subr.bf16.mxu0 0
        %621 = vmatpush1.bf16.xpose.msra.mxu0 0
        %622 = vmatprep.subr.bf16.mxu0 0
        %623 = vmatpush1.bf16.xpose.msra.mxu0 0
        %624 = vmatprep.subr.bf16.mxu0 0
        %625 = vmatpush1.bf16.xpose.msra.mxu0 0
        %626 = vmatprep.subr.bf16.mxu0 0
        %627 = vmatpush1.bf16.xpose.msra.mxu0 0
        %628 = vmatprep.subr.bf16.mxu0 0
        %629 = vmatpush1.bf16.xpose.msra.mxu0 0
        %630 = vmatprep.subr.bf16.mxu0 0
        %631 = vmatpush1.bf16.xpose.msra.mxu0 0
        %632 = vmatprep.subr.bf16.mxu0 0
        %633 = vmatpush1.bf16.xpose.msra.mxu0 0
        %634 = vmatprep.subr.bf16.mxu0 0
        %635 = vmatpush1.bf16.xpose.msra.mxu0 0
        %636 = vmatprep.subr.bf16.mxu0 0
        %637 = vmatpush1.bf16.xpose.msra.mxu0 0
        %638 = vmatprep.subr.bf16.mxu0 0
        %639 = vmatpush1.bf16.xpose.msra.mxu0 0
        %640 = vmatprep.subr.bf16.mxu0 0
        %641 = vmatpush1.bf16.xpose.msra.mxu0 0
        %642 = vmatprep.subr.bf16.mxu0 0
        %643 = vmatpush1.bf16.xpose.msra.mxu0 0
        %644 = vmatprep.mubr.bf16.mxu0 0
        %645 = vmatmul.mubr.bf16.gmra.mrb[0].mxu0 %v607
        %v646 = vpop.f32.mrb[0].mxu0
        %v647 = vadd.f32 0.0, %v646
        %v648 = vpop.f32.mrb[0].mxu0
        %v649 = vpop.f32.mrb[0].mxu0
        %v650 = vpop.f32.mrb[0].mxu0
        %651 = vdwg.mxu0
        %652 = vrot.lane.b32.xlu0 %v598, 96
        %v653 = vpop.permute.xlu0 %652
        %v655 = vsel %vm605, %v598, 0
        %v658 = vsel %vm605, %v653, 0
        %660 = vmatprep.subr.bf16.mxu0 0
        %661 = vmatpush1.bf16.xpose.msra.mxu0 %v658
        %662 = vmatprep.subr.bf16.mxu0 0
        %663 = vmatpush1.bf16.xpose.msra.mxu0 0
        %664 = vmatprep.subr.bf16.mxu0 0
        %665 = vmatpush1.bf16.xpose.msra.mxu0 0
        %666 = vmatprep.subr.bf16.mxu0 0
        %667 = vmatpush1.bf16.xpose.msra.mxu0 0
        %668 = vmatprep.subr.bf16.mxu0 0
        %669 = vmatpush1.bf16.xpose.msra.mxu0 0
        %670 = vmatprep.subr.bf16.mxu0 0
        %671 = vmatpush1.bf16.xpose.msra.mxu0 0
        %672 = vmatprep.subr.bf16.mxu0 0
        %673 = vmatpush1.bf16.xpose.msra.mxu0 0
        %674 = vmatprep.subr.bf16.mxu0 0
        %675 = vmatpush1.bf16.xpose.msra.mxu0 0
        %676 = vmatprep.subr.bf16.mxu0 0
        %677 = vmatpush1.bf16.xpose.msra.mxu0 0
        %678 = vmatprep.subr.bf16.mxu0 0
        %679 = vmatpush1.bf16.xpose.msra.mxu0 0
        %680 = vmatprep.subr.bf16.mxu0 0
        %681 = vmatpush1.bf16.xpose.msra.mxu0 0
        %682 = vmatprep.subr.bf16.mxu0 0
        %683 = vmatpush1.bf16.xpose.msra.mxu0 0
        %684 = vmatprep.subr.bf16.mxu0 0
        %685 = vmatpush1.bf16.xpose.msra.mxu0 0
        %686 = vmatprep.subr.bf16.mxu0 0
        %687 = vmatpush1.bf16.xpose.msra.mxu0 0
        %688 = vmatprep.subr.bf16.mxu0 0
        %689 = vmatpush1.bf16.xpose.msra.mxu0 0
        %690 = vmatprep.subr.bf16.mxu0 0
        %691 = vmatpush1.bf16.xpose.msra.mxu0 0
        %692 = vmatprep.mubr.bf16.mxu0 0
        %693 = vmatmul.mubr.bf16.gmra.mrb[0].mxu0 %v655
        %v694 = vpop.f32.mrb[0].mxu0
        %v695 = vadd.f32 0.0, %v694
        %v696 = vpop.f32.mrb[0].mxu0
        %v697 = vpop.f32.mrb[0].mxu0
        %v698 = vpop.f32.mrb[0].mxu0
        %699 = vdwg.mxu0
        %700 = vrot.lane.b32.xlu0 %v600, 96
        %v701 = vpop.permute.xlu0 %700
        %v703 = vsel %vm605, %v600, 0
        %v706 = vsel %vm605, %v701, 0
        %708 = vmatprep.subr.bf16.mxu0 0
        %709 = vmatpush1.bf16.xpose.msra.mxu0 %v706
        %710 = vmatprep.subr.bf16.mxu0 0
        %711 = vmatpush1.bf16.xpose.msra.mxu0 0
        %712 = vmatprep.subr.bf16.mxu0 0
        %713 = vmatpush1.bf16.xpose.msra.mxu0 0
        %714 = vmatprep.subr.bf16.mxu0 0
        %715 = vmatpush1.bf16.xpose.msra.mxu0 0
        %716 = vmatprep.subr.bf16.mxu0 0
        %717 = vmatpush1.bf16.xpose.msra.mxu0 0
        %718 = vmatprep.subr.bf16.mxu0 0
        %719 = vmatpush1.bf16.xpose.msra.mxu0 0
        %720 = vmatprep.subr.bf16.mxu0 0
        %721 = vmatpush1.bf16.xpose.msra.mxu0 0
        %722 = vmatprep.subr.bf16.mxu0 0
        %723 = vmatpush1.bf16.xpose.msra.mxu0 0
        %724 = vmatprep.subr.bf16.mxu0 0
        %725 = vmatpush1.bf16.xpose.msra.mxu0 0
        %726 = vmatprep.subr.bf16.mxu0 0
        %727 = vmatpush1.bf16.xpose.msra.mxu0 0
        %728 = vmatprep.subr.bf16.mxu0 0
        %729 = vmatpush1.bf16.xpose.msra.mxu0 0
        %730 = vmatprep.subr.bf16.mxu0 0
        %731 = vmatpush1.bf16.xpose.msra.mxu0 0
        %732 = vmatprep.subr.bf16.mxu0 0
        %733 = vmatpush1.bf16.xpose.msra.mxu0 0
        %734 = vmatprep.subr.bf16.mxu0 0
        %735 = vmatpush1.bf16.xpose.msra.mxu0 0
        %736 = vmatprep.subr.bf16.mxu0 0
        %737 = vmatpush1.bf16.xpose.msra.mxu0 0
        %738 = vmatprep.subr.bf16.mxu0 0
        %739 = vmatpush1.bf16.xpose.msra.mxu0 0
        %740 = vmatprep.mubr.bf16.mxu0 0
        %741 = vmatmul.mubr.bf16.gmra.mrb[0].mxu0 %v703
        %v742 = vpop.f32.mrb[0].mxu0
        %v743 = vadd.f32 0.0, %v742
        %v744 = vpop.f32.mrb[0].mxu0
        %v745 = vpop.f32.mrb[0].mxu0
        %v746 = vpop.f32.mrb[0].mxu0
        %747 = vdwg.mxu0
        %748 = vrot.lane.b32.xlu0 %v602, 96
        %v749 = vpop.permute.xlu0 %748
        %v751 = vsel %vm605, %v602, 0
        %v754 = vsel %vm605, %v749, 0
        %756 = vmatprep.subr.bf16.mxu0 0
        %757 = vmatpush1.bf16.xpose.msra.mxu0 %v754
        %758 = vmatprep.subr.bf16.mxu0 0
        %759 = vmatpush1.bf16.xpose.msra.mxu0 0
        %760 = vmatprep.subr.bf16.mxu0 0
        %761 = vmatpush1.bf16.xpose.msra.mxu0 0
        %762 = vmatprep.subr.bf16.mxu0 0
        %763 = vmatpush1.bf16.xpose.msra.mxu0 0
        %764 = vmatprep.subr.bf16.mxu0 0
        %765 = vmatpush1.bf16.xpose.msra.mxu0 0
        %766 = vmatprep.subr.bf16.mxu0 0
        %767 = vmatpush1.bf16.xpose.msra.mxu0 0
        %768 = vmatprep.subr.bf16.mxu0 0
        %769 = vmatpush1.bf16.xpose.msra.mxu0 0
        %770 = vmatprep.subr.bf16.mxu0 0
        %771 = vmatpush1.bf16.xpose.msra.mxu0 0
        %772 = vmatprep.subr.bf16.mxu0 0
        %773 = vmatpush1.bf16.xpose.msra.mxu0 0
        %774 = vmatprep.subr.bf16.mxu0 0
        %775 = vmatpush1.bf16.xpose.msra.mxu0 0
        %776 = vmatprep.subr.bf16.mxu0 0
        %777 = vmatpush1.bf16.xpose.msra.mxu0 0
        %778 = vmatprep.subr.bf16.mxu0 0
        %779 = vmatpush1.bf16.xpose.msra.mxu0 0
        %780 = vmatprep.subr.bf16.mxu0 0
        %781 = vmatpush1.bf16.xpose.msra.mxu0 0
        %782 = vmatprep.subr.bf16.mxu0 0
        %783 = vmatpush1.bf16.xpose.msra.mxu0 0
        %784 = vmatprep.subr.bf16.mxu0 0
        %785 = vmatpush1.bf16.xpose.msra.mxu0 0
        %786 = vmatprep.subr.bf16.mxu0 0
        %787 = vmatpush1.bf16.xpose.msra.mxu0 0
        %788 = vmatprep.mubr.bf16.mxu0 0
        %789 = vmatmul.mubr.bf16.gmra.mrb[0].mxu0 %v751
        %v790 = vpop.f32.mrb[0].mxu0
        %v791 = vadd.f32 0.0, %v790
        %v792 = vpop.f32.mrb[0].mxu0
        %v793 = vpop.f32.mrb[0].mxu0
        %v794 = vpop.f32.mrb[0].mxu0
        %795 = vdwg.mxu0
        %v796 = vsel %vm605, %v647, -inf
        %797 = vmax.xlane.f32.xlu0 %v796
        %v798 = vpop.xlane.xlu0 %797
        %v799 = vsel %vm605, %v695, -inf
        %800 = vmax.xlane.f32.xlu0 %v799
        %v801 = vpop.xlane.xlu0 %800
        %v802 = vsel %vm605, %v743, -inf
        %803 = vmax.xlane.f32.xlu0 %v802
        %v804 = vpop.xlane.xlu0 %803
        %v805 = vsel %vm605, %v791, -inf
        %806 = vmax.xlane.f32.xlu0 %v805
        %v807 = vpop.xlane.xlu0 %806
        %v808 = vsub.f32 %v647, %v798
        %v809 = vsub.f32 %v695, %v801
        %v810 = vsub.f32 %v743, %v804
        %v811 = vsub.f32 %v791, %v807
        %v812 = vmul.f32 %v808, 1.442695
        %v813 = vpow.pop %v812
        %v814 = vmul.f32 %v809, 1.442695
        %v815 = vpow.pop %v814
        %v816 = vmul.f32 %v810, 1.442695
        %v817 = vpow.pop %v816
        %v818 = vmul.f32 %v811, 1.442695
        %v819 = vpow.pop %v818
        %v820 = vsel %vm605, %v813, 0.0
        %821 = vadd.xlane.f32.xlu0 %v820
        %v822 = vpop.xlane.xlu0 %821
        %v823 = vsel %vm605, %v815, 0.0
        %824 = vadd.xlane.f32.xlu0 %v823
        %v825 = vpop.xlane.xlu0 %824
        %v826 = vsel %vm605, %v817, 0.0
        %827 = vadd.xlane.f32.xlu0 %v826
        %v828 = vpop.xlane.xlu0 %827
        %v829 = vsel %vm605, %v819, 0.0
        %830 = vadd.xlane.f32.xlu0 %v829
        %v831 = vpop.xlane.xlu0 %830
        %v832 = vrcp.pop %v822
        %v833 = vmul.f32 %v813, %v832
        %v834 = vrcp.pop %v825
        %v835 = vmul.f32 %v815, %v834
        %v836 = vrcp.pop %v828
        %v837 = vmul.f32 %v817, %v836
        %v838 = vrcp.pop %v831
        %v839 = vmul.f32 %v819, %v838
        %v840 = vpack.c.bf16 %v833, %v833
        %v841 = vpack.c.bf16 %v835, %v835
        %v842 = vpack.c.bf16 %v837, %v837
        %v843 = vpack.c.bf16 %v839, %v839
        %vm844 = vcmask 60416
        %845 = vst.msk [vmem:[%s483] sm:$0xf] %vm844, %v840
        %846 = vst.msk [vmem:[%s483 + $0x4] sm:$0xf] %vm844, %v841
        %847 = vst.msk [vmem:[%s483 + $0x8] sm:$0xf] %vm844, %v842
        %848 = vst.msk [vmem:[%s483 + $0xc] sm:$0xf] %vm844, %v843
        %849 = vrot.lane.b32.xlu0 %v595, 64
        %v850 = vpop.permute.xlu0 %849
        %v852 = vsel %vm605, %v840, 0
        %vm854 = vcmask 1043456
        %v856 = vsel %vm854, %v850, 0
        %858 = vmatprep.subr.bf16.mxu0 0
        %859 = vmatpush1.bf16.msra.mxu0 %v856
        %860 = vmatprep.subr.bf16.mxu0 0
        %861 = vmatpush1.bf16.msra.mxu0 0
        %862 = vmatprep.subr.bf16.mxu0 0
        %863 = vmatpush1.bf16.msra.mxu0 0
        %864 = vmatprep.subr.bf16.mxu0 0
        %865 = vmatpush1.bf16.msra.mxu0 0
        %866 = vmatprep.subr.bf16.mxu0 0
        %867 = vmatpush1.bf16.msra.mxu0 0
        %868 = vmatprep.subr.bf16.mxu0 0
        %869 = vmatpush1.bf16.msra.mxu0 0
        %870 = vmatprep.subr.bf16.mxu0 0
        %871 = vmatpush1.bf16.msra.mxu0 0
        %872 = vmatprep.subr.bf16.mxu0 0
        %873 = vmatpush1.bf16.msra.mxu0 0
        %874 = vmatprep.subr.bf16.mxu0 0
        %875 = vmatpush1.bf16.msra.mxu0 0
        %876 = vmatprep.subr.bf16.mxu0 0
        %877 = vmatpush1.bf16.msra.mxu0 0
        %878 = vmatprep.subr.bf16.mxu0 0
        %879 = vmatpush1.bf16.msra.mxu0 0
        %880 = vmatprep.subr.bf16.mxu0 0
        %881 = vmatpush1.bf16.msra.mxu0 0
        %882 = vmatprep.subr.bf16.mxu0 0
        %883 = vmatpush1.bf16.msra.mxu0 0
        %884 = vmatprep.subr.bf16.mxu0 0
        %885 = vmatpush1.bf16.msra.mxu0 0
        %886 = vmatprep.subr.bf16.mxu0 0
        %887 = vmatpush1.bf16.msra.mxu0 0
        %888 = vmatprep.subr.bf16.mxu0 0
        %889 = vmatpush1.bf16.msra.mxu0 0
        %890 = vmatprep.mubr.bf16.mxu0 0
        %891 = vmatmul.mubr.bf16.gmra.mrb[0].mxu0 %v852
        %v892 = vpop.f32.mrb[0].mxu0
        %v893 = vadd.f32 0.0, %v892
        %v894 = vpop.f32.mrb[0].mxu0
        %v895 = vpop.f32.mrb[0].mxu0
        %v896 = vpop.f32.mrb[0].mxu0
        %897 = vdwg.mxu0
        %898 = vrot.lane.b32.xlu0 %v598, 64
        %v899 = vpop.permute.xlu0 %898
        %v901 = vsel %vm605, %v841, 0
        %v904 = vsel %vm854, %v899, 0
        %906 = vmatprep.subr.bf16.mxu0 0
        %907 = vmatpush1.bf16.msra.mxu0 %v904
        %908 = vmatprep.subr.bf16.mxu0 0
        %909 = vmatpush1.bf16.msra.mxu0 0
        %910 = vmatprep.subr.bf16.mxu0 0
        %911 = vmatpush1.bf16.msra.mxu0 0
        %912 = vmatprep.subr.bf16.mxu0 0
        %913 = vmatpush1.bf16.msra.mxu0 0
        %914 = vmatprep.subr.bf16.mxu0 0
        %915 = vmatpush1.bf16.msra.mxu0 0
        %916 = vmatprep.subr.bf16.mxu0 0
        %917 = vmatpush1.bf16.msra.mxu0 0
        %918 = vmatprep.subr.bf16.mxu0 0
        %919 = vmatpush1.bf16.msra.mxu0 0
        %920 = vmatprep.subr.bf16.mxu0 0
        %921 = vmatpush1.bf16.msra.mxu0 0
        %922 = vmatprep.subr.bf16.mxu0 0
        %923 = vmatpush1.bf16.msra.mxu0 0
        %924 = vmatprep.subr.bf16.mxu0 0
        %925 = vmatpush1.bf16.msra.mxu0 0
        %926 = vmatprep.subr.bf16.mxu0 0
        %927 = vmatpush1.bf16.msra.mxu0 0
        %928 = vmatprep.subr.bf16.mxu0 0
        %929 = vmatpush1.bf16.msra.mxu0 0
        %930 = vmatprep.subr.bf16.mxu0 0
        %931 = vmatpush1.bf16.msra.mxu0 0
        %932 = vmatprep.subr.bf16.mxu0 0
        %933 = vmatpush1.bf16.msra.mxu0 0
        %934 = vmatprep.subr.bf16.mxu0 0
        %935 = vmatpush1.bf16.msra.mxu0 0
        %936 = vmatprep.subr.bf16.mxu0 0
        %937 = vmatpush1.bf16.msra.mxu0 0
        %938 = vmatprep.mubr.bf16.mxu0 0
        %939 = vmatmul.mubr.bf16.gmra.mrb[0].mxu0 %v901
        %v940 = vpop.f32.mrb[0].mxu0
        %v941 = vadd.f32 0.0, %v940
        %v942 = vpop.f32.mrb[0].mxu0
        %v943 = vpop.f32.mrb[0].mxu0
        %v944 = vpop.f32.mrb[0].mxu0
        %945 = vdwg.mxu0
        %946 = vrot.lane.b32.xlu0 %v600, 64
        %v947 = vpop.permute.xlu0 %946
        %v949 = vsel %vm605, %v842, 0
        %v952 = vsel %vm854, %v947, 0
        %954 = vmatprep.subr.bf16.mxu0 0
        %955 = vmatpush1.bf16.msra.mxu0 %v952
        %956 = vmatprep.subr.bf16.mxu0 0
        %957 = vmatpush1.bf16.msra.mxu0 0
        %958 = vmatprep.subr.bf16.mxu0 0
        %959 = vmatpush1.bf16.msra.mxu0 0
        %960 = vmatprep.subr.bf16.mxu0 0
        %961 = vmatpush1.bf16.msra.mxu0 0
        %962 = vmatprep.subr.bf16.mxu0 0
        %963 = vmatpush1.bf16.msra.mxu0 0
        %964 = vmatprep.subr.bf16.mxu0 0
        %965 = vmatpush1.bf16.msra.mxu0 0
        %966 = vmatprep.subr.bf16.mxu0 0
        %967 = vmatpush1.bf16.msra.mxu0 0
        %968 = vmatprep.subr.bf16.mxu0 0
        %969 = vmatpush1.bf16.msra.mxu0 0
        %970 = vmatprep.subr.bf16.mxu0 0
        %971 = vmatpush1.bf16.msra.mxu0 0
        %972 = vmatprep.subr.bf16.mxu0 0
        %973 = vmatpush1.bf16.msra.mxu0 0
        %974 = vmatprep.subr.bf16.mxu0 0
        %975 = vmatpush1.bf16.msra.mxu0 0
        %976 = vmatprep.subr.bf16.mxu0 0
        %977 = vmatpush1.bf16.msra.mxu0 0
        %978 = vmatprep.subr.bf16.mxu0 0
        %979 = vmatpush1.bf16.msra.mxu0 0
        %980 = vmatprep.subr.bf16.mxu0 0
        %981 = vmatpush1.bf16.msra.mxu0 0
        %982 = vmatprep.subr.bf16.mxu0 0
        %983 = vmatpush1.bf16.msra.mxu0 0
        %984 = vmatprep.subr.bf16.mxu0 0
        %985 = vmatpush1.bf16.msra.mxu0 0
        %986 = vmatprep.mubr.bf16.mxu0 0
        %987 = vmatmul.mubr.bf16.gmra.mrb[0].mxu0 %v949
        %v988 = vpop.f32.mrb[0].mxu0
        %v989 = vadd.f32 0.0, %v988
        %v990 = vpop.f32.mrb[0].mxu0
        %v991 = vpop.f32.mrb[0].mxu0
        %v992 = vpop.f32.mrb[0].mxu0
        %993 = vdwg.mxu0
        %994 = vrot.lane.b32.xlu0 %v602, 64
        %v995 = vpop.permute.xlu0 %994
        %v997 = vsel %vm605, %v843, 0
        %v1000 = vsel %vm854, %v995, 0
        %1002 = vmatprep.subr.bf16.mxu0 0
        %1003 = vmatpush1.bf16.msra.mxu0 %v1000
        %1004 = vmatprep.subr.bf16.mxu0 0
        %1005 = vmatpush1.bf16.msra.mxu0 0
        %1006 = vmatprep.subr.bf16.mxu0 0
        %1007 = vmatpush1.bf16.msra.mxu0 0
        %1008 = vmatprep.subr.bf16.mxu0 0
        %1009 = vmatpush1.bf16.msra.mxu0 0
        %1010 = vmatprep.subr.bf16.mxu0 0
        %1011 = vmatpush1.bf16.msra.mxu0 0
        %1012 = vmatprep.subr.bf16.mxu0 0
        %1013 = vmatpush1.bf16.msra.mxu0 0
        %1014 = vmatprep.subr.bf16.mxu0 0
        %1015 = vmatpush1.bf16.msra.mxu0 0
        %1016 = vmatprep.subr.bf16.mxu0 0
        %1017 = vmatpush1.bf16.msra.mxu0 0
        %1018 = vmatprep.subr.bf16.mxu0 0
        %1019 = vmatpush1.bf16.msra.mxu0 0
        %1020 = vmatprep.subr.bf16.mxu0 0
        %1021 = vmatpush1.bf16.msra.mxu0 0
        %1022 = vmatprep.subr.bf16.mxu0 0
        %1023 = vmatpush1.bf16.msra.mxu0 0
        %1024 = vmatprep.subr.bf16.mxu0 0
        %1025 = vmatpush1.bf16.msra.mxu0 0
        %1026 = vmatprep.subr.bf16.mxu0 0
        %1027 = vmatpush1.bf16.msra.mxu0 0
        %1028 = vmatprep.subr.bf16.mxu0 0
        %1029 = vmatpush1.bf16.msra.mxu0 0
        %1030 = vmatprep.subr.bf16.mxu0 0
        %1031 = vmatpush1.bf16.msra.mxu0 0
        %1032 = vmatprep.subr.bf16.mxu0 0
        %1033 = vmatpush1.bf16.msra.mxu0 0
        %1034 = vmatprep.mubr.bf16.mxu0 0
        %1035 = vmatmul.mubr.bf16.gmra.mrb[0].mxu0 %v997
        %v1036 = vpop.f32.mrb[0].mxu0
        %v1037 = vadd.f32 0.0, %v1036
        %v1038 = vpop.f32.mrb[0].mxu0
        %v1039 = vpop.f32.mrb[0].mxu0
        %v1040 = vpop.f32.mrb[0].mxu0
        %1041 = vdwg.mxu0
        %v1042 = vpack.c.bf16 %v893, %v893
        %1043 = vst.msk [vmem:[#allocation2] sm:$0xf] %vm844, %v1042
        %v1044 = vpack.c.bf16 %v941, %v941
        %v1046 = vunpack.c.l.b16 %v1044
        %v1047 = vpack.c.b16 %v1046, %v1046
        %1048 = vrot.lane.b32.xlu0 %v1047, 8
        %v1049 = vpop.permute.xlu0 %1048
        %vm1051 = vcmask 126016
        %1052 = vst.msk [vmem:[#allocation2] sm:$0xf] %vm1051, %v1049
        %v1053 = vpack.c.bf16 %v989, %v989
        %v1055 = vunpack.c.l.b16 %v1053
        %v1056 = vpack.c.b16 %v1055, %v1055
        %1057 = vrot.lane.b32.xlu0 %v1056, 16
        %v1058 = vpop.permute.xlu0 %1057
        %vm1060 = vcmask 191616
        %1061 = vst.msk [vmem:[#allocation2] sm:$0xf] %vm1060, %v1058
        %v1062 = vpack.c.bf16 %v1037, %v1037
        %v1064 = vunpack.c.l.b16 %v1062
        %v1065 = vpack.c.b16 %v1064, %v1064
        %1066 = vrot.lane.b32.xlu0 %v1065, 24
        %v1067 = vpop.permute.xlu0 %1066
        %vm1069 = vcmask 257216
        %1070 = vst.msk [vmem:[#allocation2] sm:$0xf] %vm1069, %v1067
        %v1071 = vld [vmem:[#allocation2] sm:$0xf]
        %v1072 = vld [vmem:[%s7] sm:$0xf]
        %v1073 = vld [vmem:[%s7 + $0x4] sm:$0xf]
        %v1074 = vld [vmem:[%s7 + $0x8] sm:$0xf]
        %v1075 = vld [vmem:[%s7 + $0xc] sm:$0xf]
        %v1076 = vld [vmem:[%s8] sm:$0x1]
        %v1078 = vlaneseq
        %v1079 = vshrl.u32 %v1078, 7
        %v1080 = vsub.s32 0, %v1079
        %v1081 = vrot.slane %v1076, %v1080
        %v1087 = vunpack.c.l.b16 %v1072
        %v1088 = vunpack.c.l.b16 %v1073
        %v1089 = vunpack.c.l.b16 %v1074
        %v1090 = vunpack.c.l.b16 %v1075
        %v1091 = vpack.c.b16 %v1088, %v1087
        %v1092 = vpack.c.b16 %v1090, %v1089
        %v1096 = vsel %vm499, %v1071, 0
        %1098 = vmatprep.subr.bf16.mxu0 0
        %1099 = vmatpush1.bf16.msra.mxu0 %v1091
        %1100 = vmatprep.subr.bf16.mxu0 0
        %1101 = vmatpush1.bf16.msra.mxu0 %v1092
        %1102 = vmatprep.subr.bf16.mxu0 0
        %1103 = vmatpush1.bf16.msra.mxu0 0
        %1104 = vmatprep.subr.bf16.mxu0 0
        %1105 = vmatpush1.bf16.msra.mxu0 0
        %1106 = vmatprep.subr.bf16.mxu0 0
        %1107 = vmatpush1.bf16.msra.mxu0 0
        %1108 = vmatprep.subr.bf16.mxu0 0
        %1109 = vmatpush1.bf16.msra.mxu0 0
        %1110 = vmatprep.subr.bf16.mxu0 0
        %1111 = vmatpush1.bf16.msra.mxu0 0
        %1112 = vmatprep.subr.bf16.mxu0 0
        %1113 = vmatpush1.bf16.msra.mxu0 0
        %1114 = vmatprep.subr.bf16.mxu0 0
        %1115 = vmatpush1.bf16.msra.mxu0 0
        %1116 = vmatprep.subr.bf16.mxu0 0
        %1117 = vmatpush1.bf16.msra.mxu0 0
        %1118 = vmatprep.subr.bf16.mxu0 0
        %1119 = vmatpush1.bf16.msra.mxu0 0
        %1120 = vmatprep.subr.bf16.mxu0 0
        %1121 = vmatpush1.bf16.msra.mxu0 0
        %1122 = vmatprep.subr.bf16.mxu0 0
        %1123 = vmatpush1.bf16.msra.mxu0 0
        %1124 = vmatprep.subr.bf16.mxu0 0
        %1125 = vmatpush1.bf16.msra.mxu0 0
        %1126 = vmatprep.subr.bf16.mxu0 0
        %1127 = vmatpush1.bf16.msra.mxu0 0
        %1128 = vmatprep.subr.bf16.mxu0 0
        %1129 = vmatpush1.bf16.msra.mxu0 0
        %1130 = vmatprep.mubr.bf16.mxu0 0
        %1131 = vmatmul.mubr.bf16.gmra.mrb[0].mxu0 %v1096
        %v1132 = vpop.f32.mrb[0].mxu0
        %v1133 = vadd.f32 %v1081, %v1132
        %v1134 = vpop.f32.mrb[0].mxu0
        %v1135 = vpop.f32.mrb[0].mxu0
        %v1136 = vpop.f32.mrb[0].mxu0
        %1137 = vdwg.mxu0
        %v1138 = vadd.f32 %v1133, %v1133
        %v1139 = vld [vmem:[%s3] sm:$0x1]
        %v1140 = vld [vmem:[%s4] sm:$0x1]
        %v1141 = vsel %vm499, %v1138, 0.0
        %1142 = vadd.xlane.f32.xlu0 %v1141
        %v1143 = vpop.xlane.xlu0 %1142
        %v1144 = vmul.f32 %v1143, %v503
        %v1145 = vsub.f32 %v1138, %v1144
        %v1146 = vmul.f32 %v1145, %v1145
        %v1147 = vsel %vm499, %v1146, 0.0
        %1148 = vadd.xlane.f32.xlu0 %v1147
        %v1149 = vpop.xlane.xlu0 %1148
        %v1150 = vmul.f32 %v1149, %v503
        %v1151 = vadd.f32 %v1150, 1e-05
        %v1152 = vrsqrt.pop %v1151
        %v1153 = vmul.f32 %v1145, %v1152
        %v1155 = vlaneseq
        %v1156 = vshrl.u32 %v1155, 7
        %v1157 = vsub.s32 0, %v1156
        %v1158 = vrot.slane %v1139, %v1157
        %v1160 = vmul.f32 %v1153, %v1158
        %v1162 = vlaneseq
        %v1163 = vshrl.u32 %v1162, 7
        %v1164 = vsub.s32 0, %v1163
        %v1165 = vrot.slane %v1140, %v1164
        %v1167 = vadd.f32 %v1160, %v1165
        %v1168 = vpack.c.bf16 %v1167, %v1167
        %v1169 = vld [vmem:[%s9] sm:$0xf]
        %v1170 = vld [vmem:[%s9 + $0x4] sm:$0xf]
        %v1171 = vld [vmem:[%s9 + $0x8] sm:$0xf]
        %v1172 = vld [vmem:[%s9 + $0xc] sm:$0xf]
        %v1173 = vld [vmem:[%s10] sm:$0x1]
        %v1175 = vlaneseq
        %v1176 = vshrl.u32 %v1175, 7
        %v1177 = vsub.s32 0, %v1176
        %v1178 = vrot.slane %v1173, %v1177
        %v1184 = vunpack.c.l.b16 %v1169
        %v1185 = vunpack.c.l.b16 %v1170
        %v1186 = vunpack.c.l.b16 %v1171
        %v1187 = vunpack.c.l.b16 %v1172
        %v1188 = vpack.c.b16 %v1185, %v1184
        %v1189 = vpack.c.b16 %v1187, %v1186
        %v1193 = vsel %vm499, %v1168, 0
        %1195 = vmatprep.subr.bf16.mxu0 0
        %1196 = vmatpush1.bf16.msra.mxu0 %v1188
        %1197 = vmatprep.subr.bf16.mxu0 0
        %1198 = vmatpush1.bf16.msra.mxu0 %v1189
        %1199 = vmatprep.subr.bf16.mxu0 0
        %1200 = vmatpush1.bf16.msra.mxu0 0
        %1201 = vmatprep.subr.bf16.mxu0 0
        %1202 = vmatpush1.bf16.msra.mxu0 0
        %1203 = vmatprep.subr.bf16.mxu0 0
        %1204 = vmatpush1.bf16.msra.mxu0 0
        %1205 = vmatprep.subr.bf16.mxu0 0
        %1206 = vmatpush1.bf16.msra.mxu0 0
        %1207 = vmatprep.subr.bf16.mxu0 0
        %1208 = vmatpush1.bf16.msra.mxu0 0
        %1209 = vmatprep.subr.bf16.mxu0 0
        %1210 = vmatpush1.bf16.msra.mxu0 0
        %1211 = vmatprep.subr.bf16.mxu0 0
        %1212 = vmatpush1.bf16.msra.mxu0 0
        %1213 = vmatprep.subr.bf16.mxu0 0
        %1214 = vmatpush1.bf16.msra.mxu0 0
        %1215 = vmatprep.subr.bf16.mxu0 0
        %1216 = vmatpush1.bf16.msra.mxu0 0
        %1217 = vmatprep.subr.bf16.mxu0 0
        %1218 = vmatpush1.bf16.msra.mxu0 0
        %1219 = vmatprep.subr.bf16.mxu0 0
        %1220 = vmatpush1.bf16.msra.mxu0 0
        %1221 = vmatprep.subr.bf16.mxu0 0
        %1222 = vmatpush1.bf16.msra.mxu0 0
        %1223 = vmatprep.subr.bf16.mxu0 0
        %1224 = vmatpush1.bf16.msra.mxu0 0
        %1225 = vmatprep.subr.bf16.mxu0 0
        %1226 = vmatpush1.bf16.msra.mxu0 0
        %1227 = vmatprep.mubr.bf16.mxu0 0
        %1228 = vmatmul.mubr.bf16.gmra.mrb[0].mxu0 %v1193
        %v1229 = vpop.f32.mrb[0].mxu0
        %v1230 = vadd.f32 %v1178, %v1229
        %v1231 = vpop.f32.mrb[0].mxu0
        %v1232 = vpop.f32.mrb[0].mxu0
        %v1233 = vpop.f32.mrb[0].mxu0
        %1234 = vdwg.mxu0
        %vm1235 = vcmp.ge.f32.partialorder %v1230, 0.0
        %v1236 = vmul.f32 %v1230, 0.01
        %v1237 = vsel %vm1235, %v1230, %v1236
        %v1238 = vpack.c.bf16 %v1237, %v1237
        %v1239 = vld [vmem:[%s11] sm:$0xf]
        %v1240 = vld [vmem:[%s11 + $0x4] sm:$0xf]
        %v1241 = vld [vmem:[%s11 + $0x8] sm:$0xf]
        %v1242 = vld [vmem:[%s11 + $0xc] sm:$0xf]
        %v1243 = vld [vmem:[%s11 + $0x10] sm:$0xf]
        %v1244 = vld [vmem:[%s11 + $0x14] sm:$0xf]
        %v1245 = vld [vmem:[%s11 + $0x18] sm:$0xf]
        %v1246 = vld [vmem:[%s11 + $0x1c] sm:$0xf]
        %v1247 = vld [vmem:[%s11 + $0x20] sm:$0xf]
        %v1248 = vld [vmem:[%s11 + $0x24] sm:$0xf]
        %v1249 = vld [vmem:[%s11 + $0x28] sm:$0xf]
        %v1250 = vld [vmem:[%s11 + $0x2c] sm:$0xf]
        %v1251 = vld [vmem:[%s11 + $0x30] sm:$0xf]
        %v1252 = vld [vmem:[%s11 + $0x34] sm:$0xf]
        %v1253 = vld [vmem:[%s11 + $0x38] sm:$0xf]
        %v1254 = vld [vmem:[%s11 + $0x3c] sm:$0xf]
        %v1255 = vld [vmem:[%s12] sm:$0x1]
        %v1257 = vlaneseq
        %v1258 = vshrl.u32 %v1257, 7
        %v1259 = vsub.s32 0, %v1258
        %v1260 = vrot.slane %v1255, %v1259
        %v1278 = vunpack.c.l.b16 %v1239
        %v1279 = vunpack.c.l.b16 %v1240
        %v1280 = vunpack.c.l.b16 %v1241
        %v1281 = vunpack.c.l.b16 %v1242
        %v1282 = vunpack.c.l.b16 %v1243
        %v1283 = vunpack.c.l.b16 %v1244
        %v1284 = vunpack.c.l.b16 %v1245
        %v1285 = vunpack.c.l.b16 %v1246
        %v1286 = vunpack.c.l.b16 %v1247
        %v1287 = vunpack.c.l.b16 %v1248
        %v1288 = vunpack.c.l.b16 %v1249
        %v1289 = vunpack.c.l.b16 %v1250
        %v1290 = vunpack.c.l.b16 %v1251
        %v1291 = vunpack.c.l.b16 %v1252
        %v1292 = vunpack.c.l.b16 %v1253
        %v1293 = vunpack.c.l.b16 %v1254
        %v1294 = vpack.c.b16 %v1279, %v1278
        %v1295 = vpack.c.b16 %v1281, %v1280
        %v1296 = vpack.c.b16 %v1283, %v1282
        %v1297 = vpack.c.b16 %v1285, %v1284
        %v1298 = vpack.c.b16 %v1287, %v1286
        %v1299 = vpack.c.b16 %v1289, %v1288
        %v1300 = vpack.c.b16 %v1291, %v1290
        %v1301 = vpack.c.b16 %v1293, %v1292
        %1310 = vmatprep.subr.bf16.mxu0 0
        %1311 = vmatpush1.bf16.msra.mxu0 %v1294
        %1312 = vmatprep.subr.bf16.mxu0 0
        %1313 = vmatpush1.bf16.msra.mxu0 %v1295
        %1314 = vmatprep.subr.bf16.mxu0 0
        %1315 = vmatpush1.bf16.msra.mxu0 %v1296
        %1316 = vmatprep.subr.bf16.mxu0 0
        %1317 = vmatpush1.bf16.msra.mxu0 %v1297
        %1318 = vmatprep.subr.bf16.mxu0 0
        %1319 = vmatpush1.bf16.msra.mxu0 %v1298
        %1320 = vmatprep.subr.bf16.mxu0 0
        %1321 = vmatpush1.bf16.msra.mxu0 %v1299
        %1322 = vmatprep.subr.bf16.mxu0 0
        %1323 = vmatpush1.bf16.msra.mxu0 %v1300
        %1324 = vmatprep.subr.bf16.mxu0 0
        %1325 = vmatpush1.bf16.msra.mxu0 %v1301
        %1326 = vmatprep.subr.bf16.mxu0 0
        %1327 = vmatpush1.bf16.msra.mxu0 0
        %1328 = vmatprep.subr.bf16.mxu0 0
        %1329 = vmatpush1.bf16.msra.mxu0 0
        %1330 = vmatprep.subr.bf16.mxu0 0
        %1331 = vmatpush1.bf16.msra.mxu0 0
        %1332 = vmatprep.subr.bf16.mxu0 0
        %1333 = vmatpush1.bf16.msra.mxu0 0
        %1334 = vmatprep.subr.bf16.mxu0 0
        %1335 = vmatpush1.bf16.msra.mxu0 0
        %1336 = vmatprep.subr.bf16.mxu0 0
        %1337 = vmatpush1.bf16.msra.mxu0 0
        %1338 = vmatprep.subr.bf16.mxu0 0
        %1339 = vmatpush1.bf16.msra.mxu0 0
        %1340 = vmatprep.subr.bf16.mxu0 0
        %1341 = vmatpush1.bf16.msra.mxu0 0
        %1342 = vmatprep.mubr.bf16.mxu0 0
        %1343 = vmatmul.mubr.bf16.gmra.mrb[0].mxu0 %v1238
        %v1344 = vpop.f32.mrb[0].mxu0
        %v1345 = vadd.f32 %v1260, %v1344
        %v1346 = vpop.f32.mrb[0].mxu0
        %v1347 = vpop.f32.mrb[0].mxu0
        %v1348 = vpop.f32.mrb[0].mxu0
        %1349 = vdwg.mxu0
        %v1350 = vadd.f32 %v1345, %v1345
        %1351 = vst.msk [vmem:[%s476] sm:$0xff] %vm499, %v1350
        %s1352 = sand.u32 %s330, 1
        %s1353 = scalar_lea.sflag [#allocation4], %s1352
        %s1354 = sand.u32 %s330, 1
        %s1355 = smul.addr %s1354, 8
        %s1356 = scalar_lea.vmem [#allocation3], %s1355
        %s1357 = sand.u32 %s358, 1
        %s1358 = scalar_lea.sflag [#allocation6], %s1357
        %s1359 = sand.u32 %s358, 1
        %s1360 = smul.addr %s1359, 16
        %s1361 = scalar_lea.vmem [#allocation5], %s1360
        // Predicated region
        $region77: #{tpu_custom_call.1} parent=71 // pred_check
          %p1362 = pneg %p340
        $region78: #{tpu_custom_call.1} parent=71 // pred_check_branch
          %1364 = sbr.rel (%p1362) target = $region80
        $region79: #{tpu_custom_call.1} parent=71 // pred_region
          %s1366 = ssub.s32 128, 128
          %1367 = vsyncadd %s1353, %s1366
          %s1368 = smul.addr %s36, 128
          %s1369 = scalar_lea.hbm %s13, %s1368
          %s1371 = sshll.u32 %s1356, 4
          %s1372 = int_to_ptr.vmem [resolvable:$true] %s1371
          %1374 = dma.vmem_to_hbm [thread:$0]  %s1372, 128, %s1369, %s1353
        $region80: #{tpu_custom_call.1} parent=71 // pred_fallthru
          _
        // Predicated region
        $region81: #{tpu_custom_call.1} parent=71 // pred_check
          %p1375 = pneg %p368
        $region82: #{tpu_custom_call.1} parent=71 // pred_check_branch
          %1377 = sbr.rel (%p1375) target = $region84
        $region83: #{tpu_custom_call.1} parent=71 // pred_region
          %s1379 = ssub.s32 256, 256
          %1380 = vsyncadd %s1358, %s1379
          %s1381 = smul.addr %s36, 4
          %s1382 = smul.addr %s37, 8
          %s1383 = sadd.s32 %s1381, %s1382
          %s1384 = smul.addr %s1383, 64
          %s1385 = scalar_lea.hbm %s14, %s1384
          %s1386 = sshll.u32 %s1361, 4
          %s1387 = int_to_ptr.vmem [resolvable:$true] %s1386
          %1392 = dma.vmem_to_hbm [thread:$0]  %s1387, 256, %s1385, %s1358, 64, 64, 4
        $region84: #{tpu_custom_call.1} parent=71 // pred_fallthru
          _
      $region72: #{tpu_custom_call.1} parent=5 // pred_fallthru
        _
      %p1393 = scmp.le.s32.totalorder 2, %s27
      // Predicated region
      $region85: #{tpu_custom_call.1} parent=5 // pred_check
        %p1394 = pneg %p1393
      $region86: #{tpu_custom_call.1} parent=5 // pred_check_branch
        %1396 = sbr.rel (%p1394) target = $region88
      $region87: #{tpu_custom_call.1} parent=5 // pred_region
        %s1397 = ssub.s32 %s27, 2
        // Predicated region
        $region89: #{tpu_custom_call.1} parent=87 // pred_check
          %p1398 = pneg %p346
        $region90: #{tpu_custom_call.1} parent=87 // pred_check_branch
          %1400 = sbr.rel (%p1398) target = $region92
        $region91: #{tpu_custom_call.1} parent=87 // pred_region
          %s1401 = sand.u32 %s331, 1
          %s1402 = scalar_lea.sflag [#allocation4], %s1401
          %s1403 = sand.u32 %s331, 1
          %s1404 = smul.addr %s1403, 8
          %s1405 = scalar_lea.vmem [#allocation3], %s1404
          %1406 = dma.done %s1402, 128
        $region92: #{tpu_custom_call.1} parent=87 // pred_fallthru
          _
        // Predicated region
        $region93: #{tpu_custom_call.1} parent=87 // pred_check
          %p1407 = pneg %p374
        $region94: #{tpu_custom_call.1} parent=87 // pred_check_branch
          %1409 = sbr.rel (%p1407) target = $region96
        $region95: #{tpu_custom_call.1} parent=87 // pred_region
          %s1410 = sand.u32 %s359, 1
          %s1411 = scalar_lea.sflag [#allocation6], %s1410
          %s1412 = sand.u32 %s359, 1
          %s1413 = smul.addr %s1412, 16
          %s1414 = scalar_lea.vmem [#allocation5], %s1413
          %1415 = dma.done %s1411, 256
        $region96: #{tpu_custom_call.1} parent=87 // pred_fallthru
          _
      $region88: #{tpu_custom_call.1} parent=5 // pred_fallthru
        _
    $region6: #{tpu_custom_call.1} parent=1 // loop_footer
      %s31 = sadd.s32 1, %s27
    $region7: #{tpu_custom_call.1} parent=1 // loop_footer_branch
      %26 = sbr.rel target = $region3
    $region8: #{tpu_custom_call.1} parent=1 // loop_exit
      _
    %1416 = vsyncpa [#allocation4], 1
    %s1417 = scalar_lea.sflag [#allocation4], 1
    %1418 = vsyncpa %s1417, 1
    %1419 = vsyncpa [#allocation6], 1
    %s1420 = scalar_lea.sflag [#allocation6], 1
    %1421 = vsyncpa %s1420, 1

</llo_original>
